<compile_context>
chip_gen: v7x
topology: tpu7x:2x2x1
jax: 0.10.0
libtpu: 0.0.40
codegen_flags: <defaults>
</compile_context>

<pallas_src>
import jax
import jax.numpy as jnp
from jax.experimental import pallas as pl
from jax.experimental.pallas import tpu as pltpu


def _round_up(n, m):
    return ((n + m - 1) // m) * m


def _vae_kernel(
    x_ref, eps_ref,
    w1_ref, b1_ref, w2_ref, b2_ref,
    wh_ref, bh_ref,
    wd1_ref, bd1_ref, wd2_ref, bd2_ref, wd3_ref, bd3_ref,
    xrec_ref, head_ref,
):
    bf16 = jnp.bfloat16
    x = x_ref[...].astype(bf16)  # (TB, 784), cast in-kernel (no wrapper copy)

    # ---- encoder: Linear(784,512)+ReLU, Linear(512,256)+ReLU ----
    h = jnp.dot(x, w1_ref[...], preferred_element_type=jnp.float32) + b1_ref[...]
    h = jnp.maximum(h, 0.0).astype(bf16)
    h = jnp.dot(h, w2_ref[...], preferred_element_type=jnp.float32) + b2_ref[...]
    h = jnp.maximum(h, 0.0).astype(bf16)

    # ---- fused (mu | sigma) head: one lane-dense matmul, split at z_pad ----
    head = jnp.dot(h, wh_ref[...], preferred_element_type=jnp.float32) + bh_ref[...]
    z_pad = eps_ref.shape[-1]
    mu = head[:, :z_pad]
    sigma = jnp.exp(head[:, z_pad:])

    # ---- reparameterize: z = mu + sigma * eps (padded lanes: mu=0, eps=0) ----
    z = mu + sigma * eps_ref[...].astype(jnp.float32)

    # ---- decoder: Linear(20,256)+ReLU, Linear(256,512)+ReLU,
    #               Linear(512,784)+Sigmoid ----
    d = jnp.dot(z.astype(bf16), wd1_ref[...], preferred_element_type=jnp.float32) + bd1_ref[...]
    d = jnp.maximum(d, 0.0).astype(bf16)
    d = jnp.dot(d, wd2_ref[...], preferred_element_type=jnp.float32) + bd2_ref[...]
    d = jnp.maximum(d, 0.0).astype(bf16)
    logits = jnp.dot(d, wd3_ref[...], preferred_element_type=jnp.float32) + bd3_ref[...]

    # sigmoid via a single transcendental (EUP) op: sigmoid(x) = 0.5*(tanh(x/2)+1)
    xrec_ref[...] = (0.5 * (jnp.tanh(0.5 * logits) + 1.0)).astype(xrec_ref.dtype)
    # fused (mu | sigma) writeback: one lane-dense bf16 store
    head_ref[...] = jnp.concatenate([mu, sigma], axis=-1).astype(head_ref.dtype)


def init_vae_params(key, input_dim=784, h_dim1=512, h_dim2=256, z_dim=20):
    """Deterministic synthetic f32 parameters, weights stored as (in, out)."""
    dims = [
        ("enc1", input_dim, h_dim1),
        ("enc2", h_dim1, h_dim2),
        ("mu", h_dim2, z_dim),
        ("sigma", h_dim2, z_dim),
        ("dec1", z_dim, h_dim2),
        ("dec2", h_dim2, h_dim1),
        ("dec3", h_dim1, input_dim),
    ]
    params = {}
    for name, d_in, d_out in dims:
        key, kw, kb = jax.random.split(key, 3)
        scale = 1.0 / jnp.sqrt(jnp.float32(d_in))
        params[name + "_w"] = (
            jax.random.uniform(kw, (d_in, d_out), jnp.float32, -1.0, 1.0) * scale
        )
        params[name + "_b"] = (
            jax.random.uniform(kb, (1, d_out), jnp.float32, -1.0, 1.0) * scale
        )
    return params


def pack_vae_params(params):
    """Fuse mu/sigma head (z padded 20->128 lanes), cast weights bf16, biases f32."""
    bf16 = jnp.bfloat16
    h2 = params["enc2_w"].shape[1]
    z_dim = params["mu_w"].shape[1]
    z_pad = _round_up(z_dim, 128)  # 20 -> 128

    def pad_w(w, rows, cols):
        return jnp.zeros((rows, cols), w.dtype).at[: w.shape[0], : w.shape[1]].set(w)

    def pad_b(b, cols):
        return jnp.zeros((1, cols), b.dtype).at[:, : b.shape[1]].set(b)

    packed = {
        # enc1 / dec3 kept UNPADDED on the 784 axis: x in / x_rec out are fed
        # with block last dim == full array dim (legal, no padding traffic).
        "enc1_w": params["enc1_w"].astype(bf16),
        "enc1_b": params["enc1_b"],
        "enc2_w": params["enc2_w"].astype(bf16),
        "enc2_b": params["enc2_b"],
        # fused (mu | sigma) head, each padded to z_pad lanes
        "head_w": jnp.concatenate(
            [pad_w(params["mu_w"], h2, z_pad), pad_w(params["sigma_w"], h2, z_pad)],
            axis=1,
        ).astype(bf16),
        "head_b": jnp.concatenate(
            [pad_b(params["mu_b"], z_pad), pad_b(params["sigma_b"], z_pad)], axis=1
        ),
        "dec1_w": pad_w(params["dec1_w"], z_pad, h2).astype(bf16),
        "dec1_b": params["dec1_b"],
        "dec2_w": params["dec2_w"].astype(bf16),
        "dec2_b": params["dec2_b"],
        "dec3_w": params["dec3_w"].astype(bf16),
        "dec3_b": params["dec3_b"],
    }
    return packed


def _resident_spec(shape):
    """Whole-array, grid-resident weight/bias spec; single-buffered if supported."""
    try:
        return pl.BlockSpec(shape, lambda i: (0, 0), pipeline_mode=pl.Buffered(1))
    except (AttributeError, TypeError):
        # Older JAX without pipeline_mode/Buffered: constant index_map still
        # avoids redundant per-step weight DMA (default double-buffering).
        return pl.BlockSpec(shape, lambda i: (0, 0))


@jax.jit
def vae_forward(x, eps, packed):
    B, input_dim = x.shape
    z_dim = eps.shape[1]
    z_pad = packed["dec1_w"].shape[0]

    # ---- batch tiling ----
    TB_CAP = 512  # big tiles amortize ~0.35us/step overhead, ~85% HBM roofline
    tb = min(TB_CAP, _round_up(B, 8))
    if B >= 128 and _round_up(B, tb) // tb < 2:
        # keep >=2 grid steps so v7x can shard the batch across both TensorCores
        tb = _round_up(pl.cdiv(B, 2), 8)
    bp = _round_up(B, tb)
    grid = (bp // tb,)

    # x is fed unpadded (only pad batch rows if B doesn't divide the tile).
    xp = x if bp == B else jnp.zeros((bp, input_dim), x.dtype).at[:B].set(x)
    # eps: bf16, lane-padded 20 -> 128 with zeros (keeps padded z lanes at 0).
    epsp = (
        jnp.zeros((bp, z_pad), jnp.bfloat16)
        .at[:B, :z_dim]
        .set(eps.astype(jnp.bfloat16))
    )

    weight_args = (
        packed["enc1_w"], packed["enc1_b"],
        packed["enc2_w"], packed["enc2_b"],
        packed["head_w"], packed["head_b"],
        packed["dec1_w"], packed["dec1_b"],
        packed["dec2_w"], packed["dec2_b"],
        packed["dec3_w"], packed["dec3_b"],
    )

    batch_spec = lambda cols: pl.BlockSpec((tb, cols), lambda i: (i, 0))
    weight_specs = [_resident_spec(w.shape) for w in weight_args]

    out_shapes = (
        jax.ShapeDtypeStruct((bp, input_dim), jnp.bfloat16),   # x_reconstructed
        jax.ShapeDtypeStruct((bp, 2 * z_pad), jnp.bfloat16),   # fused (mu | sigma)
    )

    xrec_p, head_p = pl.pallas_call(
        _vae_kernel,
        out_shape=out_shapes,
        grid=grid,
        in_specs=[batch_spec(input_dim), batch_spec(z_pad)] + weight_specs,
        out_specs=(batch_spec(input_dim), batch_spec(2 * z_pad)),
        compiler_params=pltpu.CompilerParams(
            dimension_semantics=("parallel",),
            # explicit limit: large tiles exceed v5e's 16 MiB default; stays
            # well under v7x's 64 MiB physical VMEM per TensorCore.
            vmem_limit_bytes=48 * 1024 * 1024,
        ),
    )(xp, epsp, *weight_args)

    # TODO(synk): optional v7x small-batch win (fp8 weights / cross-call weight
    # prefetch) not implemented; bf16 weights are used on all chips.
    x_rec = xrec_p[:B]                                   # (B, 784) bf16
    mu = head_p[:B, :z_dim].astype(jnp.float32)          # (B, 20)
    sigma = head_p[:B, z_pad:z_pad + z_dim].astype(jnp.float32)
    return x_rec, mu, sigma


def vae_forward_ref(x, eps, params):
    """Pure-JAX reference mirroring the kernel's bf16-matmul / f32-accum math."""
    bf16 = jnp.bfloat16

    def mm(a, w, b):
        return (
            jnp.dot(a.astype(bf16), w.astype(bf16), preferred_element_type=jnp.float32)
            + b
        )

    h = jnp.maximum(mm(x, params["enc1_w"], params["enc1_b"]), 0.0)
    h = jnp.maximum(mm(h, params["enc2_w"], params["enc2_b"]), 0.0)
    mu = mm(h, params["mu_w"], params["mu_b"])
    sigma = jnp.exp(mm(h, params["sigma_w"], params["sigma_b"]))
    # kernel consumes eps in bf16
    z = mu + sigma * eps.astype(bf16).astype(jnp.float32)
    d = jnp.maximum(mm(z, params["dec1_w"], params["dec1_b"]), 0.0)
    d = jnp.maximum(mm(d, params["dec2_w"], params["dec2_b"]), 0.0)
    x_rec = jax.nn.sigmoid(mm(d, params["dec3_w"], params["dec3_b"]))
    return x_rec, mu, sigma


if __name__ == "__main__":
    B, INPUT_DIM, H1, H2, Z = 8, 784, 512, 256, 20

    key = jax.random.PRNGKey(0)
    k_params, k_x, k_eps = jax.random.split(key, 3)

    params = init_vae_params(k_params, INPUT_DIM, H1, H2, Z)
    packed = pack_vae_params(params)

    x = jax.random.uniform(k_x, (B, INPUT_DIM), jnp.float32)   # MNIST-like pixels
    eps = jax.random.normal(k_eps, (B, Z), jnp.float32)        # torch.randn_like(sigma)

    x_rec, mu, sigma = vae_forward(x, eps, packed)
    jax.block_until_ready((x_rec, mu, sigma))

    # correctness check vs pure-JAX reference (same bf16-matmul precision;
    # kernel outputs are bf16 -> loose-but-meaningful tolerance)
    x_rec_r, mu_r, sigma_r = vae_forward_ref(x, eps, params)
    assert bool(jnp.allclose(x_rec.astype(jnp.float32), x_rec_r, atol=2e-2, rtol=2e-2)), "x_rec mismatch"
    assert bool(jnp.allclose(mu, mu_r, atol=2e-2, rtol=2e-2)), "mu mismatch"
    assert bool(jnp.allclose(sigma, sigma_r, atol=2e-2, rtol=2e-2)), "sigma mismatch"

    print("KERNEL_OK")
</pallas_src>

<mosaic_0001>
module attributes {stable_mosaic.version = 11 : i64} {
  func.func @_vae_kernel(%arg0: i32, %arg1: memref<8x784xf32, #tpu.memory_space<vmem>>, %arg2: memref<8x128xbf16, #tpu.memory_space<vmem>>, %arg3: memref<784x512xbf16, #tpu.memory_space<vmem>>, %arg4: memref<1x512xf32, #tpu.memory_space<vmem>>, %arg5: memref<512x256xbf16, #tpu.memory_space<vmem>>, %arg6: memref<1x256xf32, #tpu.memory_space<vmem>>, %arg7: memref<256x256xbf16, #tpu.memory_space<vmem>>, %arg8: memref<1x256xf32, #tpu.memory_space<vmem>>, %arg9: memref<128x256xbf16, #tpu.memory_space<vmem>>, %arg10: memref<1x256xf32, #tpu.memory_space<vmem>>, %arg11: memref<256x512xbf16, #tpu.memory_space<vmem>>, %arg12: memref<1x512xf32, #tpu.memory_space<vmem>>, %arg13: memref<512x784xbf16, #tpu.memory_space<vmem>>, %arg14: memref<1x784xf32, #tpu.memory_space<vmem>>, %arg15: memref<8x784xbf16, #tpu.memory_space<vmem>>, %arg16: memref<8x256xbf16, #tpu.memory_space<vmem>>) attributes {dimension_semantics = [#tpu.dimension_semantics<parallel>], iteration_bounds = array<i64: 1>, scalar_prefetch = 0 : i64, scratch_operands = 0 : i64, tpu.core_type = #tpu.core_type<tc>, window_params = [{transform_indices = @transform_0, window_bounds = array<i64: 8, 784>}, {transform_indices = @transform_1, window_bounds = array<i64: 8, 128>}, {pipeline_mode = #tpu.pipeline_mode<synchronous>, transform_indices = @transform_2, window_bounds = array<i64: 784, 512>}, {pipeline_mode = #tpu.pipeline_mode<synchronous>, transform_indices = @transform_3, window_bounds = array<i64: 1, 512>}, {pipeline_mode = #tpu.pipeline_mode<synchronous>, transform_indices = @transform_4, window_bounds = array<i64: 512, 256>}, {pipeline_mode = #tpu.pipeline_mode<synchronous>, transform_indices = @transform_5, window_bounds = array<i64: 1, 256>}, {pipeline_mode = #tpu.pipeline_mode<synchronous>, transform_indices = @transform_6, window_bounds = array<i64: 256, 256>}, {pipeline_mode = #tpu.pipeline_mode<synchronous>, transform_indices = @transform_7, window_bounds = array<i64: 1, 256>}, {pipeline_mode = #tpu.pipeline_mode<synchronous>, transform_indices = @transform_8, window_bounds = array<i64: 128, 256>}, {pipeline_mode = #tpu.pipeline_mode<synchronous>, transform_indices = @transform_9, window_bounds = array<i64: 1, 256>}, {pipeline_mode = #tpu.pipeline_mode<synchronous>, transform_indices = @transform_10, window_bounds = array<i64: 256, 512>}, {pipeline_mode = #tpu.pipeline_mode<synchronous>, transform_indices = @transform_11, window_bounds = array<i64: 1, 512>}, {pipeline_mode = #tpu.pipeline_mode<synchronous>, transform_indices = @transform_12, window_bounds = array<i64: 512, 784>}, {pipeline_mode = #tpu.pipeline_mode<synchronous>, transform_indices = @transform_13, window_bounds = array<i64: 1, 784>}, {transform_indices = @transform_14, window_bounds = array<i64: 8, 784>}, {transform_indices = @transform_15, window_bounds = array<i64: 8, 256>}]} {
    %c0 = arith.constant 0 : index
    %c0_0 = arith.constant 0 : index
    %0 = vector.load %arg1[%c0, %c0_0] : memref<8x784xf32, #tpu.memory_space<vmem>>, vector<8x784xf32>
    %1 = arith.truncf %0 : vector<8x784xf32> to vector<8x784xbf16>
    %c0_1 = arith.constant 0 : index
    %c0_2 = arith.constant 0 : index
    %2 = vector.load %arg3[%c0_1, %c0_2] : memref<784x512xbf16, #tpu.memory_space<vmem>>, vector<784x512xbf16>
    %cst = arith.constant dense<0.000000e+00> : vector<8x512xf32>
    %3 = tpu.matmul %1, %2, %cst {dimension_numbers = #tpu.dot_dimension_numbers<[1], [0], [0], [1], [0, 0, 1, 1], [], []>} : vector<8x784xbf16>, vector<784x512xbf16>, vector<8x512xf32> -> vector<8x512xf32>
    %c0_3 = arith.constant 0 : index
    %c0_4 = arith.constant 0 : index
    %4 = vector.load %arg4[%c0_3, %c0_4] : memref<1x512xf32, #tpu.memory_space<vmem>>, vector<1x512xf32>
    %5 = vector.broadcast %4 : vector<1x512xf32> to vector<8x512xf32>
    %6 = arith.addf %3, %5 : vector<8x512xf32>
    %cst_5 = arith.constant 0.000000e+00 : f32
    %7 = vector.broadcast %cst_5 : f32 to vector<8x512xf32>
    %8 = arith.maximumf %6, %7 : vector<8x512xf32>
    %9 = arith.truncf %8 : vector<8x512xf32> to vector<8x512xbf16>
    %c0_6 = arith.constant 0 : index
    %c0_7 = arith.constant 0 : index
    %10 = vector.load %arg5[%c0_6, %c0_7] : memref<512x256xbf16, #tpu.memory_space<vmem>>, vector<512x256xbf16>
    %cst_8 = arith.constant dense<0.000000e+00> : vector<8x256xf32>
    %11 = tpu.matmul %9, %10, %cst_8 {dimension_numbers = #tpu.dot_dimension_numbers<[1], [0], [0], [1], [0, 0, 1, 1], [], []>} : vector<8x512xbf16>, vector<512x256xbf16>, vector<8x256xf32> -> vector<8x256xf32>
    %c0_9 = arith.constant 0 : index
    %c0_10 = arith.constant 0 : index
    %12 = vector.load %arg6[%c0_9, %c0_10] : memref<1x256xf32, #tpu.memory_space<vmem>>, vector<1x256xf32>
    %13 = vector.broadcast %12 : vector<1x256xf32> to vector<8x256xf32>
    %14 = arith.addf %11, %13 : vector<8x256xf32>
    %cst_11 = arith.constant 0.000000e+00 : f32
    %15 = vector.broadcast %cst_11 : f32 to vector<8x256xf32>
    %16 = arith.maximumf %14, %15 : vector<8x256xf32>
    %17 = arith.truncf %16 : vector<8x256xf32> to vector<8x256xbf16>
    %c0_12 = arith.constant 0 : index
    %c0_13 = arith.constant 0 : index
    %18 = vector.load %arg7[%c0_12, %c0_13] : memref<256x256xbf16, #tpu.memory_space<vmem>>, vector<256x256xbf16>
    %cst_14 = arith.constant dense<0.000000e+00> : vector<8x256xf32>
    %19 = tpu.matmul %17, %18, %cst_14 {dimension_numbers = #tpu.dot_dimension_numbers<[1], [0], [0], [1], [0, 0, 1, 1], [], []>} : vector<8x256xbf16>, vector<256x256xbf16>, vector<8x256xf32> -> vector<8x256xf32>
    %c0_15 = arith.constant 0 : index
    %c0_16 = arith.constant 0 : index
    %20 = vector.load %arg8[%c0_15, %c0_16] : memref<1x256xf32, #tpu.memory_space<vmem>>, vector<1x256xf32>
    %21 = vector.broadcast %20 : vector<1x256xf32> to vector<8x256xf32>
    %22 = arith.addf %19, %21 : vector<8x256xf32>
    %23 = vector.extract_strided_slice %22 {offsets = [0, 0], sizes = [8, 128], strides = [1, 1]} : vector<8x256xf32> to vector<8x128xf32>
    %24 = vector.extract_strided_slice %22 {offsets = [0, 128], sizes = [8, 128], strides = [1, 1]} : vector<8x256xf32> to vector<8x128xf32>
    %25 = math.exp %24 : vector<8x128xf32>
    %c0_17 = arith.constant 0 : index
    %c0_18 = arith.constant 0 : index
    %26 = vector.load %arg2[%c0_17, %c0_18] : memref<8x128xbf16, #tpu.memory_space<vmem>>, vector<8x128xbf16>
    %27 = arith.extf %26 : vector<8x128xbf16> to vector<8x128xf32>
    %28 = arith.mulf %25, %27 : vector<8x128xf32>
    %29 = arith.addf %23, %28 : vector<8x128xf32>
    %30 = arith.truncf %29 : vector<8x128xf32> to vector<8x128xbf16>
    %c0_19 = arith.constant 0 : index
    %c0_20 = arith.constant 0 : index
    %31 = vector.load %arg9[%c0_19, %c0_20] : memref<128x256xbf16, #tpu.memory_space<vmem>>, vector<128x256xbf16>
    %cst_21 = arith.constant dense<0.000000e+00> : vector<8x256xf32>
    %32 = tpu.matmul %30, %31, %cst_21 {dimension_numbers = #tpu.dot_dimension_numbers<[1], [0], [0], [1], [0, 0, 1, 1], [], []>} : vector<8x128xbf16>, vector<128x256xbf16>, vector<8x256xf32> -> vector<8x256xf32>
    %c0_22 = arith.constant 0 : index
    %c0_23 = arith.constant 0 : index
    %33 = vector.load %arg10[%c0_22, %c0_23] : memref<1x256xf32, #tpu.memory_space<vmem>>, vector<1x256xf32>
    %34 = vector.broadcast %33 : vector<1x256xf32> to vector<8x256xf32>
    %35 = arith.addf %32, %34 : vector<8x256xf32>
    %cst_24 = arith.constant 0.000000e+00 : f32
    %36 = vector.broadcast %cst_24 : f32 to vector<8x256xf32>
    %37 = arith.maximumf %35, %36 : vector<8x256xf32>
    %38 = arith.truncf %37 : vector<8x256xf32> to vector<8x256xbf16>
    %c0_25 = arith.constant 0 : index
    %c0_26 = arith.constant 0 : index
    %39 = vector.load %arg11[%c0_25, %c0_26] : memref<256x512xbf16, #tpu.memory_space<vmem>>, vector<256x512xbf16>
    %cst_27 = arith.constant dense<0.000000e+00> : vector<8x512xf32>
    %40 = tpu.matmul %38, %39, %cst_27 {dimension_numbers = #tpu.dot_dimension_numbers<[1], [0], [0], [1], [0, 0, 1, 1], [], []>} : vector<8x256xbf16>, vector<256x512xbf16>, vector<8x512xf32> -> vector<8x512xf32>
    %c0_28 = arith.constant 0 : index
    %c0_29 = arith.constant 0 : index
    %41 = vector.load %arg12[%c0_28, %c0_29] : memref<1x512xf32, #tpu.memory_space<vmem>>, vector<1x512xf32>
    %42 = vector.broadcast %41 : vector<1x512xf32> to vector<8x512xf32>
    %43 = arith.addf %40, %42 : vector<8x512xf32>
    %cst_30 = arith.constant 0.000000e+00 : f32
    %44 = vector.broadcast %cst_30 : f32 to vector<8x512xf32>
    %45 = arith.maximumf %43, %44 : vector<8x512xf32>
    %46 = arith.truncf %45 : vector<8x512xf32> to vector<8x512xbf16>
    %c0_31 = arith.constant 0 : index
    %c0_32 = arith.constant 0 : index
    %47 = vector.load %arg13[%c0_31, %c0_32] : memref<512x784xbf16, #tpu.memory_space<vmem>>, vector<512x784xbf16>
    %cst_33 = arith.constant dense<0.000000e+00> : vector<8x784xf32>
    %48 = tpu.matmul %46, %47, %cst_33 {dimension_numbers = #tpu.dot_dimension_numbers<[1], [0], [0], [1], [0, 0, 1, 1], [], []>} : vector<8x512xbf16>, vector<512x784xbf16>, vector<8x784xf32> -> vector<8x784xf32>
    %c0_34 = arith.constant 0 : index
    %c0_35 = arith.constant 0 : index
    %49 = vector.load %arg14[%c0_34, %c0_35] : memref<1x784xf32, #tpu.memory_space<vmem>>, vector<1x784xf32>
    %50 = vector.broadcast %49 : vector<1x784xf32> to vector<8x784xf32>
    %51 = arith.addf %48, %50 : vector<8x784xf32>
    %cst_36 = arith.constant 5.000000e-01 : f32
    %52 = vector.broadcast %cst_36 : f32 to vector<8x784xf32>
    %53 = arith.mulf %52, %51 : vector<8x784xf32>
    %54 = math.tanh %53 : vector<8x784xf32>
    %cst_37 = arith.constant 1.000000e+00 : f32
    %55 = vector.broadcast %cst_37 : f32 to vector<8x784xf32>
    %56 = arith.addf %54, %55 : vector<8x784xf32>
    %cst_38 = arith.constant 5.000000e-01 : f32
    %57 = vector.broadcast %cst_38 : f32 to vector<8x784xf32>
    %58 = arith.mulf %57, %56 : vector<8x784xf32>
    %59 = arith.truncf %58 : vector<8x784xf32> to vector<8x784xbf16>
    %c0_39 = arith.constant 0 : index
    %c0_40 = arith.constant 0 : index
    %60 = vector.load %arg15[%c0_39, %c0_40] : memref<8x784xbf16, #tpu.memory_space<vmem>>, vector<8x784xbf16>
    tpu.vector_store %arg15[%c0_39, %c0_40], %59 {strides = array<i32>} : memref<8x784xbf16, #tpu.memory_space<vmem>>, vector<8x784xbf16>,
    %61 = tpu.concatenate %23, %25 in 1 : vector<8x128xf32>, vector<8x128xf32> -> vector<8x256xf32>
    %62 = arith.truncf %61 : vector<8x256xf32> to vector<8x256xbf16>
    %c0_41 = arith.constant 0 : index
    %c0_42 = arith.constant 0 : index
    %63 = vector.load %arg16[%c0_41, %c0_42] : memref<8x256xbf16, #tpu.memory_space<vmem>>, vector<8x256xbf16>
    tpu.vector_store %arg16[%c0_41, %c0_42], %62 {strides = array<i32>} : memref<8x256xbf16, #tpu.memory_space<vmem>>, vector<8x256xbf16>,
    return
  }
  func.func @transform_0(%arg0: i32) -> (i32, i32) {
    %c0_i32 = arith.constant 0 : i32
    %c0_i32_0 = arith.constant 0 : i32
    return %arg0, %c0_i32 : i32, i32
  }
  func.func @transform_1(%arg0: i32) -> (i32, i32) {
    %c0_i32 = arith.constant 0 : i32
    %c0_i32_0 = arith.constant 0 : i32
    return %arg0, %c0_i32 : i32, i32
  }
  func.func @transform_2(%arg0: i32) -> (i32, i32) {
    %c0_i32 = arith.constant 0 : i32
    %c0_i32_0 = arith.constant 0 : i32
    %c0_i32_1 = arith.constant 0 : i32
    return %c0_i32, %c0_i32_0 : i32, i32
  }
  func.func @transform_3(%arg0: i32) -> (i32, i32) {
    %c0_i32 = arith.constant 0 : i32
    %c0_i32_0 = arith.constant 0 : i32
    %c0_i32_1 = arith.constant 0 : i32
    return %c0_i32, %c0_i32_0 : i32, i32
  }
  func.func @transform_4(%arg0: i32) -> (i32, i32) {
    %c0_i32 = arith.constant 0 : i32
    %c0_i32_0 = arith.constant 0 : i32
    %c0_i32_1 = arith.constant 0 : i32
    return %c0_i32, %c0_i32_0 : i32, i32
  }
  func.func @transform_5(%arg0: i32) -> (i32, i32) {
    %c0_i32 = arith.constant 0 : i32
    %c0_i32_0 = arith.constant 0 : i32
    %c0_i32_1 = arith.constant 0 : i32
    return %c0_i32, %c0_i32_0 : i32, i32
  }
  func.func @transform_6(%arg0: i32) -> (i32, i32) {
    %c0_i32 = arith.constant 0 : i32
    %c0_i32_0 = arith.constant 0 : i32
    %c0_i32_1 = arith.constant 0 : i32
    return %c0_i32, %c0_i32_0 : i32, i32
  }
  func.func @transform_7(%arg0: i32) -> (i32, i32) {
    %c0_i32 = arith.constant 0 : i32
    %c0_i32_0 = arith.constant 0 : i32
    %c0_i32_1 = arith.constant 0 : i32
    return %c0_i32, %c0_i32_0 : i32, i32
  }
  func.func @transform_8(%arg0: i32) -> (i32, i32) {
    %c0_i32 = arith.constant 0 : i32
    %c0_i32_0 = arith.constant 0 : i32
    %c0_i32_1 = arith.constant 0 : i32
    return %c0_i32, %c0_i32_0 : i32, i32
  }
  func.func @transform_9(%arg0: i32) -> (i32, i32) {
    %c0_i32 = arith.constant 0 : i32
    %c0_i32_0 = arith.constant 0 : i32
    %c0_i32_1 = arith.constant 0 : i32
    return %c0_i32, %c0_i32_0 : i32, i32
  }
  func.func @transform_10(%arg0: i32) -> (i32, i32) {
    %c0_i32 = arith.constant 0 : i32
    %c0_i32_0 = arith.constant 0 : i32
    %c0_i32_1 = arith.constant 0 : i32
    return %c0_i32, %c0_i32_0 : i32, i32
  }
  func.func @transform_11(%arg0: i32) -> (i32, i32) {
    %c0_i32 = arith.constant 0 : i32
    %c0_i32_0 = arith.constant 0 : i32
    %c0_i32_1 = arith.constant 0 : i32
    return %c0_i32, %c0_i32_0 : i32, i32
  }
  func.func @transform_12(%arg0: i32) -> (i32, i32) {
    %c0_i32 = arith.constant 0 : i32
    %c0_i32_0 = arith.constant 0 : i32
    %c0_i32_1 = arith.constant 0 : i32
    return %c0_i32, %c0_i32_0 : i32, i32
  }
  func.func @transform_13(%arg0: i32) -> (i32, i32) {
    %c0_i32 = arith.constant 0 : i32
    %c0_i32_0 = arith.constant 0 : i32
    %c0_i32_1 = arith.constant 0 : i32
    return %c0_i32, %c0_i32_0 : i32, i32
  }
  func.func @transform_14(%arg0: i32) -> (i32, i32) {
    %c0_i32 = arith.constant 0 : i32
    %c0_i32_0 = arith.constant 0 : i32
    return %arg0, %c0_i32 : i32, i32
  }
  func.func @transform_15(%arg0: i32) -> (i32, i32) {
    %c0_i32 = arith.constant 0 : i32
    %c0_i32_0 = arith.constant 0 : i32
    return %arg0, %c0_i32 : i32, i32
  }
}

</mosaic_0001>

<llo_original>
// kernel: vae_forward.1
$region0: #{vae_forward.1}
  #allocation0 [shape = 'u32[]', space=smem, size = 0x4, offset = 0x4, fixed_abs, tag = 'smem constant byte address 0x4 - core index']
  #allocation1 [shape = 'u32[144,128]{1,0:T(1,128)}', space=vmem, size = 0x12000, scoped, tag = 'internal scratch']
  %s0 = inlined_call_operand.vmem [shape: f32[8,784], index: 0, kind: input, shape index: {}]
  %s1 = inlined_call_operand.vmem [shape: bf16[8,128], index: 1, kind: input, shape index: {}]
  %s2 = inlined_call_operand.vmem [shape: bf16[784,512], index: 2, kind: input, shape index: {}]
  %s3 = inlined_call_operand.vmem [shape: f32[1,512], index: 3, kind: input, shape index: {}]
  %s4 = inlined_call_operand.vmem [shape: bf16[512,256], index: 4, kind: input, shape index: {}]
  %s5 = inlined_call_operand.vmem [shape: f32[1,256], index: 5, kind: input, shape index: {}]
  %s6 = inlined_call_operand.vmem [shape: bf16[256,256], index: 6, kind: input, shape index: {}]
  %s7 = inlined_call_operand.vmem [shape: f32[1,256], index: 7, kind: input, shape index: {}]
  %s8 = inlined_call_operand.vmem [shape: bf16[128,256], index: 8, kind: input, shape index: {}]
  %s9 = inlined_call_operand.vmem [shape: f32[1,256], index: 9, kind: input, shape index: {}]
  %s10 = inlined_call_operand.vmem [shape: bf16[256,512], index: 10, kind: input, shape index: {}]
  %s11 = inlined_call_operand.vmem [shape: f32[1,512], index: 11, kind: input, shape index: {}]
  %s12 = inlined_call_operand.vmem [shape: bf16[512,784], index: 12, kind: input, shape index: {}]
  %s13 = inlined_call_operand.vmem [shape: f32[1,784], index: 13, kind: input, shape index: {}]
  %s14 = inlined_call_operand.hbm [shape: bf16[8,784], index: 14, kind: output, shape index: {0}]
  %s15 = inlined_call_operand.vmem [shape: bf16[8,256], index: 15, kind: output, shape index: {1}]
  %16 = xla_tuple %s14, %s15
  %s17 = sld [smem:[#allocation0]]
  $region74: #{vae_forward.1} parent=0
    _
  %s19 = ssub.s32 1, %s17
  %s20 = scalar_select 0, %s19, %s17
  $region1: #{vae_forward.1} parent=0
    #allocation2 [shape = 'u8[14336]{0}', space=vmem, size = 0x3800, scoped, tag = 'output window, operand 0, single buffered']
    #allocation3 [shape = 's32[1]{0}', space=sflag, size = 0x4, scoped, tag = 'scoped memory for vae_forward.1']
    %21 = vsyncpa [#allocation3], 0
    // Predicated region
    $region2: #{vae_forward.1} parent=1 // pred_check
      _
    $region3: #{vae_forward.1} parent=1 // pred_check_branch
      %23 = sbr.rel (0) target = $region5
    $region4: #{vae_forward.1} parent=1 // pred_region
      _
    $region5: #{vae_forward.1} parent=1 // pred_fallthru
      _
    // Predicated region
    $region6: #{vae_forward.1} parent=1 // pred_check
      _
    $region7: #{vae_forward.1} parent=1 // pred_check_branch
      %25 = sbr.rel (0) target = $region9
    $region8: #{vae_forward.1} parent=1 // pred_region
      _
    $region9: #{vae_forward.1} parent=1 // pred_fallthru
      _
    // Predicated region
    $region10: #{vae_forward.1} parent=1 // pred_check
      _
    $region11: #{vae_forward.1} parent=1 // pred_check_branch
      %27 = sbr.rel (0) target = $region13
    $region12: #{vae_forward.1} parent=1 // pred_region
      _
    $region13: #{vae_forward.1} parent=1 // pred_fallthru
      _
    // Predicated region
    $region14: #{vae_forward.1} parent=1 // pred_check
      _
    $region15: #{vae_forward.1} parent=1 // pred_check_branch
      %29 = sbr.rel (0) target = $region17
    $region16: #{vae_forward.1} parent=1 // pred_region
      _
    $region17: #{vae_forward.1} parent=1 // pred_fallthru
      _
    // Predicated region
    $region18: #{vae_forward.1} parent=1 // pred_check
      _
    $region19: #{vae_forward.1} parent=1 // pred_check_branch
      %31 = sbr.rel (0) target = $region21
    $region20: #{vae_forward.1} parent=1 // pred_region
      _
    $region21: #{vae_forward.1} parent=1 // pred_fallthru
      _
    // Predicated region
    $region22: #{vae_forward.1} parent=1 // pred_check
      _
    $region23: #{vae_forward.1} parent=1 // pred_check_branch
      %33 = sbr.rel (0) target = $region25
    $region24: #{vae_forward.1} parent=1 // pred_region
      _
    $region25: #{vae_forward.1} parent=1 // pred_fallthru
      _
    // Predicated region
    $region26: #{vae_forward.1} parent=1 // pred_check
      _
    $region27: #{vae_forward.1} parent=1 // pred_check_branch
      %35 = sbr.rel (0) target = $region29
    $region28: #{vae_forward.1} parent=1 // pred_region
      _
    $region29: #{vae_forward.1} parent=1 // pred_fallthru
      _
    // Predicated region
    $region30: #{vae_forward.1} parent=1 // pred_check
      _
    $region31: #{vae_forward.1} parent=1 // pred_check_branch
      %37 = sbr.rel (0) target = $region33
    $region32: #{vae_forward.1} parent=1 // pred_region
      _
    $region33: #{vae_forward.1} parent=1 // pred_fallthru
      _
    // Predicated region
    $region34: #{vae_forward.1} parent=1 // pred_check
      _
    $region35: #{vae_forward.1} parent=1 // pred_check_branch
      %39 = sbr.rel (0) target = $region37
    $region36: #{vae_forward.1} parent=1 // pred_region
      _
    $region37: #{vae_forward.1} parent=1 // pred_fallthru
      _
    // Predicated region
    $region38: #{vae_forward.1} parent=1 // pred_check
      _
    $region39: #{vae_forward.1} parent=1 // pred_check_branch
      %41 = sbr.rel (0) target = $region41
    $region40: #{vae_forward.1} parent=1 // pred_region
      _
    $region41: #{vae_forward.1} parent=1 // pred_fallthru
      _
    // Predicated region
    $region42: #{vae_forward.1} parent=1 // pred_check
      _
    $region43: #{vae_forward.1} parent=1 // pred_check_branch
      %43 = sbr.rel (0) target = $region45
    $region44: #{vae_forward.1} parent=1 // pred_region
      _
    $region45: #{vae_forward.1} parent=1 // pred_fallthru
      _
    // Predicated region
    $region46: #{vae_forward.1} parent=1 // pred_check
      _
    $region47: #{vae_forward.1} parent=1 // pred_check_branch
      %45 = sbr.rel (0) target = $region49
    $region48: #{vae_forward.1} parent=1 // pred_region
      _
    $region49: #{vae_forward.1} parent=1 // pred_fallthru
      _
    // Predicated region
    $region50: #{vae_forward.1} parent=1 // pred_check
      _
    $region51: #{vae_forward.1} parent=1 // pred_check_branch
      %47 = sbr.rel (0) target = $region53
    $region52: #{vae_forward.1} parent=1 // pred_region
      _
    $region53: #{vae_forward.1} parent=1 // pred_fallthru
      _
    // Predicated region
    $region54: #{vae_forward.1} parent=1 // pred_check
      _
    $region55: #{vae_forward.1} parent=1 // pred_check_branch
      %49 = sbr.rel (0) target = $region57
    $region56: #{vae_forward.1} parent=1 // pred_region
      _
    $region57: #{vae_forward.1} parent=1 // pred_fallthru
      _
    %v51 = vld [vmem:[%s0] sm:$0xff]
    %v52 = vld [vmem:[%s0 + $0x8] sm:$0xff]
    %v53 = vld [vmem:[%s0 + $0x10] sm:$0xff]
    %v54 = vld [vmem:[%s0 + $0x18] sm:$0xff]
    %v55 = vld [vmem:[%s0 + $0x20] sm:$0xff]
    %v56 = vld [vmem:[%s0 + $0x28] sm:$0xff]
    %v57 = vld [vmem:[%s0 + $0x30] sm:$0xff]
    %v58 = vpack.c.bf16 %v51, %v51
    %v59 = vpack.c.bf16 %v52, %v52
    %v60 = vpack.c.bf16 %v53, %v53
    %v61 = vpack.c.bf16 %v54, %v54
    %v62 = vpack.c.bf16 %v55, %v55
    %v63 = vpack.c.bf16 %v56, %v56
    %v64 = vpack.c.bf16 %v57, %v57
    %v65 = vld [vmem:[%s2] sm:$0xff]
    %v66 = vld [vmem:[%s2 + $0x8] sm:$0xff]
    %v67 = vld [vmem:[%s2 + $0x10] sm:$0xff]
    %v68 = vld [vmem:[%s2 + $0x18] sm:$0xff]
    %v69 = vld [vmem:[%s2 + $0x20] sm:$0xff]
    %v70 = vld [vmem:[%s2 + $0x28] sm:$0xff]
    %v71 = vld [vmem:[%s2 + $0x30] sm:$0xff]
    %v72 = vld [vmem:[%s2 + $0x38] sm:$0xff]
    %v73 = vld [vmem:[%s2 + $0x40] sm:$0xff]
    %v74 = vld [vmem:[%s2 + $0x48] sm:$0xff]
    %v75 = vld [vmem:[%s2 + $0x50] sm:$0xff]
    %v76 = vld [vmem:[%s2 + $0x58] sm:$0xff]
    %v77 = vld [vmem:[%s2 + $0x60] sm:$0xff]
    %v78 = vld [vmem:[%s2 + $0x68] sm:$0xff]
    %v79 = vld [vmem:[%s2 + $0x70] sm:$0xff]
    %v80 = vld [vmem:[%s2 + $0x78] sm:$0xff]
    %v81 = vld [vmem:[%s2 + $0x80] sm:$0xff]
    %v82 = vld [vmem:[%s2 + $0x88] sm:$0xff]
    %v83 = vld [vmem:[%s2 + $0x90] sm:$0xff]
    %v84 = vld [vmem:[%s2 + $0x98] sm:$0xff]
    %v85 = vld [vmem:[%s2 + $0xa0] sm:$0xff]
    %v86 = vld [vmem:[%s2 + $0xa8] sm:$0xff]
    %v87 = vld [vmem:[%s2 + $0xb0] sm:$0xff]
    %v88 = vld [vmem:[%s2 + $0xb8] sm:$0xff]
    %v89 = vld [vmem:[%s2 + $0xc0] sm:$0xff]
    %v90 = vld [vmem:[%s2 + $0xc8] sm:$0xff]
    %v91 = vld [vmem:[%s2 + $0xd0] sm:$0xff]
    %v92 = vld [vmem:[%s2 + $0xd8] sm:$0xff]
    %v93 = vld [vmem:[%s2 + $0xe0] sm:$0xff]
    %v94 = vld [vmem:[%s2 + $0xe8] sm:$0xff]
    %v95 = vld [vmem:[%s2 + $0xf0] sm:$0xff]
    %v96 = vld [vmem:[%s2 + $0xf8] sm:$0xff]
    %v97 = vld [vmem:[%s2 + $0x100] sm:$0xff]
    %v98 = vld [vmem:[%s2 + $0x108] sm:$0xff]
    %v99 = vld [vmem:[%s2 + $0x110] sm:$0xff]
    %v100 = vld [vmem:[%s2 + $0x118] sm:$0xff]
    %v101 = vld [vmem:[%s2 + $0x120] sm:$0xff]
    %v102 = vld [vmem:[%s2 + $0x128] sm:$0xff]
    %v103 = vld [vmem:[%s2 + $0x130] sm:$0xff]
    %v104 = vld [vmem:[%s2 + $0x138] sm:$0xff]
    %v105 = vld [vmem:[%s2 + $0x140] sm:$0xff]
    %v106 = vld [vmem:[%s2 + $0x148] sm:$0xff]
    %v107 = vld [vmem:[%s2 + $0x150] sm:$0xff]
    %v108 = vld [vmem:[%s2 + $0x158] sm:$0xff]
    %v109 = vld [vmem:[%s2 + $0x160] sm:$0xff]
    %v110 = vld [vmem:[%s2 + $0x168] sm:$0xff]
    %v111 = vld [vmem:[%s2 + $0x170] sm:$0xff]
    %v112 = vld [vmem:[%s2 + $0x178] sm:$0xff]
    %v113 = vld [vmem:[%s2 + $0x180] sm:$0xff]
    %v114 = vld [vmem:[%s2 + $0x188] sm:$0xff]
    %v115 = vld [vmem:[%s2 + $0x190] sm:$0xff]
    %v116 = vld [vmem:[%s2 + $0x198] sm:$0xff]
    %v117 = vld [vmem:[%s2 + $0x1a0] sm:$0xff]
    %v118 = vld [vmem:[%s2 + $0x1a8] sm:$0xff]
    %v119 = vld [vmem:[%s2 + $0x1b0] sm:$0xff]
    %v120 = vld [vmem:[%s2 + $0x1b8] sm:$0xff]
    %v121 = vld [vmem:[%s2 + $0x1c0] sm:$0xff]
    %v122 = vld [vmem:[%s2 + $0x1c8] sm:$0xff]
    %v123 = vld [vmem:[%s2 + $0x1d0] sm:$0xff]
    %v124 = vld [vmem:[%s2 + $0x1d8] sm:$0xff]
    %v125 = vld [vmem:[%s2 + $0x1e0] sm:$0xff]
    %v126 = vld [vmem:[%s2 + $0x1e8] sm:$0xff]
    %v127 = vld [vmem:[%s2 + $0x1f0] sm:$0xff]
    %v128 = vld [vmem:[%s2 + $0x1f8] sm:$0xff]
    %v129 = vld [vmem:[%s2 + $0x200] sm:$0xff]
    %v130 = vld [vmem:[%s2 + $0x208] sm:$0xff]
    %v131 = vld [vmem:[%s2 + $0x210] sm:$0xff]
    %v132 = vld [vmem:[%s2 + $0x218] sm:$0xff]
    %v133 = vld [vmem:[%s2 + $0x220] sm:$0xff]
    %v134 = vld [vmem:[%s2 + $0x228] sm:$0xff]
    %v135 = vld [vmem:[%s2 + $0x230] sm:$0xff]
    %v136 = vld [vmem:[%s2 + $0x238] sm:$0xff]
    %v137 = vld [vmem:[%s2 + $0x240] sm:$0xff]
    %v138 = vld [vmem:[%s2 + $0x248] sm:$0xff]
    %v139 = vld [vmem:[%s2 + $0x250] sm:$0xff]
    %v140 = vld [vmem:[%s2 + $0x258] sm:$0xff]
    %v141 = vld [vmem:[%s2 + $0x260] sm:$0xff]
    %v142 = vld [vmem:[%s2 + $0x268] sm:$0xff]
    %v143 = vld [vmem:[%s2 + $0x270] sm:$0xff]
    %v144 = vld [vmem:[%s2 + $0x278] sm:$0xff]
    %v145 = vld [vmem:[%s2 + $0x280] sm:$0xff]
    %v146 = vld [vmem:[%s2 + $0x288] sm:$0xff]
    %v147 = vld [vmem:[%s2 + $0x290] sm:$0xff]
    %v148 = vld [vmem:[%s2 + $0x298] sm:$0xff]
    %v149 = vld [vmem:[%s2 + $0x2a0] sm:$0xff]
    %v150 = vld [vmem:[%s2 + $0x2a8] sm:$0xff]
    %v151 = vld [vmem:[%s2 + $0x2b0] sm:$0xff]
    %v152 = vld [vmem:[%s2 + $0x2b8] sm:$0xff]
    %v153 = vld [vmem:[%s2 + $0x2c0] sm:$0xff]
    %v154 = vld [vmem:[%s2 + $0x2c8] sm:$0xff]
    %v155 = vld [vmem:[%s2 + $0x2d0] sm:$0xff]
    %v156 = vld [vmem:[%s2 + $0x2d8] sm:$0xff]
    %v157 = vld [vmem:[%s2 + $0x2e0] sm:$0xff]
    %v158 = vld [vmem:[%s2 + $0x2e8] sm:$0xff]
    %v159 = vld [vmem:[%s2 + $0x2f0] sm:$0xff]
    %v160 = vld [vmem:[%s2 + $0x2f8] sm:$0xff]
    %v161 = vld [vmem:[%s2 + $0x300] sm:$0xff]
    %v162 = vld [vmem:[%s2 + $0x308] sm:$0xff]
    %v163 = vld [vmem:[%s2 + $0x310] sm:$0xff]
    %v164 = vld [vmem:[%s2 + $0x318] sm:$0xff]
    %v165 = vld [vmem:[%s2 + $0x320] sm:$0xff]
    %v166 = vld [vmem:[%s2 + $0x328] sm:$0xff]
    %v167 = vld [vmem:[%s2 + $0x330] sm:$0xff]
    %v168 = vld [vmem:[%s2 + $0x338] sm:$0xff]
    %v169 = vld [vmem:[%s2 + $0x340] sm:$0xff]
    %v170 = vld [vmem:[%s2 + $0x348] sm:$0xff]
    %v171 = vld [vmem:[%s2 + $0x350] sm:$0xff]
    %v172 = vld [vmem:[%s2 + $0x358] sm:$0xff]
    %v173 = vld [vmem:[%s2 + $0x360] sm:$0xff]
    %v174 = vld [vmem:[%s2 + $0x368] sm:$0xff]
    %v175 = vld [vmem:[%s2 + $0x370] sm:$0xff]
    %v176 = vld [vmem:[%s2 + $0x378] sm:$0xff]
    %v177 = vld [vmem:[%s2 + $0x380] sm:$0xff]
    %v178 = vld [vmem:[%s2 + $0x388] sm:$0xff]
    %v179 = vld [vmem:[%s2 + $0x390] sm:$0xff]
    %v180 = vld [vmem:[%s2 + $0x398] sm:$0xff]
    %v181 = vld [vmem:[%s2 + $0x3a0] sm:$0xff]
    %v182 = vld [vmem:[%s2 + $0x3a8] sm:$0xff]
    %v183 = vld [vmem:[%s2 + $0x3b0] sm:$0xff]
    %v184 = vld [vmem:[%s2 + $0x3b8] sm:$0xff]
    %v185 = vld [vmem:[%s2 + $0x3c0] sm:$0xff]
    %v186 = vld [vmem:[%s2 + $0x3c8] sm:$0xff]
    %v187 = vld [vmem:[%s2 + $0x3d0] sm:$0xff]
    %v188 = vld [vmem:[%s2 + $0x3d8] sm:$0xff]
    %v189 = vld [vmem:[%s2 + $0x3e0] sm:$0xff]
    %v190 = vld [vmem:[%s2 + $0x3e8] sm:$0xff]
    %v191 = vld [vmem:[%s2 + $0x3f0] sm:$0xff]
    %v192 = vld [vmem:[%s2 + $0x3f8] sm:$0xff]
    %v193 = vld [vmem:[%s2 + $0x400] sm:$0xff]
    %v194 = vld [vmem:[%s2 + $0x408] sm:$0xff]
    %v195 = vld [vmem:[%s2 + $0x410] sm:$0xff]
    %v196 = vld [vmem:[%s2 + $0x418] sm:$0xff]
    %v197 = vld [vmem:[%s2 + $0x420] sm:$0xff]
    %v198 = vld [vmem:[%s2 + $0x428] sm:$0xff]
    %v199 = vld [vmem:[%s2 + $0x430] sm:$0xff]
    %v200 = vld [vmem:[%s2 + $0x438] sm:$0xff]
    %v201 = vld [vmem:[%s2 + $0x440] sm:$0xff]
    %v202 = vld [vmem:[%s2 + $0x448] sm:$0xff]
    %v203 = vld [vmem:[%s2 + $0x450] sm:$0xff]
    %v204 = vld [vmem:[%s2 + $0x458] sm:$0xff]
    %v205 = vld [vmem:[%s2 + $0x460] sm:$0xff]
    %v206 = vld [vmem:[%s2 + $0x468] sm:$0xff]
    %v207 = vld [vmem:[%s2 + $0x470] sm:$0xff]
    %v208 = vld [vmem:[%s2 + $0x478] sm:$0xff]
    %v209 = vld [vmem:[%s2 + $0x480] sm:$0xff]
    %v210 = vld [vmem:[%s2 + $0x488] sm:$0xff]
    %v211 = vld [vmem:[%s2 + $0x490] sm:$0xff]
    %v212 = vld [vmem:[%s2 + $0x498] sm:$0xff]
    %v213 = vld [vmem:[%s2 + $0x4a0] sm:$0xff]
    %v214 = vld [vmem:[%s2 + $0x4a8] sm:$0xff]
    %v215 = vld [vmem:[%s2 + $0x4b0] sm:$0xff]
    %v216 = vld [vmem:[%s2 + $0x4b8] sm:$0xff]
    %v217 = vld [vmem:[%s2 + $0x4c0] sm:$0xff]
    %v218 = vld [vmem:[%s2 + $0x4c8] sm:$0xff]
    %v219 = vld [vmem:[%s2 + $0x4d0] sm:$0xff]
    %v220 = vld [vmem:[%s2 + $0x4d8] sm:$0xff]
    %v221 = vld [vmem:[%s2 + $0x4e0] sm:$0xff]
    %v222 = vld [vmem:[%s2 + $0x4e8] sm:$0xff]
    %v223 = vld [vmem:[%s2 + $0x4f0] sm:$0xff]
    %v224 = vld [vmem:[%s2 + $0x4f8] sm:$0xff]
    %v225 = vld [vmem:[%s2 + $0x500] sm:$0xff]
    %v226 = vld [vmem:[%s2 + $0x508] sm:$0xff]
    %v227 = vld [vmem:[%s2 + $0x510] sm:$0xff]
    %v228 = vld [vmem:[%s2 + $0x518] sm:$0xff]
    %v229 = vld [vmem:[%s2 + $0x520] sm:$0xff]
    %v230 = vld [vmem:[%s2 + $0x528] sm:$0xff]
    %v231 = vld [vmem:[%s2 + $0x530] sm:$0xff]
    %v232 = vld [vmem:[%s2 + $0x538] sm:$0xff]
    %v233 = vld [vmem:[%s2 + $0x540] sm:$0xff]
    %v234 = vld [vmem:[%s2 + $0x548] sm:$0xff]
    %v235 = vld [vmem:[%s2 + $0x550] sm:$0xff]
    %v236 = vld [vmem:[%s2 + $0x558] sm:$0xff]
    %v237 = vld [vmem:[%s2 + $0x560] sm:$0xff]
    %v238 = vld [vmem:[%s2 + $0x568] sm:$0xff]
    %v239 = vld [vmem:[%s2 + $0x570] sm:$0xff]
    %v240 = vld [vmem:[%s2 + $0x578] sm:$0xff]
    %v241 = vld [vmem:[%s2 + $0x580] sm:$0xff]
    %v242 = vld [vmem:[%s2 + $0x588] sm:$0xff]
    %v243 = vld [vmem:[%s2 + $0x590] sm:$0xff]
    %v244 = vld [vmem:[%s2 + $0x598] sm:$0xff]
    %v245 = vld [vmem:[%s2 + $0x5a0] sm:$0xff]
    %v246 = vld [vmem:[%s2 + $0x5a8] sm:$0xff]
    %v247 = vld [vmem:[%s2 + $0x5b0] sm:$0xff]
    %v248 = vld [vmem:[%s2 + $0x5b8] sm:$0xff]
    %v249 = vld [vmem:[%s2 + $0x5c0] sm:$0xff]
    %v250 = vld [vmem:[%s2 + $0x5c8] sm:$0xff]
    %v251 = vld [vmem:[%s2 + $0x5d0] sm:$0xff]
    %v252 = vld [vmem:[%s2 + $0x5d8] sm:$0xff]
    %v253 = vld [vmem:[%s2 + $0x5e0] sm:$0xff]
    %v254 = vld [vmem:[%s2 + $0x5e8] sm:$0xff]
    %v255 = vld [vmem:[%s2 + $0x5f0] sm:$0xff]
    %v256 = vld [vmem:[%s2 + $0x5f8] sm:$0xff]
    %v257 = vld [vmem:[%s2 + $0x600] sm:$0xff]
    %v258 = vld [vmem:[%s2 + $0x608] sm:$0xff]
    %v259 = vld [vmem:[%s2 + $0x610] sm:$0xff]
    %v260 = vld [vmem:[%s2 + $0x618] sm:$0xff]
    %v261 = vld [vmem:[%s3] sm:$0xf]
    %v263 = vlaneseq
    %v264 = vshrl.u32 %v263, 7
    %v265 = vsub.s32 0, %v264
    %v266 = vrot.slane %v261, %v265
    %v267 = vlaneseq
    %v268 = vshrl.u32 %v267, 7
    %v269 = vsub.s32 1, %v268
    %v270 = vrot.slane %v261, %v269
    %v271 = vlaneseq
    %v272 = vshrl.u32 %v271, 7
    %v273 = vsub.s32 2, %v272
    %v274 = vrot.slane %v261, %v273
    %v275 = vlaneseq
    %v276 = vshrl.u32 %v275, 7
    %v277 = vsub.s32 3, %v276
    %v278 = vrot.slane %v261, %v277
    %v479 = vunpack.c.l.b16 %v65
    %v480 = vunpack.c.h.b16 %v65
    %v481 = vunpack.c.l.b16 %v66
    %v482 = vunpack.c.h.b16 %v66
    %v483 = vunpack.c.l.b16 %v67
    %v484 = vunpack.c.h.b16 %v67
    %v485 = vunpack.c.l.b16 %v68
    %v486 = vunpack.c.h.b16 %v68
    %v487 = vunpack.c.l.b16 %v69
    %v488 = vunpack.c.h.b16 %v69
    %v489 = vunpack.c.l.b16 %v70
    %v490 = vunpack.c.h.b16 %v70
    %v491 = vunpack.c.l.b16 %v71
    %v492 = vunpack.c.h.b16 %v71
    %v493 = vunpack.c.l.b16 %v72
    %v494 = vunpack.c.h.b16 %v72
    %v495 = vunpack.c.l.b16 %v73
    %v496 = vunpack.c.h.b16 %v73
    %v497 = vunpack.c.l.b16 %v74
    %v498 = vunpack.c.h.b16 %v74
    %v499 = vunpack.c.l.b16 %v75
    %v500 = vunpack.c.h.b16 %v75
    %v501 = vunpack.c.l.b16 %v76
    %v502 = vunpack.c.h.b16 %v76
    %v503 = vunpack.c.l.b16 %v77
    %v504 = vunpack.c.h.b16 %v77
    %v505 = vunpack.c.l.b16 %v78
    %v506 = vunpack.c.h.b16 %v78
    %v507 = vunpack.c.l.b16 %v79
    %v508 = vunpack.c.h.b16 %v79
    %v509 = vunpack.c.l.b16 %v80
    %v510 = vunpack.c.h.b16 %v80
    %v511 = vunpack.c.l.b16 %v81
    %v512 = vunpack.c.h.b16 %v81
    %v513 = vunpack.c.l.b16 %v82
    %v514 = vunpack.c.h.b16 %v82
    %v515 = vunpack.c.l.b16 %v83
    %v516 = vunpack.c.h.b16 %v83
    %v517 = vunpack.c.l.b16 %v84
    %v518 = vunpack.c.h.b16 %v84
    %v519 = vunpack.c.l.b16 %v85
    %v520 = vunpack.c.h.b16 %v85
    %v521 = vunpack.c.l.b16 %v86
    %v522 = vunpack.c.h.b16 %v86
    %v523 = vunpack.c.l.b16 %v87
    %v524 = vunpack.c.h.b16 %v87
    %v525 = vunpack.c.l.b16 %v88
    %v526 = vunpack.c.h.b16 %v88
    %v527 = vunpack.c.l.b16 %v89
    %v528 = vunpack.c.h.b16 %v89
    %v529 = vunpack.c.l.b16 %v90
    %v530 = vunpack.c.h.b16 %v90
    %v531 = vunpack.c.l.b16 %v91
    %v532 = vunpack.c.h.b16 %v91
    %v533 = vunpack.c.l.b16 %v92
    %v534 = vunpack.c.h.b16 %v92
    %v535 = vunpack.c.l.b16 %v93
    %v536 = vunpack.c.h.b16 %v93
    %v537 = vunpack.c.l.b16 %v94
    %v538 = vunpack.c.h.b16 %v94
    %v539 = vunpack.c.l.b16 %v95
    %v540 = vunpack.c.h.b16 %v95
    %v541 = vunpack.c.l.b16 %v96
    %v542 = vunpack.c.h.b16 %v96
    %v543 = vunpack.c.l.b16 %v97
    %v544 = vunpack.c.h.b16 %v97
    %v545 = vunpack.c.l.b16 %v98
    %v546 = vunpack.c.h.b16 %v98
    %v547 = vunpack.c.l.b16 %v99
    %v548 = vunpack.c.h.b16 %v99
    %v549 = vunpack.c.l.b16 %v100
    %v550 = vunpack.c.h.b16 %v100
    %v551 = vunpack.c.l.b16 %v101
    %v552 = vunpack.c.h.b16 %v101
    %v553 = vunpack.c.l.b16 %v102
    %v554 = vunpack.c.h.b16 %v102
    %v555 = vunpack.c.l.b16 %v103
    %v556 = vunpack.c.h.b16 %v103
    %v557 = vunpack.c.l.b16 %v104
    %v558 = vunpack.c.h.b16 %v104
    %v559 = vunpack.c.l.b16 %v105
    %v560 = vunpack.c.h.b16 %v105
    %v561 = vunpack.c.l.b16 %v106
    %v562 = vunpack.c.h.b16 %v106
    %v563 = vunpack.c.l.b16 %v107
    %v564 = vunpack.c.h.b16 %v107
    %v565 = vunpack.c.l.b16 %v108
    %v566 = vunpack.c.h.b16 %v108
    %v567 = vunpack.c.l.b16 %v109
    %v568 = vunpack.c.h.b16 %v109
    %v569 = vunpack.c.l.b16 %v110
    %v570 = vunpack.c.h.b16 %v110
    %v571 = vunpack.c.l.b16 %v111
    %v572 = vunpack.c.h.b16 %v111
    %v573 = vunpack.c.l.b16 %v112
    %v574 = vunpack.c.h.b16 %v112
    %v575 = vunpack.c.l.b16 %v113
    %v576 = vunpack.c.h.b16 %v113
    %v577 = vunpack.c.l.b16 %v114
    %v578 = vunpack.c.h.b16 %v114
    %v579 = vunpack.c.l.b16 %v115
    %v580 = vunpack.c.h.b16 %v115
    %v581 = vunpack.c.l.b16 %v116
    %v582 = vunpack.c.h.b16 %v116
    %v583 = vunpack.c.l.b16 %v117
    %v584 = vunpack.c.h.b16 %v117
    %v585 = vunpack.c.l.b16 %v118
    %v586 = vunpack.c.h.b16 %v118
    %v587 = vunpack.c.l.b16 %v119
    %v588 = vunpack.c.h.b16 %v119
    %v589 = vunpack.c.l.b16 %v120
    %v590 = vunpack.c.h.b16 %v120
    %v591 = vunpack.c.l.b16 %v121
    %v592 = vunpack.c.h.b16 %v121
    %v593 = vunpack.c.l.b16 %v122
    %v594 = vunpack.c.h.b16 %v122
    %v595 = vunpack.c.l.b16 %v123
    %v596 = vunpack.c.h.b16 %v123
    %v597 = vunpack.c.l.b16 %v124
    %v598 = vunpack.c.h.b16 %v124
    %v599 = vunpack.c.l.b16 %v125
    %v600 = vunpack.c.h.b16 %v125
    %v601 = vunpack.c.l.b16 %v126
    %v602 = vunpack.c.h.b16 %v126
    %v603 = vunpack.c.l.b16 %v127
    %v604 = vunpack.c.h.b16 %v127
    %v605 = vunpack.c.l.b16 %v128
    %v606 = vunpack.c.h.b16 %v128
    %v607 = vunpack.c.l.b16 %v129
    %v608 = vunpack.c.h.b16 %v129
    %v609 = vunpack.c.l.b16 %v130
    %v610 = vunpack.c.h.b16 %v130
    %v611 = vunpack.c.l.b16 %v131
    %v612 = vunpack.c.h.b16 %v131
    %v613 = vunpack.c.l.b16 %v132
    %v614 = vunpack.c.h.b16 %v132
    %v615 = vunpack.c.l.b16 %v133
    %v616 = vunpack.c.h.b16 %v133
    %v617 = vunpack.c.l.b16 %v134
    %v618 = vunpack.c.h.b16 %v134
    %v619 = vunpack.c.l.b16 %v135
    %v620 = vunpack.c.h.b16 %v135
    %v621 = vunpack.c.l.b16 %v136
    %v622 = vunpack.c.h.b16 %v136
    %v623 = vunpack.c.l.b16 %v137
    %v624 = vunpack.c.h.b16 %v137
    %v625 = vunpack.c.l.b16 %v138
    %v626 = vunpack.c.h.b16 %v138
    %v627 = vunpack.c.l.b16 %v139
    %v628 = vunpack.c.h.b16 %v139
    %v629 = vunpack.c.l.b16 %v140
    %v630 = vunpack.c.h.b16 %v140
    %v631 = vunpack.c.l.b16 %v141
    %v632 = vunpack.c.h.b16 %v141
    %v633 = vunpack.c.l.b16 %v142
    %v634 = vunpack.c.h.b16 %v142
    %v635 = vunpack.c.l.b16 %v143
    %v636 = vunpack.c.h.b16 %v143
    %v637 = vunpack.c.l.b16 %v144
    %v638 = vunpack.c.h.b16 %v144
    %v639 = vunpack.c.l.b16 %v145
    %v640 = vunpack.c.h.b16 %v145
    %v641 = vunpack.c.l.b16 %v146
    %v642 = vunpack.c.h.b16 %v146
    %v643 = vunpack.c.l.b16 %v147
    %v644 = vunpack.c.h.b16 %v147
    %v645 = vunpack.c.l.b16 %v148
    %v646 = vunpack.c.h.b16 %v148
    %v647 = vunpack.c.l.b16 %v149
    %v648 = vunpack.c.h.b16 %v149
    %v649 = vunpack.c.l.b16 %v150
    %v650 = vunpack.c.h.b16 %v150
    %v651 = vunpack.c.l.b16 %v151
    %v652 = vunpack.c.h.b16 %v151
    %v653 = vunpack.c.l.b16 %v152
    %v654 = vunpack.c.h.b16 %v152
    %v655 = vunpack.c.l.b16 %v153
    %v656 = vunpack.c.h.b16 %v153
    %v657 = vunpack.c.l.b16 %v154
    %v658 = vunpack.c.h.b16 %v154
    %v659 = vunpack.c.l.b16 %v155
    %v660 = vunpack.c.h.b16 %v155
    %v661 = vunpack.c.l.b16 %v156
    %v662 = vunpack.c.h.b16 %v156
    %v663 = vunpack.c.l.b16 %v157
    %v664 = vunpack.c.h.b16 %v157
    %v665 = vunpack.c.l.b16 %v158
    %v666 = vunpack.c.h.b16 %v158
    %v667 = vunpack.c.l.b16 %v159
    %v668 = vunpack.c.h.b16 %v159
    %v669 = vunpack.c.l.b16 %v160
    %v670 = vunpack.c.h.b16 %v160
    %v671 = vunpack.c.l.b16 %v161
    %v672 = vunpack.c.h.b16 %v161
    %v673 = vunpack.c.l.b16 %v162
    %v674 = vunpack.c.h.b16 %v162
    %v675 = vunpack.c.l.b16 %v163
    %v676 = vunpack.c.h.b16 %v163
    %v677 = vunpack.c.l.b16 %v164
    %v678 = vunpack.c.h.b16 %v164
    %v679 = vunpack.c.l.b16 %v165
    %v680 = vunpack.c.h.b16 %v165
    %v681 = vunpack.c.l.b16 %v166
    %v682 = vunpack.c.h.b16 %v166
    %v683 = vunpack.c.l.b16 %v167
    %v684 = vunpack.c.h.b16 %v167
    %v685 = vunpack.c.l.b16 %v168
    %v686 = vunpack.c.h.b16 %v168
    %v687 = vunpack.c.l.b16 %v169
    %v688 = vunpack.c.h.b16 %v169
    %v689 = vunpack.c.l.b16 %v170
    %v690 = vunpack.c.h.b16 %v170
    %v691 = vunpack.c.l.b16 %v171
    %v692 = vunpack.c.h.b16 %v171
    %v693 = vunpack.c.l.b16 %v172
    %v694 = vunpack.c.h.b16 %v172
    %v695 = vunpack.c.l.b16 %v173
    %v696 = vunpack.c.h.b16 %v173
    %v697 = vunpack.c.l.b16 %v174
    %v698 = vunpack.c.h.b16 %v174
    %v699 = vunpack.c.l.b16 %v175
    %v700 = vunpack.c.h.b16 %v175
    %v701 = vunpack.c.l.b16 %v176
    %v702 = vunpack.c.h.b16 %v176
    %v703 = vunpack.c.l.b16 %v177
    %v704 = vunpack.c.h.b16 %v177
    %v705 = vunpack.c.l.b16 %v178
    %v706 = vunpack.c.h.b16 %v178
    %v707 = vunpack.c.l.b16 %v179
    %v708 = vunpack.c.h.b16 %v179
    %v709 = vunpack.c.l.b16 %v180
    %v710 = vunpack.c.h.b16 %v180
    %v711 = vunpack.c.l.b16 %v181
    %v712 = vunpack.c.h.b16 %v181
    %v713 = vunpack.c.l.b16 %v182
    %v714 = vunpack.c.h.b16 %v182
    %v715 = vunpack.c.l.b16 %v183
    %v716 = vunpack.c.h.b16 %v183
    %v717 = vunpack.c.l.b16 %v184
    %v718 = vunpack.c.h.b16 %v184
    %v719 = vunpack.c.l.b16 %v185
    %v720 = vunpack.c.h.b16 %v185
    %v721 = vunpack.c.l.b16 %v186
    %v722 = vunpack.c.h.b16 %v186
    %v723 = vunpack.c.l.b16 %v187
    %v724 = vunpack.c.h.b16 %v187
    %v725 = vunpack.c.l.b16 %v188
    %v726 = vunpack.c.h.b16 %v188
    %v727 = vunpack.c.l.b16 %v189
    %v728 = vunpack.c.h.b16 %v189
    %v729 = vunpack.c.l.b16 %v190
    %v730 = vunpack.c.h.b16 %v190
    %v731 = vunpack.c.l.b16 %v191
    %v732 = vunpack.c.h.b16 %v191
    %v733 = vunpack.c.l.b16 %v192
    %v734 = vunpack.c.h.b16 %v192
    %v735 = vunpack.c.l.b16 %v193
    %v736 = vunpack.c.h.b16 %v193
    %v737 = vunpack.c.l.b16 %v194
    %v738 = vunpack.c.h.b16 %v194
    %v739 = vunpack.c.l.b16 %v195
    %v740 = vunpack.c.h.b16 %v195
    %v741 = vunpack.c.l.b16 %v196
    %v742 = vunpack.c.h.b16 %v196
    %v743 = vunpack.c.l.b16 %v197
    %v744 = vunpack.c.h.b16 %v197
    %v745 = vunpack.c.l.b16 %v198
    %v746 = vunpack.c.h.b16 %v198
    %v747 = vunpack.c.l.b16 %v199
    %v748 = vunpack.c.h.b16 %v199
    %v749 = vunpack.c.l.b16 %v200
    %v750 = vunpack.c.h.b16 %v200
    %v751 = vunpack.c.l.b16 %v201
    %v752 = vunpack.c.h.b16 %v201
    %v753 = vunpack.c.l.b16 %v202
    %v754 = vunpack.c.h.b16 %v202
    %v755 = vunpack.c.l.b16 %v203
    %v756 = vunpack.c.h.b16 %v203
    %v757 = vunpack.c.l.b16 %v204
    %v758 = vunpack.c.h.b16 %v204
    %v759 = vunpack.c.l.b16 %v205
    %v760 = vunpack.c.h.b16 %v205
    %v761 = vunpack.c.l.b16 %v206
    %v762 = vunpack.c.h.b16 %v206
    %v763 = vunpack.c.l.b16 %v207
    %v764 = vunpack.c.h.b16 %v207
    %v765 = vunpack.c.l.b16 %v208
    %v766 = vunpack.c.h.b16 %v208
    %v767 = vunpack.c.l.b16 %v209
    %v768 = vunpack.c.h.b16 %v209
    %v769 = vunpack.c.l.b16 %v210
    %v770 = vunpack.c.h.b16 %v210
    %v771 = vunpack.c.l.b16 %v211
    %v772 = vunpack.c.h.b16 %v211
    %v773 = vunpack.c.l.b16 %v212
    %v774 = vunpack.c.h.b16 %v212
    %v775 = vunpack.c.l.b16 %v213
    %v776 = vunpack.c.h.b16 %v213
    %v777 = vunpack.c.l.b16 %v214
    %v778 = vunpack.c.h.b16 %v214
    %v779 = vunpack.c.l.b16 %v215
    %v780 = vunpack.c.h.b16 %v215
    %v781 = vunpack.c.l.b16 %v216
    %v782 = vunpack.c.h.b16 %v216
    %v783 = vunpack.c.l.b16 %v217
    %v784 = vunpack.c.h.b16 %v217
    %v785 = vunpack.c.l.b16 %v218
    %v786 = vunpack.c.h.b16 %v218
    %v787 = vunpack.c.l.b16 %v219
    %v788 = vunpack.c.h.b16 %v219
    %v789 = vunpack.c.l.b16 %v220
    %v790 = vunpack.c.h.b16 %v220
    %v791 = vunpack.c.l.b16 %v221
    %v792 = vunpack.c.h.b16 %v221
    %v793 = vunpack.c.l.b16 %v222
    %v794 = vunpack.c.h.b16 %v222
    %v795 = vunpack.c.l.b16 %v223
    %v796 = vunpack.c.h.b16 %v223
    %v797 = vunpack.c.l.b16 %v224
    %v798 = vunpack.c.h.b16 %v224
    %v799 = vunpack.c.l.b16 %v225
    %v800 = vunpack.c.h.b16 %v225
    %v801 = vunpack.c.l.b16 %v226
    %v802 = vunpack.c.h.b16 %v226
    %v803 = vunpack.c.l.b16 %v227
    %v804 = vunpack.c.h.b16 %v227
    %v805 = vunpack.c.l.b16 %v228
    %v806 = vunpack.c.h.b16 %v228
    %v807 = vunpack.c.l.b16 %v229
    %v808 = vunpack.c.h.b16 %v229
    %v809 = vunpack.c.l.b16 %v230
    %v810 = vunpack.c.h.b16 %v230
    %v811 = vunpack.c.l.b16 %v231
    %v812 = vunpack.c.h.b16 %v231
    %v813 = vunpack.c.l.b16 %v232
    %v814 = vunpack.c.h.b16 %v232
    %v815 = vunpack.c.l.b16 %v233
    %v816 = vunpack.c.h.b16 %v233
    %v817 = vunpack.c.l.b16 %v234
    %v818 = vunpack.c.h.b16 %v234
    %v819 = vunpack.c.l.b16 %v235
    %v820 = vunpack.c.h.b16 %v235
    %v821 = vunpack.c.l.b16 %v236
    %v822 = vunpack.c.h.b16 %v236
    %v823 = vunpack.c.l.b16 %v237
    %v824 = vunpack.c.h.b16 %v237
    %v825 = vunpack.c.l.b16 %v238
    %v826 = vunpack.c.h.b16 %v238
    %v827 = vunpack.c.l.b16 %v239
    %v828 = vunpack.c.h.b16 %v239
    %v829 = vunpack.c.l.b16 %v240
    %v830 = vunpack.c.h.b16 %v240
    %v831 = vunpack.c.l.b16 %v241
    %v832 = vunpack.c.h.b16 %v241
    %v833 = vunpack.c.l.b16 %v242
    %v834 = vunpack.c.h.b16 %v242
    %v835 = vunpack.c.l.b16 %v243
    %v836 = vunpack.c.h.b16 %v243
    %v837 = vunpack.c.l.b16 %v244
    %v838 = vunpack.c.h.b16 %v244
    %v839 = vunpack.c.l.b16 %v245
    %v840 = vunpack.c.h.b16 %v245
    %v841 = vunpack.c.l.b16 %v246
    %v842 = vunpack.c.h.b16 %v246
    %v843 = vunpack.c.l.b16 %v247
    %v844 = vunpack.c.h.b16 %v247
    %v845 = vunpack.c.l.b16 %v248
    %v846 = vunpack.c.h.b16 %v248
    %v847 = vunpack.c.l.b16 %v249
    %v848 = vunpack.c.h.b16 %v249
    %v849 = vunpack.c.l.b16 %v250
    %v850 = vunpack.c.h.b16 %v250
    %v851 = vunpack.c.l.b16 %v251
    %v852 = vunpack.c.h.b16 %v251
    %v853 = vunpack.c.l.b16 %v252
    %v854 = vunpack.c.h.b16 %v252
    %v855 = vunpack.c.l.b16 %v253
    %v856 = vunpack.c.h.b16 %v253
    %v857 = vunpack.c.l.b16 %v254
    %v858 = vunpack.c.h.b16 %v254
    %v859 = vunpack.c.l.b16 %v255
    %v860 = vunpack.c.h.b16 %v255
    %v861 = vunpack.c.l.b16 %v256
    %v862 = vunpack.c.h.b16 %v256
    %v863 = vunpack.c.l.b16 %v257
    %v864 = vunpack.c.h.b16 %v257
    %v865 = vunpack.c.l.b16 %v258
    %v866 = vunpack.c.h.b16 %v258
    %v867 = vunpack.c.l.b16 %v259
    %v868 = vunpack.c.h.b16 %v259
    %v869 = vunpack.c.l.b16 %v260
    %v870 = vunpack.c.h.b16 %v260
    %v871 = vpack.c.b16 %v483, %v479
    %v872 = vpack.c.b16 %v484, %v480
    %v873 = vpack.c.b16 %v485, %v481
    %v874 = vpack.c.b16 %v486, %v482
    %v875 = vpack.c.b16 %v491, %v487
    %v876 = vpack.c.b16 %v492, %v488
    %v877 = vpack.c.b16 %v493, %v489
    %v878 = vpack.c.b16 %v494, %v490
    %v879 = vpack.c.b16 %v499, %v495
    %v880 = vpack.c.b16 %v500, %v496
    %v881 = vpack.c.b16 %v501, %v497
    %v882 = vpack.c.b16 %v502, %v498
    %v883 = vpack.c.b16 %v507, %v503
    %v884 = vpack.c.b16 %v508, %v504
    %v885 = vpack.c.b16 %v509, %v505
    %v886 = vpack.c.b16 %v510, %v506
    %v887 = vpack.c.b16 %v515, %v511
    %v888 = vpack.c.b16 %v516, %v512
    %v889 = vpack.c.b16 %v517, %v513
    %v890 = vpack.c.b16 %v518, %v514
    %v891 = vpack.c.b16 %v523, %v519
    %v892 = vpack.c.b16 %v524, %v520
    %v893 = vpack.c.b16 %v525, %v521
    %v894 = vpack.c.b16 %v526, %v522
    %v895 = vpack.c.b16 %v531, %v527
    %v896 = vpack.c.b16 %v532, %v528
    %v897 = vpack.c.b16 %v533, %v529
    %v898 = vpack.c.b16 %v534, %v530
    %v899 = vpack.c.b16 %v539, %v535
    %v900 = vpack.c.b16 %v540, %v536
    %v901 = vpack.c.b16 %v541, %v537
    %v902 = vpack.c.b16 %v542, %v538
    %v903 = vpack.c.b16 %v547, %v543
    %v904 = vpack.c.b16 %v548, %v544
    %v905 = vpack.c.b16 %v549, %v545
    %v906 = vpack.c.b16 %v550, %v546
    %v907 = vpack.c.b16 %v555, %v551
    %v908 = vpack.c.b16 %v556, %v552
    %v909 = vpack.c.b16 %v557, %v553
    %v910 = vpack.c.b16 %v558, %v554
    %v911 = vpack.c.b16 %v563, %v559
    %v912 = vpack.c.b16 %v564, %v560
    %v913 = vpack.c.b16 %v565, %v561
    %v914 = vpack.c.b16 %v566, %v562
    %v915 = vpack.c.b16 %v571, %v567
    %v916 = vpack.c.b16 %v572, %v568
    %v917 = vpack.c.b16 %v573, %v569
    %v918 = vpack.c.b16 %v574, %v570
    %v919 = vpack.c.b16 %v579, %v575
    %v920 = vpack.c.b16 %v580, %v576
    %v921 = vpack.c.b16 %v581, %v577
    %v922 = vpack.c.b16 %v582, %v578
    %v923 = vpack.c.b16 %v587, %v583
    %v924 = vpack.c.b16 %v588, %v584
    %v925 = vpack.c.b16 %v589, %v585
    %v926 = vpack.c.b16 %v590, %v586
    %v927 = vpack.c.b16 %v595, %v591
    %v928 = vpack.c.b16 %v596, %v592
    %v929 = vpack.c.b16 %v597, %v593
    %v930 = vpack.c.b16 %v598, %v594
    %v931 = vpack.c.b16 %v603, %v599
    %v932 = vpack.c.b16 %v604, %v600
    %v933 = vpack.c.b16 %v605, %v601
    %v934 = vpack.c.b16 %v606, %v602
    %v935 = vpack.c.b16 %v611, %v607
    %v936 = vpack.c.b16 %v612, %v608
    %v937 = vpack.c.b16 %v613, %v609
    %v938 = vpack.c.b16 %v614, %v610
    %v939 = vpack.c.b16 %v619, %v615
    %v940 = vpack.c.b16 %v620, %v616
    %v941 = vpack.c.b16 %v621, %v617
    %v942 = vpack.c.b16 %v622, %v618
    %v943 = vpack.c.b16 %v627, %v623
    %v944 = vpack.c.b16 %v628, %v624
    %v945 = vpack.c.b16 %v629, %v625
    %v946 = vpack.c.b16 %v630, %v626
    %v947 = vpack.c.b16 %v635, %v631
    %v948 = vpack.c.b16 %v636, %v632
    %v949 = vpack.c.b16 %v637, %v633
    %v950 = vpack.c.b16 %v638, %v634
    %v951 = vpack.c.b16 %v643, %v639
    %v952 = vpack.c.b16 %v644, %v640
    %v953 = vpack.c.b16 %v645, %v641
    %v954 = vpack.c.b16 %v646, %v642
    %v955 = vpack.c.b16 %v651, %v647
    %v956 = vpack.c.b16 %v652, %v648
    %v957 = vpack.c.b16 %v653, %v649
    %v958 = vpack.c.b16 %v654, %v650
    %v959 = vpack.c.b16 %v659, %v655
    %v960 = vpack.c.b16 %v660, %v656
    %v961 = vpack.c.b16 %v661, %v657
    %v962 = vpack.c.b16 %v662, %v658
    %v963 = vpack.c.b16 %v667, %v663
    %v964 = vpack.c.b16 %v668, %v664
    %v965 = vpack.c.b16 %v669, %v665
    %v966 = vpack.c.b16 %v670, %v666
    %v967 = vpack.c.b16 %v675, %v671
    %v968 = vpack.c.b16 %v676, %v672
    %v969 = vpack.c.b16 %v677, %v673
    %v970 = vpack.c.b16 %v678, %v674
    %v971 = vpack.c.b16 %v683, %v679
    %v972 = vpack.c.b16 %v684, %v680
    %v973 = vpack.c.b16 %v685, %v681
    %v974 = vpack.c.b16 %v686, %v682
    %v975 = vpack.c.b16 %v691, %v687
    %v976 = vpack.c.b16 %v692, %v688
    %v977 = vpack.c.b16 %v693, %v689
    %v978 = vpack.c.b16 %v694, %v690
    %v979 = vpack.c.b16 %v699, %v695
    %v980 = vpack.c.b16 %v700, %v696
    %v981 = vpack.c.b16 %v701, %v697
    %v982 = vpack.c.b16 %v702, %v698
    %v983 = vpack.c.b16 %v707, %v703
    %v984 = vpack.c.b16 %v708, %v704
    %v985 = vpack.c.b16 %v709, %v705
    %v986 = vpack.c.b16 %v710, %v706
    %v987 = vpack.c.b16 %v715, %v711
    %v988 = vpack.c.b16 %v716, %v712
    %v989 = vpack.c.b16 %v717, %v713
    %v990 = vpack.c.b16 %v718, %v714
    %v991 = vpack.c.b16 %v723, %v719
    %v992 = vpack.c.b16 %v724, %v720
    %v993 = vpack.c.b16 %v725, %v721
    %v994 = vpack.c.b16 %v726, %v722
    %v995 = vpack.c.b16 %v731, %v727
    %v996 = vpack.c.b16 %v732, %v728
    %v997 = vpack.c.b16 %v733, %v729
    %v998 = vpack.c.b16 %v734, %v730
    %v999 = vpack.c.b16 %v739, %v735
    %v1000 = vpack.c.b16 %v740, %v736
    %v1001 = vpack.c.b16 %v741, %v737
    %v1002 = vpack.c.b16 %v742, %v738
    %v1003 = vpack.c.b16 %v747, %v743
    %v1004 = vpack.c.b16 %v748, %v744
    %v1005 = vpack.c.b16 %v749, %v745
    %v1006 = vpack.c.b16 %v750, %v746
    %v1007 = vpack.c.b16 %v755, %v751
    %v1008 = vpack.c.b16 %v756, %v752
    %v1009 = vpack.c.b16 %v757, %v753
    %v1010 = vpack.c.b16 %v758, %v754
    %v1011 = vpack.c.b16 %v763, %v759
    %v1012 = vpack.c.b16 %v764, %v760
    %v1013 = vpack.c.b16 %v765, %v761
    %v1014 = vpack.c.b16 %v766, %v762
    %v1015 = vpack.c.b16 %v771, %v767
    %v1016 = vpack.c.b16 %v772, %v768
    %v1017 = vpack.c.b16 %v773, %v769
    %v1018 = vpack.c.b16 %v774, %v770
    %v1019 = vpack.c.b16 %v779, %v775
    %v1020 = vpack.c.b16 %v780, %v776
    %v1021 = vpack.c.b16 %v781, %v777
    %v1022 = vpack.c.b16 %v782, %v778
    %v1023 = vpack.c.b16 %v787, %v783
    %v1024 = vpack.c.b16 %v788, %v784
    %v1025 = vpack.c.b16 %v789, %v785
    %v1026 = vpack.c.b16 %v790, %v786
    %v1027 = vpack.c.b16 %v795, %v791
    %v1028 = vpack.c.b16 %v796, %v792
    %v1029 = vpack.c.b16 %v797, %v793
    %v1030 = vpack.c.b16 %v798, %v794
    %v1031 = vpack.c.b16 %v803, %v799
    %v1032 = vpack.c.b16 %v804, %v800
    %v1033 = vpack.c.b16 %v805, %v801
    %v1034 = vpack.c.b16 %v806, %v802
    %v1035 = vpack.c.b16 %v811, %v807
    %v1036 = vpack.c.b16 %v812, %v808
    %v1037 = vpack.c.b16 %v813, %v809
    %v1038 = vpack.c.b16 %v814, %v810
    %v1039 = vpack.c.b16 %v819, %v815
    %v1040 = vpack.c.b16 %v820, %v816
    %v1041 = vpack.c.b16 %v821, %v817
    %v1042 = vpack.c.b16 %v822, %v818
    %v1043 = vpack.c.b16 %v827, %v823
    %v1044 = vpack.c.b16 %v828, %v824
    %v1045 = vpack.c.b16 %v829, %v825
    %v1046 = vpack.c.b16 %v830, %v826
    %v1047 = vpack.c.b16 %v835, %v831
    %v1048 = vpack.c.b16 %v836, %v832
    %v1049 = vpack.c.b16 %v837, %v833
    %v1050 = vpack.c.b16 %v838, %v834
    %v1051 = vpack.c.b16 %v843, %v839
    %v1052 = vpack.c.b16 %v844, %v840
    %v1053 = vpack.c.b16 %v845, %v841
    %v1054 = vpack.c.b16 %v846, %v842
    %v1055 = vpack.c.b16 %v851, %v847
    %v1056 = vpack.c.b16 %v852, %v848
    %v1057 = vpack.c.b16 %v853, %v849
    %v1058 = vpack.c.b16 %v854, %v850
    %v1059 = vpack.c.b16 %v859, %v855
    %v1060 = vpack.c.b16 %v860, %v856
    %v1061 = vpack.c.b16 %v861, %v857
    %v1062 = vpack.c.b16 %v862, %v858
    %v1063 = vpack.c.b16 %v867, %v863
    %v1064 = vpack.c.b16 %v868, %v864
    %v1065 = vpack.c.b16 %v869, %v865
    %v1066 = vpack.c.b16 %v870, %v866
    %vm1263 = vcmask 130048
    %v1265 = vsel %vm1263, %v64, 0
    %1267 = vmatprep.subr.bf16.mxu0 %v872
    %1268 = vmatpush1.bf16.msra.mxu0 %v871
    %1269 = vmatprep.subr.bf16.mxu0 %v876
    %1270 = vmatpush1.bf16.msra.mxu0 %v875
    %1271 = vmatprep.subr.bf16.mxu0 %v880
    %1272 = vmatpush1.bf16.msra.mxu0 %v879
    %1273 = vmatprep.subr.bf16.mxu0 %v884
    %1274 = vmatpush1.bf16.msra.mxu0 %v883
    %1275 = vmatprep.subr.bf16.mxu0 %v888
    %1276 = vmatpush1.bf16.msra.mxu0 %v887
    %1277 = vmatprep.subr.bf16.mxu0 %v892
    %1278 = vmatpush1.bf16.msra.mxu0 %v891
    %1279 = vmatprep.subr.bf16.mxu0 %v896
    %1280 = vmatpush1.bf16.msra.mxu0 %v895
    %1281 = vmatprep.subr.bf16.mxu0 %v900
    %1282 = vmatpush1.bf16.msra.mxu0 %v899
    %1283 = vmatprep.subr.bf16.mxu0 %v904
    %1284 = vmatpush1.bf16.msra.mxu0 %v903
    %1285 = vmatprep.subr.bf16.mxu0 %v908
    %1286 = vmatpush1.bf16.msra.mxu0 %v907
    %1287 = vmatprep.subr.bf16.mxu0 %v912
    %1288 = vmatpush1.bf16.msra.mxu0 %v911
    %1289 = vmatprep.subr.bf16.mxu0 %v916
    %1290 = vmatpush1.bf16.msra.mxu0 %v915
    %1291 = vmatprep.subr.bf16.mxu0 %v920
    %1292 = vmatpush1.bf16.msra.mxu0 %v919
    %1293 = vmatprep.subr.bf16.mxu0 %v924
    %1294 = vmatpush1.bf16.msra.mxu0 %v923
    %1295 = vmatprep.subr.bf16.mxu0 %v928
    %1296 = vmatpush1.bf16.msra.mxu0 %v927
    %1297 = vmatprep.subr.bf16.mxu0 %v932
    %1298 = vmatpush1.bf16.msra.mxu0 %v931
    %1299 = vmatprep.mubr.bf16.mxu0 %v59
    %1300 = vmatmul.mubr.bf16.gmra.mrb[0].mxu0 %v58
    %v1301 = vpop.f32.mrb[0].mxu0
    %v1302 = vadd.f32 %v266, %v1301
    %v1303 = vpop.f32.mrb[0].mxu0
    %v1304 = vadd.f32 %v270, %v1303
    %v1305 = vpop.f32.mrb[0].mxu0
    %v1306 = vpop.f32.mrb[0].mxu0
    %1307 = vdwg.mxu0
    %1308 = vmatprep.subr.bf16.mxu0 %v936
    %1309 = vmatpush1.bf16.msra.mxu0 %v935
    %1310 = vmatprep.subr.bf16.mxu0 %v940
    %1311 = vmatpush1.bf16.msra.mxu0 %v939
    %1312 = vmatprep.subr.bf16.mxu0 %v944
    %1313 = vmatpush1.bf16.msra.mxu0 %v943
    %1314 = vmatprep.subr.bf16.mxu0 %v948
    %1315 = vmatpush1.bf16.msra.mxu0 %v947
    %1316 = vmatprep.subr.bf16.mxu0 %v952
    %1317 = vmatpush1.bf16.msra.mxu0 %v951
    %1318 = vmatprep.subr.bf16.mxu0 %v956
    %1319 = vmatpush1.bf16.msra.mxu0 %v955
    %1320 = vmatprep.subr.bf16.mxu0 %v960
    %1321 = vmatpush1.bf16.msra.mxu0 %v959
    %1322 = vmatprep.subr.bf16.mxu0 %v964
    %1323 = vmatpush1.bf16.msra.mxu0 %v963
    %1324 = vmatprep.subr.bf16.mxu0 %v968
    %1325 = vmatpush1.bf16.msra.mxu0 %v967
    %1326 = vmatprep.subr.bf16.mxu0 %v972
    %1327 = vmatpush1.bf16.msra.mxu0 %v971
    %1328 = vmatprep.subr.bf16.mxu0 %v976
    %1329 = vmatpush1.bf16.msra.mxu0 %v975
    %1330 = vmatprep.subr.bf16.mxu0 %v980
    %1331 = vmatpush1.bf16.msra.mxu0 %v979
    %1332 = vmatprep.subr.bf16.mxu0 %v984
    %1333 = vmatpush1.bf16.msra.mxu0 %v983
    %1334 = vmatprep.subr.bf16.mxu0 %v988
    %1335 = vmatpush1.bf16.msra.mxu0 %v987
    %1336 = vmatprep.subr.bf16.mxu0 %v992
    %1337 = vmatpush1.bf16.msra.mxu0 %v991
    %1338 = vmatprep.subr.bf16.mxu0 %v996
    %1339 = vmatpush1.bf16.msra.mxu0 %v995
    %1340 = vmatprep.mubr.bf16.mxu0 %v61
    %1341 = vmatmul.mubr.bf16.gmra.mrb[0].mxu0 %v60
    %v1342 = vpop.f32.mrb[0].mxu0
    %v1343 = vadd.f32 %v1302, %v1342
    %v1344 = vpop.f32.mrb[0].mxu0
    %v1345 = vadd.f32 %v1304, %v1344
    %v1346 = vpop.f32.mrb[0].mxu0
    %v1347 = vpop.f32.mrb[0].mxu0
    %1348 = vdwg.mxu0
    %1349 = vmatprep.subr.bf16.mxu0 %v1000
    %1350 = vmatpush1.bf16.msra.mxu0 %v999
    %1351 = vmatprep.subr.bf16.mxu0 %v1004
    %1352 = vmatpush1.bf16.msra.mxu0 %v1003
    %1353 = vmatprep.subr.bf16.mxu0 %v1008
    %1354 = vmatpush1.bf16.msra.mxu0 %v1007
    %1355 = vmatprep.subr.bf16.mxu0 %v1012
    %1356 = vmatpush1.bf16.msra.mxu0 %v1011
    %1357 = vmatprep.subr.bf16.mxu0 %v1016
    %1358 = vmatpush1.bf16.msra.mxu0 %v1015
    %1359 = vmatprep.subr.bf16.mxu0 %v1020
    %1360 = vmatpush1.bf16.msra.mxu0 %v1019
    %1361 = vmatprep.subr.bf16.mxu0 %v1024
    %1362 = vmatpush1.bf16.msra.mxu0 %v1023
    %1363 = vmatprep.subr.bf16.mxu0 %v1028
    %1364 = vmatpush1.bf16.msra.mxu0 %v1027
    %1365 = vmatprep.subr.bf16.mxu0 %v1032
    %1366 = vmatpush1.bf16.msra.mxu0 %v1031
    %1367 = vmatprep.subr.bf16.mxu0 %v1036
    %1368 = vmatpush1.bf16.msra.mxu0 %v1035
    %1369 = vmatprep.subr.bf16.mxu0 %v1040
    %1370 = vmatpush1.bf16.msra.mxu0 %v1039
    %1371 = vmatprep.subr.bf16.mxu0 %v1044
    %1372 = vmatpush1.bf16.msra.mxu0 %v1043
    %1373 = vmatprep.subr.bf16.mxu0 %v1048
    %1374 = vmatpush1.bf16.msra.mxu0 %v1047
    %1375 = vmatprep.subr.bf16.mxu0 %v1052
    %1376 = vmatpush1.bf16.msra.mxu0 %v1051
    %1377 = vmatprep.subr.bf16.mxu0 %v1056
    %1378 = vmatpush1.bf16.msra.mxu0 %v1055
    %1379 = vmatprep.subr.bf16.mxu0 %v1060
    %1380 = vmatpush1.bf16.msra.mxu0 %v1059
    %1381 = vmatprep.mubr.bf16.mxu0 %v63
    %1382 = vmatmul.mubr.bf16.gmra.mrb[0].mxu0 %v62
    %v1383 = vpop.f32.mrb[0].mxu0
    %v1384 = vadd.f32 %v1343, %v1383
    %v1385 = vpop.f32.mrb[0].mxu0
    %v1386 = vadd.f32 %v1345, %v1385
    %v1387 = vpop.f32.mrb[0].mxu0
    %v1388 = vpop.f32.mrb[0].mxu0
    %1389 = vdwg.mxu0
    %1390 = vmatprep.subr.bf16.mxu0 %v1064
    %1391 = vmatpush1.bf16.msra.mxu0 %v1063
    %1392 = vmatprep.subr.bf16.mxu0 0
    %1393 = vmatpush1.bf16.msra.mxu0 0
    %1394 = vmatprep.subr.bf16.mxu0 0
    %1395 = vmatpush1.bf16.msra.mxu0 0
    %1396 = vmatprep.subr.bf16.mxu0 0
    %1397 = vmatpush1.bf16.msra.mxu0 0
    %1398 = vmatprep.subr.bf16.mxu0 0
    %1399 = vmatpush1.bf16.msra.mxu0 0
    %1400 = vmatprep.subr.bf16.mxu0 0
    %1401 = vmatpush1.bf16.msra.mxu0 0
    %1402 = vmatprep.subr.bf16.mxu0 0
    %1403 = vmatpush1.bf16.msra.mxu0 0
    %1404 = vmatprep.subr.bf16.mxu0 0
    %1405 = vmatpush1.bf16.msra.mxu0 0
    %1406 = vmatprep.subr.bf16.mxu0 0
    %1407 = vmatpush1.bf16.msra.mxu0 0
    %1408 = vmatprep.subr.bf16.mxu0 0
    %1409 = vmatpush1.bf16.msra.mxu0 0
    %1410 = vmatprep.subr.bf16.mxu0 0
    %1411 = vmatpush1.bf16.msra.mxu0 0
    %1412 = vmatprep.subr.bf16.mxu0 0
    %1413 = vmatpush1.bf16.msra.mxu0 0
    %1414 = vmatprep.subr.bf16.mxu0 0
    %1415 = vmatpush1.bf16.msra.mxu0 0
    %1416 = vmatprep.subr.bf16.mxu0 0
    %1417 = vmatpush1.bf16.msra.mxu0 0
    %1418 = vmatprep.subr.bf16.mxu0 0
    %1419 = vmatpush1.bf16.msra.mxu0 0
    %1420 = vmatprep.subr.bf16.mxu0 0
    %1421 = vmatpush1.bf16.msra.mxu0 0
    %1422 = vmatprep.mubr.bf16.mxu0 0
    %1423 = vmatmul.mubr.bf16.gmra.mrb[0].mxu0 %v1265
    %v1424 = vpop.f32.mrb[0].mxu0
    %v1425 = vadd.f32 %v1384, %v1424
    %v1426 = vpop.f32.mrb[0].mxu0
    %v1427 = vadd.f32 %v1386, %v1426
    %v1428 = vpop.f32.mrb[0].mxu0
    %v1429 = vpop.f32.mrb[0].mxu0
    %1430 = vdwg.mxu0
    %1431 = vmatprep.subr.bf16.mxu0 %v874
    %1432 = vmatpush1.bf16.msra.mxu0 %v873
    %1433 = vmatprep.subr.bf16.mxu0 %v878
    %1434 = vmatpush1.bf16.msra.mxu0 %v877
    %1435 = vmatprep.subr.bf16.mxu0 %v882
    %1436 = vmatpush1.bf16.msra.mxu0 %v881
    %1437 = vmatprep.subr.bf16.mxu0 %v886
    %1438 = vmatpush1.bf16.msra.mxu0 %v885
    %1439 = vmatprep.subr.bf16.mxu0 %v890
    %1440 = vmatpush1.bf16.msra.mxu0 %v889
    %1441 = vmatprep.subr.bf16.mxu0 %v894
    %1442 = vmatpush1.bf16.msra.mxu0 %v893
    %1443 = vmatprep.subr.bf16.mxu0 %v898
    %1444 = vmatpush1.bf16.msra.mxu0 %v897
    %1445 = vmatprep.subr.bf16.mxu0 %v902
    %1446 = vmatpush1.bf16.msra.mxu0 %v901
    %1447 = vmatprep.subr.bf16.mxu0 %v906
    %1448 = vmatpush1.bf16.msra.mxu0 %v905
    %1449 = vmatprep.subr.bf16.mxu0 %v910
    %1450 = vmatpush1.bf16.msra.mxu0 %v909
    %1451 = vmatprep.subr.bf16.mxu0 %v914
    %1452 = vmatpush1.bf16.msra.mxu0 %v913
    %1453 = vmatprep.subr.bf16.mxu0 %v918
    %1454 = vmatpush1.bf16.msra.mxu0 %v917
    %1455 = vmatprep.subr.bf16.mxu0 %v922
    %1456 = vmatpush1.bf16.msra.mxu0 %v921
    %1457 = vmatprep.subr.bf16.mxu0 %v926
    %1458 = vmatpush1.bf16.msra.mxu0 %v925
    %1459 = vmatprep.subr.bf16.mxu0 %v930
    %1460 = vmatpush1.bf16.msra.mxu0 %v929
    %1461 = vmatprep.subr.bf16.mxu0 %v934
    %1462 = vmatpush1.bf16.msra.mxu0 %v933
    %1463 = vmatprep.mubr.bf16.mxu0 %v59
    %1464 = vmatmul.mubr.bf16.gmra.mrb[0].mxu0 %v58
    %v1465 = vpop.f32.mrb[0].mxu0
    %v1466 = vadd.f32 %v274, %v1465
    %v1467 = vpop.f32.mrb[0].mxu0
    %v1468 = vadd.f32 %v278, %v1467
    %v1469 = vpop.f32.mrb[0].mxu0
    %v1470 = vpop.f32.mrb[0].mxu0
    %1471 = vdwg.mxu0
    %1472 = vmatprep.subr.bf16.mxu0 %v938
    %1473 = vmatpush1.bf16.msra.mxu0 %v937
    %1474 = vmatprep.subr.bf16.mxu0 %v942
    %1475 = vmatpush1.bf16.msra.mxu0 %v941
    %1476 = vmatprep.subr.bf16.mxu0 %v946
    %1477 = vmatpush1.bf16.msra.mxu0 %v945
    %1478 = vmatprep.subr.bf16.mxu0 %v950
    %1479 = vmatpush1.bf16.msra.mxu0 %v949
    %1480 = vmatprep.subr.bf16.mxu0 %v954
    %1481 = vmatpush1.bf16.msra.mxu0 %v953
    %1482 = vmatprep.subr.bf16.mxu0 %v958
    %1483 = vmatpush1.bf16.msra.mxu0 %v957
    %1484 = vmatprep.subr.bf16.mxu0 %v962
    %1485 = vmatpush1.bf16.msra.mxu0 %v961
    %1486 = vmatprep.subr.bf16.mxu0 %v966
    %1487 = vmatpush1.bf16.msra.mxu0 %v965
    %1488 = vmatprep.subr.bf16.mxu0 %v970
    %1489 = vmatpush1.bf16.msra.mxu0 %v969
    %1490 = vmatprep.subr.bf16.mxu0 %v974
    %1491 = vmatpush1.bf16.msra.mxu0 %v973
    %1492 = vmatprep.subr.bf16.mxu0 %v978
    %1493 = vmatpush1.bf16.msra.mxu0 %v977
    %1494 = vmatprep.subr.bf16.mxu0 %v982
    %1495 = vmatpush1.bf16.msra.mxu0 %v981
    %1496 = vmatprep.subr.bf16.mxu0 %v986
    %1497 = vmatpush1.bf16.msra.mxu0 %v985
    %1498 = vmatprep.subr.bf16.mxu0 %v990
    %1499 = vmatpush1.bf16.msra.mxu0 %v989
    %1500 = vmatprep.subr.bf16.mxu0 %v994
    %1501 = vmatpush1.bf16.msra.mxu0 %v993
    %1502 = vmatprep.subr.bf16.mxu0 %v998
    %1503 = vmatpush1.bf16.msra.mxu0 %v997
    %1504 = vmatprep.mubr.bf16.mxu0 %v61
    %1505 = vmatmul.mubr.bf16.gmra.mrb[0].mxu0 %v60
    %v1506 = vpop.f32.mrb[0].mxu0
    %v1507 = vadd.f32 %v1466, %v1506
    %v1508 = vpop.f32.mrb[0].mxu0
    %v1509 = vadd.f32 %v1468, %v1508
    %v1510 = vpop.f32.mrb[0].mxu0
    %v1511 = vpop.f32.mrb[0].mxu0
    %1512 = vdwg.mxu0
    %1513 = vmatprep.subr.bf16.mxu0 %v1002
    %1514 = vmatpush1.bf16.msra.mxu0 %v1001
    %1515 = vmatprep.subr.bf16.mxu0 %v1006
    %1516 = vmatpush1.bf16.msra.mxu0 %v1005
    %1517 = vmatprep.subr.bf16.mxu0 %v1010
    %1518 = vmatpush1.bf16.msra.mxu0 %v1009
    %1519 = vmatprep.subr.bf16.mxu0 %v1014
    %1520 = vmatpush1.bf16.msra.mxu0 %v1013
    %1521 = vmatprep.subr.bf16.mxu0 %v1018
    %1522 = vmatpush1.bf16.msra.mxu0 %v1017
    %1523 = vmatprep.subr.bf16.mxu0 %v1022
    %1524 = vmatpush1.bf16.msra.mxu0 %v1021
    %1525 = vmatprep.subr.bf16.mxu0 %v1026
    %1526 = vmatpush1.bf16.msra.mxu0 %v1025
    %1527 = vmatprep.subr.bf16.mxu0 %v1030
    %1528 = vmatpush1.bf16.msra.mxu0 %v1029
    %1529 = vmatprep.subr.bf16.mxu0 %v1034
    %1530 = vmatpush1.bf16.msra.mxu0 %v1033
    %1531 = vmatprep.subr.bf16.mxu0 %v1038
    %1532 = vmatpush1.bf16.msra.mxu0 %v1037
    %1533 = vmatprep.subr.bf16.mxu0 %v1042
    %1534 = vmatpush1.bf16.msra.mxu0 %v1041
    %1535 = vmatprep.subr.bf16.mxu0 %v1046
    %1536 = vmatpush1.bf16.msra.mxu0 %v1045
    %1537 = vmatprep.subr.bf16.mxu0 %v1050
    %1538 = vmatpush1.bf16.msra.mxu0 %v1049
    %1539 = vmatprep.subr.bf16.mxu0 %v1054
    %1540 = vmatpush1.bf16.msra.mxu0 %v1053
    %1541 = vmatprep.subr.bf16.mxu0 %v1058
    %1542 = vmatpush1.bf16.msra.mxu0 %v1057
    %1543 = vmatprep.subr.bf16.mxu0 %v1062
    %1544 = vmatpush1.bf16.msra.mxu0 %v1061
    %1545 = vmatprep.mubr.bf16.mxu0 %v63
    %1546 = vmatmul.mubr.bf16.gmra.mrb[0].mxu0 %v62
    %v1547 = vpop.f32.mrb[0].mxu0
    %v1548 = vadd.f32 %v1507, %v1547
    %v1549 = vpop.f32.mrb[0].mxu0
    %v1550 = vadd.f32 %v1509, %v1549
    %v1551 = vpop.f32.mrb[0].mxu0
    %v1552 = vpop.f32.mrb[0].mxu0
    %1553 = vdwg.mxu0
    %1554 = vmatprep.subr.bf16.mxu0 %v1066
    %1555 = vmatpush1.bf16.msra.mxu0 %v1065
    %1556 = vmatprep.subr.bf16.mxu0 0
    %1557 = vmatpush1.bf16.msra.mxu0 0
    %1558 = vmatprep.subr.bf16.mxu0 0
    %1559 = vmatpush1.bf16.msra.mxu0 0
    %1560 = vmatprep.subr.bf16.mxu0 0
    %1561 = vmatpush1.bf16.msra.mxu0 0
    %1562 = vmatprep.subr.bf16.mxu0 0
    %1563 = vmatpush1.bf16.msra.mxu0 0
    %1564 = vmatprep.subr.bf16.mxu0 0
    %1565 = vmatpush1.bf16.msra.mxu0 0
    %1566 = vmatprep.subr.bf16.mxu0 0
    %1567 = vmatpush1.bf16.msra.mxu0 0
    %1568 = vmatprep.subr.bf16.mxu0 0
    %1569 = vmatpush1.bf16.msra.mxu0 0
    %1570 = vmatprep.subr.bf16.mxu0 0
    %1571 = vmatpush1.bf16.msra.mxu0 0
    %1572 = vmatprep.subr.bf16.mxu0 0
    %1573 = vmatpush1.bf16.msra.mxu0 0
    %1574 = vmatprep.subr.bf16.mxu0 0
    %1575 = vmatpush1.bf16.msra.mxu0 0
    %1576 = vmatprep.subr.bf16.mxu0 0
    %1577 = vmatpush1.bf16.msra.mxu0 0
    %1578 = vmatprep.subr.bf16.mxu0 0
    %1579 = vmatpush1.bf16.msra.mxu0 0
    %1580 = vmatprep.subr.bf16.mxu0 0
    %1581 = vmatpush1.bf16.msra.mxu0 0
    %1582 = vmatprep.subr.bf16.mxu0 0
    %1583 = vmatpush1.bf16.msra.mxu0 0
    %1584 = vmatprep.subr.bf16.mxu0 0
    %1585 = vmatpush1.bf16.msra.mxu0 0
    %1586 = vmatprep.mubr.bf16.mxu0 0
    %1587 = vmatmul.mubr.bf16.gmra.mrb[0].mxu0 %v1265
    %v1588 = vpop.f32.mrb[0].mxu0
    %v1589 = vadd.f32 %v1548, %v1588
    %v1590 = vpop.f32.mrb[0].mxu0
    %v1591 = vadd.f32 %v1550, %v1590
    %v1592 = vpop.f32.mrb[0].mxu0
    %v1593 = vpop.f32.mrb[0].mxu0
    %1594 = vdwg.mxu0
    %v1595 = vmax.f32 %v1425, 0.0
    %v1596 = vmax.f32 %v1427, 0.0
    %v1597 = vmax.f32 %v1589, 0.0
    %v1598 = vmax.f32 %v1591, 0.0
    %v1599 = vpack.c.bf16 %v1595, %v1595
    %v1600 = vpack.c.bf16 %v1596, %v1596
    %v1601 = vpack.c.bf16 %v1597, %v1597
    %v1602 = vpack.c.bf16 %v1598, %v1598
    %v1603 = vld [vmem:[%s4] sm:$0xff]
    %v1604 = vld [vmem:[%s4 + $0x8] sm:$0xff]
    %v1605 = vld [vmem:[%s4 + $0x10] sm:$0xff]
    %v1606 = vld [vmem:[%s4 + $0x18] sm:$0xff]
    %v1607 = vld [vmem:[%s4 + $0x20] sm:$0xff]
    %v1608 = vld [vmem:[%s4 + $0x28] sm:$0xff]
    %v1609 = vld [vmem:[%s4 + $0x30] sm:$0xff]
    %v1610 = vld [vmem:[%s4 + $0x38] sm:$0xff]
    %v1611 = vld [vmem:[%s4 + $0x40] sm:$0xff]
    %v1612 = vld [vmem:[%s4 + $0x48] sm:$0xff]
    %v1613 = vld [vmem:[%s4 + $0x50] sm:$0xff]
    %v1614 = vld [vmem:[%s4 + $0x58] sm:$0xff]
    %v1615 = vld [vmem:[%s4 + $0x60] sm:$0xff]
    %v1616 = vld [vmem:[%s4 + $0x68] sm:$0xff]
    %v1617 = vld [vmem:[%s4 + $0x70] sm:$0xff]
    %v1618 = vld [vmem:[%s4 + $0x78] sm:$0xff]
    %v1619 = vld [vmem:[%s4 + $0x80] sm:$0xff]
    %v1620 = vld [vmem:[%s4 + $0x88] sm:$0xff]
    %v1621 = vld [vmem:[%s4 + $0x90] sm:$0xff]
    %v1622 = vld [vmem:[%s4 + $0x98] sm:$0xff]
    %v1623 = vld [vmem:[%s4 + $0xa0] sm:$0xff]
    %v1624 = vld [vmem:[%s4 + $0xa8] sm:$0xff]
    %v1625 = vld [vmem:[%s4 + $0xb0] sm:$0xff]
    %v1626 = vld [vmem:[%s4 + $0xb8] sm:$0xff]
    %v1627 = vld [vmem:[%s4 + $0xc0] sm:$0xff]
    %v1628 = vld [vmem:[%s4 + $0xc8] sm:$0xff]
    %v1629 = vld [vmem:[%s4 + $0xd0] sm:$0xff]
    %v1630 = vld [vmem:[%s4 + $0xd8] sm:$0xff]
    %v1631 = vld [vmem:[%s4 + $0xe0] sm:$0xff]
    %v1632 = vld [vmem:[%s4 + $0xe8] sm:$0xff]
    %v1633 = vld [vmem:[%s4 + $0xf0] sm:$0xff]
    %v1634 = vld [vmem:[%s4 + $0xf8] sm:$0xff]
    %v1635 = vld [vmem:[%s4 + $0x100] sm:$0xff]
    %v1636 = vld [vmem:[%s4 + $0x108] sm:$0xff]
    %v1637 = vld [vmem:[%s4 + $0x110] sm:$0xff]
    %v1638 = vld [vmem:[%s4 + $0x118] sm:$0xff]
    %v1639 = vld [vmem:[%s4 + $0x120] sm:$0xff]
    %v1640 = vld [vmem:[%s4 + $0x128] sm:$0xff]
    %v1641 = vld [vmem:[%s4 + $0x130] sm:$0xff]
    %v1642 = vld [vmem:[%s4 + $0x138] sm:$0xff]
    %v1643 = vld [vmem:[%s4 + $0x140] sm:$0xff]
    %v1644 = vld [vmem:[%s4 + $0x148] sm:$0xff]
    %v1645 = vld [vmem:[%s4 + $0x150] sm:$0xff]
    %v1646 = vld [vmem:[%s4 + $0x158] sm:$0xff]
    %v1647 = vld [vmem:[%s4 + $0x160] sm:$0xff]
    %v1648 = vld [vmem:[%s4 + $0x168] sm:$0xff]
    %v1649 = vld [vmem:[%s4 + $0x170] sm:$0xff]
    %v1650 = vld [vmem:[%s4 + $0x178] sm:$0xff]
    %v1651 = vld [vmem:[%s4 + $0x180] sm:$0xff]
    %v1652 = vld [vmem:[%s4 + $0x188] sm:$0xff]
    %v1653 = vld [vmem:[%s4 + $0x190] sm:$0xff]
    %v1654 = vld [vmem:[%s4 + $0x198] sm:$0xff]
    %v1655 = vld [vmem:[%s4 + $0x1a0] sm:$0xff]
    %v1656 = vld [vmem:[%s4 + $0x1a8] sm:$0xff]
    %v1657 = vld [vmem:[%s4 + $0x1b0] sm:$0xff]
    %v1658 = vld [vmem:[%s4 + $0x1b8] sm:$0xff]
    %v1659 = vld [vmem:[%s4 + $0x1c0] sm:$0xff]
    %v1660 = vld [vmem:[%s4 + $0x1c8] sm:$0xff]
    %v1661 = vld [vmem:[%s4 + $0x1d0] sm:$0xff]
    %v1662 = vld [vmem:[%s4 + $0x1d8] sm:$0xff]
    %v1663 = vld [vmem:[%s4 + $0x1e0] sm:$0xff]
    %v1664 = vld [vmem:[%s4 + $0x1e8] sm:$0xff]
    %v1665 = vld [vmem:[%s4 + $0x1f0] sm:$0xff]
    %v1666 = vld [vmem:[%s4 + $0x1f8] sm:$0xff]
    %v1667 = vld [vmem:[%s5] sm:$0x3]
    %v1669 = vlaneseq
    %v1670 = vshrl.u32 %v1669, 7
    %v1671 = vsub.s32 0, %v1670
    %v1672 = vrot.slane %v1667, %v1671
    %v1673 = vlaneseq
    %v1674 = vshrl.u32 %v1673, 7
    %v1675 = vsub.s32 1, %v1674
    %v1676 = vrot.slane %v1667, %v1675
    %v1743 = vunpack.c.l.b16 %v1603
    %v1744 = vunpack.c.h.b16 %v1603
    %v1745 = vunpack.c.l.b16 %v1604
    %v1746 = vunpack.c.h.b16 %v1604
    %v1747 = vunpack.c.l.b16 %v1605
    %v1748 = vunpack.c.h.b16 %v1605
    %v1749 = vunpack.c.l.b16 %v1606
    %v1750 = vunpack.c.h.b16 %v1606
    %v1751 = vunpack.c.l.b16 %v1607
    %v1752 = vunpack.c.h.b16 %v1607
    %v1753 = vunpack.c.l.b16 %v1608
    %v1754 = vunpack.c.h.b16 %v1608
    %v1755 = vunpack.c.l.b16 %v1609
    %v1756 = vunpack.c.h.b16 %v1609
    %v1757 = vunpack.c.l.b16 %v1610
    %v1758 = vunpack.c.h.b16 %v1610
    %v1759 = vunpack.c.l.b16 %v1611
    %v1760 = vunpack.c.h.b16 %v1611
    %v1761 = vunpack.c.l.b16 %v1612
    %v1762 = vunpack.c.h.b16 %v1612
    %v1763 = vunpack.c.l.b16 %v1613
    %v1764 = vunpack.c.h.b16 %v1613
    %v1765 = vunpack.c.l.b16 %v1614
    %v1766 = vunpack.c.h.b16 %v1614
    %v1767 = vunpack.c.l.b16 %v1615
    %v1768 = vunpack.c.h.b16 %v1615
    %v1769 = vunpack.c.l.b16 %v1616
    %v1770 = vunpack.c.h.b16 %v1616
    %v1771 = vunpack.c.l.b16 %v1617
    %v1772 = vunpack.c.h.b16 %v1617
    %v1773 = vunpack.c.l.b16 %v1618
    %v1774 = vunpack.c.h.b16 %v1618
    %v1775 = vunpack.c.l.b16 %v1619
    %v1776 = vunpack.c.h.b16 %v1619
    %v1777 = vunpack.c.l.b16 %v1620
    %v1778 = vunpack.c.h.b16 %v1620
    %v1779 = vunpack.c.l.b16 %v1621
    %v1780 = vunpack.c.h.b16 %v1621
    %v1781 = vunpack.c.l.b16 %v1622
    %v1782 = vunpack.c.h.b16 %v1622
    %v1783 = vunpack.c.l.b16 %v1623
    %v1784 = vunpack.c.h.b16 %v1623
    %v1785 = vunpack.c.l.b16 %v1624
    %v1786 = vunpack.c.h.b16 %v1624
    %v1787 = vunpack.c.l.b16 %v1625
    %v1788 = vunpack.c.h.b16 %v1625
    %v1789 = vunpack.c.l.b16 %v1626
    %v1790 = vunpack.c.h.b16 %v1626
    %v1791 = vunpack.c.l.b16 %v1627
    %v1792 = vunpack.c.h.b16 %v1627
    %v1793 = vunpack.c.l.b16 %v1628
    %v1794 = vunpack.c.h.b16 %v1628
    %v1795 = vunpack.c.l.b16 %v1629
    %v1796 = vunpack.c.h.b16 %v1629
    %v1797 = vunpack.c.l.b16 %v1630
    %v1798 = vunpack.c.h.b16 %v1630
    %v1799 = vunpack.c.l.b16 %v1631
    %v1800 = vunpack.c.h.b16 %v1631
    %v1801 = vunpack.c.l.b16 %v1632
    %v1802 = vunpack.c.h.b16 %v1632
    %v1803 = vunpack.c.l.b16 %v1633
    %v1804 = vunpack.c.h.b16 %v1633
    %v1805 = vunpack.c.l.b16 %v1634
    %v1806 = vunpack.c.h.b16 %v1634
    %v1807 = vunpack.c.l.b16 %v1635
    %v1808 = vunpack.c.h.b16 %v1635
    %v1809 = vunpack.c.l.b16 %v1636
    %v1810 = vunpack.c.h.b16 %v1636
    %v1811 = vunpack.c.l.b16 %v1637
    %v1812 = vunpack.c.h.b16 %v1637
    %v1813 = vunpack.c.l.b16 %v1638
    %v1814 = vunpack.c.h.b16 %v1638
    %v1815 = vunpack.c.l.b16 %v1639
    %v1816 = vunpack.c.h.b16 %v1639
    %v1817 = vunpack.c.l.b16 %v1640
    %v1818 = vunpack.c.h.b16 %v1640
    %v1819 = vunpack.c.l.b16 %v1641
    %v1820 = vunpack.c.h.b16 %v1641
    %v1821 = vunpack.c.l.b16 %v1642
    %v1822 = vunpack.c.h.b16 %v1642
    %v1823 = vunpack.c.l.b16 %v1643
    %v1824 = vunpack.c.h.b16 %v1643
    %v1825 = vunpack.c.l.b16 %v1644
    %v1826 = vunpack.c.h.b16 %v1644
    %v1827 = vunpack.c.l.b16 %v1645
    %v1828 = vunpack.c.h.b16 %v1645
    %v1829 = vunpack.c.l.b16 %v1646
    %v1830 = vunpack.c.h.b16 %v1646
    %v1831 = vunpack.c.l.b16 %v1647
    %v1832 = vunpack.c.h.b16 %v1647
    %v1833 = vunpack.c.l.b16 %v1648
    %v1834 = vunpack.c.h.b16 %v1648
    %v1835 = vunpack.c.l.b16 %v1649
    %v1836 = vunpack.c.h.b16 %v1649
    %v1837 = vunpack.c.l.b16 %v1650
    %v1838 = vunpack.c.h.b16 %v1650
    %v1839 = vunpack.c.l.b16 %v1651
    %v1840 = vunpack.c.h.b16 %v1651
    %v1841 = vunpack.c.l.b16 %v1652
    %v1842 = vunpack.c.h.b16 %v1652
    %v1843 = vunpack.c.l.b16 %v1653
    %v1844 = vunpack.c.h.b16 %v1653
    %v1845 = vunpack.c.l.b16 %v1654
    %v1846 = vunpack.c.h.b16 %v1654
    %v1847 = vunpack.c.l.b16 %v1655
    %v1848 = vunpack.c.h.b16 %v1655
    %v1849 = vunpack.c.l.b16 %v1656
    %v1850 = vunpack.c.h.b16 %v1656
    %v1851 = vunpack.c.l.b16 %v1657
    %v1852 = vunpack.c.h.b16 %v1657
    %v1853 = vunpack.c.l.b16 %v1658
    %v1854 = vunpack.c.h.b16 %v1658
    %v1855 = vunpack.c.l.b16 %v1659
    %v1856 = vunpack.c.h.b16 %v1659
    %v1857 = vunpack.c.l.b16 %v1660
    %v1858 = vunpack.c.h.b16 %v1660
    %v1859 = vunpack.c.l.b16 %v1661
    %v1860 = vunpack.c.h.b16 %v1661
    %v1861 = vunpack.c.l.b16 %v1662
    %v1862 = vunpack.c.h.b16 %v1662
    %v1863 = vunpack.c.l.b16 %v1663
    %v1864 = vunpack.c.h.b16 %v1663
    %v1865 = vunpack.c.l.b16 %v1664
    %v1866 = vunpack.c.h.b16 %v1664
    %v1867 = vunpack.c.l.b16 %v1665
    %v1868 = vunpack.c.h.b16 %v1665
    %v1869 = vunpack.c.l.b16 %v1666
    %v1870 = vunpack.c.h.b16 %v1666
    %v1871 = vpack.c.b16 %v1745, %v1743
    %v1872 = vpack.c.b16 %v1746, %v1744
    %v1873 = vpack.c.b16 %v1749, %v1747
    %v1874 = vpack.c.b16 %v1750, %v1748
    %v1875 = vpack.c.b16 %v1753, %v1751
    %v1876 = vpack.c.b16 %v1754, %v1752
    %v1877 = vpack.c.b16 %v1757, %v1755
    %v1878 = vpack.c.b16 %v1758, %v1756
    %v1879 = vpack.c.b16 %v1761, %v1759
    %v1880 = vpack.c.b16 %v1762, %v1760
    %v1881 = vpack.c.b16 %v1765, %v1763
    %v1882 = vpack.c.b16 %v1766, %v1764
    %v1883 = vpack.c.b16 %v1769, %v1767
    %v1884 = vpack.c.b16 %v1770, %v1768
    %v1885 = vpack.c.b16 %v1773, %v1771
    %v1886 = vpack.c.b16 %v1774, %v1772
    %v1887 = vpack.c.b16 %v1777, %v1775
    %v1888 = vpack.c.b16 %v1778, %v1776
    %v1889 = vpack.c.b16 %v1781, %v1779
    %v1890 = vpack.c.b16 %v1782, %v1780
    %v1891 = vpack.c.b16 %v1785, %v1783
    %v1892 = vpack.c.b16 %v1786, %v1784
    %v1893 = vpack.c.b16 %v1789, %v1787
    %v1894 = vpack.c.b16 %v1790, %v1788
    %v1895 = vpack.c.b16 %v1793, %v1791
    %v1896 = vpack.c.b16 %v1794, %v1792
    %v1897 = vpack.c.b16 %v1797, %v1795
    %v1898 = vpack.c.b16 %v1798, %v1796
    %v1899 = vpack.c.b16 %v1801, %v1799
    %v1900 = vpack.c.b16 %v1802, %v1800
    %v1901 = vpack.c.b16 %v1805, %v1803
    %v1902 = vpack.c.b16 %v1806, %v1804
    %v1903 = vpack.c.b16 %v1809, %v1807
    %v1904 = vpack.c.b16 %v1810, %v1808
    %v1905 = vpack.c.b16 %v1813, %v1811
    %v1906 = vpack.c.b16 %v1814, %v1812
    %v1907 = vpack.c.b16 %v1817, %v1815
    %v1908 = vpack.c.b16 %v1818, %v1816
    %v1909 = vpack.c.b16 %v1821, %v1819
    %v1910 = vpack.c.b16 %v1822, %v1820
    %v1911 = vpack.c.b16 %v1825, %v1823
    %v1912 = vpack.c.b16 %v1826, %v1824
    %v1913 = vpack.c.b16 %v1829, %v1827
    %v1914 = vpack.c.b16 %v1830, %v1828
    %v1915 = vpack.c.b16 %v1833, %v1831
    %v1916 = vpack.c.b16 %v1834, %v1832
    %v1917 = vpack.c.b16 %v1837, %v1835
    %v1918 = vpack.c.b16 %v1838, %v1836
    %v1919 = vpack.c.b16 %v1841, %v1839
    %v1920 = vpack.c.b16 %v1842, %v1840
    %v1921 = vpack.c.b16 %v1845, %v1843
    %v1922 = vpack.c.b16 %v1846, %v1844
    %v1923 = vpack.c.b16 %v1849, %v1847
    %v1924 = vpack.c.b16 %v1850, %v1848
    %v1925 = vpack.c.b16 %v1853, %v1851
    %v1926 = vpack.c.b16 %v1854, %v1852
    %v1927 = vpack.c.b16 %v1857, %v1855
    %v1928 = vpack.c.b16 %v1858, %v1856
    %v1929 = vpack.c.b16 %v1861, %v1859
    %v1930 = vpack.c.b16 %v1862, %v1860
    %v1931 = vpack.c.b16 %v1865, %v1863
    %v1932 = vpack.c.b16 %v1866, %v1864
    %v1933 = vpack.c.b16 %v1869, %v1867
    %v1934 = vpack.c.b16 %v1870, %v1868
    %1999 = vmatprep.subr.bf16.mxu0 %v1872
    %2000 = vmatpush1.bf16.msra.mxu0 %v1871
    %2001 = vmatprep.subr.bf16.mxu0 %v1874
    %2002 = vmatpush1.bf16.msra.mxu0 %v1873
    %2003 = vmatprep.subr.bf16.mxu0 %v1876
    %2004 = vmatpush1.bf16.msra.mxu0 %v1875
    %2005 = vmatprep.subr.bf16.mxu0 %v1878
    %2006 = vmatpush1.bf16.msra.mxu0 %v1877
    %2007 = vmatprep.subr.bf16.mxu0 %v1880
    %2008 = vmatpush1.bf16.msra.mxu0 %v1879
    %2009 = vmatprep.subr.bf16.mxu0 %v1882
    %2010 = vmatpush1.bf16.msra.mxu0 %v1881
    %2011 = vmatprep.subr.bf16.mxu0 %v1884
    %2012 = vmatpush1.bf16.msra.mxu0 %v1883
    %2013 = vmatprep.subr.bf16.mxu0 %v1886
    %2014 = vmatpush1.bf16.msra.mxu0 %v1885
    %2015 = vmatprep.subr.bf16.mxu0 %v1888
    %2016 = vmatpush1.bf16.msra.mxu0 %v1887
    %2017 = vmatprep.subr.bf16.mxu0 %v1890
    %2018 = vmatpush1.bf16.msra.mxu0 %v1889
    %2019 = vmatprep.subr.bf16.mxu0 %v1892
    %2020 = vmatpush1.bf16.msra.mxu0 %v1891
    %2021 = vmatprep.subr.bf16.mxu0 %v1894
    %2022 = vmatpush1.bf16.msra.mxu0 %v1893
    %2023 = vmatprep.subr.bf16.mxu0 %v1896
    %2024 = vmatpush1.bf16.msra.mxu0 %v1895
    %2025 = vmatprep.subr.bf16.mxu0 %v1898
    %2026 = vmatpush1.bf16.msra.mxu0 %v1897
    %2027 = vmatprep.subr.bf16.mxu0 %v1900
    %2028 = vmatpush1.bf16.msra.mxu0 %v1899
    %2029 = vmatprep.subr.bf16.mxu0 %v1902
    %2030 = vmatpush1.bf16.msra.mxu0 %v1901
    %2031 = vmatprep.mubr.bf16.mxu0 %v1600
    %2032 = vmatmul.mubr.bf16.gmra.mrb[0].mxu0 %v1599
    %v2033 = vpop.f32.mrb[0].mxu0
    %v2034 = vadd.f32 %v1672, %v2033
    %v2035 = vpop.f32.mrb[0].mxu0
    %v2036 = vadd.f32 %v1676, %v2035
    %v2037 = vpop.f32.mrb[0].mxu0
    %v2038 = vpop.f32.mrb[0].mxu0
    %2039 = vdwg.mxu0
    %2040 = vmatprep.subr.bf16.mxu0 %v1904
    %2041 = vmatpush1.bf16.msra.mxu0 %v1903
    %2042 = vmatprep.subr.bf16.mxu0 %v1906
    %2043 = vmatpush1.bf16.msra.mxu0 %v1905
    %2044 = vmatprep.subr.bf16.mxu0 %v1908
    %2045 = vmatpush1.bf16.msra.mxu0 %v1907
    %2046 = vmatprep.subr.bf16.mxu0 %v1910
    %2047 = vmatpush1.bf16.msra.mxu0 %v1909
    %2048 = vmatprep.subr.bf16.mxu0 %v1912
    %2049 = vmatpush1.bf16.msra.mxu0 %v1911
    %2050 = vmatprep.subr.bf16.mxu0 %v1914
    %2051 = vmatpush1.bf16.msra.mxu0 %v1913
    %2052 = vmatprep.subr.bf16.mxu0 %v1916
    %2053 = vmatpush1.bf16.msra.mxu0 %v1915
    %2054 = vmatprep.subr.bf16.mxu0 %v1918
    %2055 = vmatpush1.bf16.msra.mxu0 %v1917
    %2056 = vmatprep.subr.bf16.mxu0 %v1920
    %2057 = vmatpush1.bf16.msra.mxu0 %v1919
    %2058 = vmatprep.subr.bf16.mxu0 %v1922
    %2059 = vmatpush1.bf16.msra.mxu0 %v1921
    %2060 = vmatprep.subr.bf16.mxu0 %v1924
    %2061 = vmatpush1.bf16.msra.mxu0 %v1923
    %2062 = vmatprep.subr.bf16.mxu0 %v1926
    %2063 = vmatpush1.bf16.msra.mxu0 %v1925
    %2064 = vmatprep.subr.bf16.mxu0 %v1928
    %2065 = vmatpush1.bf16.msra.mxu0 %v1927
    %2066 = vmatprep.subr.bf16.mxu0 %v1930
    %2067 = vmatpush1.bf16.msra.mxu0 %v1929
    %2068 = vmatprep.subr.bf16.mxu0 %v1932
    %2069 = vmatpush1.bf16.msra.mxu0 %v1931
    %2070 = vmatprep.subr.bf16.mxu0 %v1934
    %2071 = vmatpush1.bf16.msra.mxu0 %v1933
    %2072 = vmatprep.mubr.bf16.mxu0 %v1602
    %2073 = vmatmul.mubr.bf16.gmra.mrb[0].mxu0 %v1601
    %v2074 = vpop.f32.mrb[0].mxu0
    %v2075 = vadd.f32 %v2034, %v2074
    %v2076 = vpop.f32.mrb[0].mxu0
    %v2077 = vadd.f32 %v2036, %v2076
    %v2078 = vpop.f32.mrb[0].mxu0
    %v2079 = vpop.f32.mrb[0].mxu0
    %2080 = vdwg.mxu0
    %v2081 = vmax.f32 %v2075, 0.0
    %v2082 = vmax.f32 %v2077, 0.0
    %v2083 = vpack.c.bf16 %v2081, %v2081
    %v2084 = vpack.c.bf16 %v2082, %v2082
    %v2085 = vld [vmem:[%s6] sm:$0xff]
    %v2086 = vld [vmem:[%s6 + $0x8] sm:$0xff]
    %v2087 = vld [vmem:[%s6 + $0x10] sm:$0xff]
    %v2088 = vld [vmem:[%s6 + $0x18] sm:$0xff]
    %v2089 = vld [vmem:[%s6 + $0x20] sm:$0xff]
    %v2090 = vld [vmem:[%s6 + $0x28] sm:$0xff]
    %v2091 = vld [vmem:[%s6 + $0x30] sm:$0xff]
    %v2092 = vld [vmem:[%s6 + $0x38] sm:$0xff]
    %v2093 = vld [vmem:[%s6 + $0x40] sm:$0xff]
    %v2094 = vld [vmem:[%s6 + $0x48] sm:$0xff]
    %v2095 = vld [vmem:[%s6 + $0x50] sm:$0xff]
    %v2096 = vld [vmem:[%s6 + $0x58] sm:$0xff]
    %v2097 = vld [vmem:[%s6 + $0x60] sm:$0xff]
    %v2098 = vld [vmem:[%s6 + $0x68] sm:$0xff]
    %v2099 = vld [vmem:[%s6 + $0x70] sm:$0xff]
    %v2100 = vld [vmem:[%s6 + $0x78] sm:$0xff]
    %v2101 = vld [vmem:[%s6 + $0x80] sm:$0xff]
    %v2102 = vld [vmem:[%s6 + $0x88] sm:$0xff]
    %v2103 = vld [vmem:[%s6 + $0x90] sm:$0xff]
    %v2104 = vld [vmem:[%s6 + $0x98] sm:$0xff]
    %v2105 = vld [vmem:[%s6 + $0xa0] sm:$0xff]
    %v2106 = vld [vmem:[%s6 + $0xa8] sm:$0xff]
    %v2107 = vld [vmem:[%s6 + $0xb0] sm:$0xff]
    %v2108 = vld [vmem:[%s6 + $0xb8] sm:$0xff]
    %v2109 = vld [vmem:[%s6 + $0xc0] sm:$0xff]
    %v2110 = vld [vmem:[%s6 + $0xc8] sm:$0xff]
    %v2111 = vld [vmem:[%s6 + $0xd0] sm:$0xff]
    %v2112 = vld [vmem:[%s6 + $0xd8] sm:$0xff]
    %v2113 = vld [vmem:[%s6 + $0xe0] sm:$0xff]
    %v2114 = vld [vmem:[%s6 + $0xe8] sm:$0xff]
    %v2115 = vld [vmem:[%s6 + $0xf0] sm:$0xff]
    %v2116 = vld [vmem:[%s6 + $0xf8] sm:$0xff]
    %v2117 = vld [vmem:[%s7] sm:$0x3]
    %v2119 = vlaneseq
    %v2120 = vshrl.u32 %v2119, 7
    %v2121 = vsub.s32 0, %v2120
    %v2122 = vrot.slane %v2117, %v2121
    %v2123 = vlaneseq
    %v2124 = vshrl.u32 %v2123, 7
    %v2125 = vsub.s32 1, %v2124
    %v2126 = vrot.slane %v2117, %v2125
    %v2161 = vunpack.c.l.b16 %v2085
    %v2162 = vunpack.c.h.b16 %v2085
    %v2163 = vunpack.c.l.b16 %v2086
    %v2164 = vunpack.c.h.b16 %v2086
    %v2165 = vunpack.c.l.b16 %v2087
    %v2166 = vunpack.c.h.b16 %v2087
    %v2167 = vunpack.c.l.b16 %v2088
    %v2168 = vunpack.c.h.b16 %v2088
    %v2169 = vunpack.c.l.b16 %v2089
    %v2170 = vunpack.c.h.b16 %v2089
    %v2171 = vunpack.c.l.b16 %v2090
    %v2172 = vunpack.c.h.b16 %v2090
    %v2173 = vunpack.c.l.b16 %v2091
    %v2174 = vunpack.c.h.b16 %v2091
    %v2175 = vunpack.c.l.b16 %v2092
    %v2176 = vunpack.c.h.b16 %v2092
    %v2177 = vunpack.c.l.b16 %v2093
    %v2178 = vunpack.c.h.b16 %v2093
    %v2179 = vunpack.c.l.b16 %v2094
    %v2180 = vunpack.c.h.b16 %v2094
    %v2181 = vunpack.c.l.b16 %v2095
    %v2182 = vunpack.c.h.b16 %v2095
    %v2183 = vunpack.c.l.b16 %v2096
    %v2184 = vunpack.c.h.b16 %v2096
    %v2185 = vunpack.c.l.b16 %v2097
    %v2186 = vunpack.c.h.b16 %v2097
    %v2187 = vunpack.c.l.b16 %v2098
    %v2188 = vunpack.c.h.b16 %v2098
    %v2189 = vunpack.c.l.b16 %v2099
    %v2190 = vunpack.c.h.b16 %v2099
    %v2191 = vunpack.c.l.b16 %v2100
    %v2192 = vunpack.c.h.b16 %v2100
    %v2193 = vunpack.c.l.b16 %v2101
    %v2194 = vunpack.c.h.b16 %v2101
    %v2195 = vunpack.c.l.b16 %v2102
    %v2196 = vunpack.c.h.b16 %v2102
    %v2197 = vunpack.c.l.b16 %v2103
    %v2198 = vunpack.c.h.b16 %v2103
    %v2199 = vunpack.c.l.b16 %v2104
    %v2200 = vunpack.c.h.b16 %v2104
    %v2201 = vunpack.c.l.b16 %v2105
    %v2202 = vunpack.c.h.b16 %v2105
    %v2203 = vunpack.c.l.b16 %v2106
    %v2204 = vunpack.c.h.b16 %v2106
    %v2205 = vunpack.c.l.b16 %v2107
    %v2206 = vunpack.c.h.b16 %v2107
    %v2207 = vunpack.c.l.b16 %v2108
    %v2208 = vunpack.c.h.b16 %v2108
    %v2209 = vunpack.c.l.b16 %v2109
    %v2210 = vunpack.c.h.b16 %v2109
    %v2211 = vunpack.c.l.b16 %v2110
    %v2212 = vunpack.c.h.b16 %v2110
    %v2213 = vunpack.c.l.b16 %v2111
    %v2214 = vunpack.c.h.b16 %v2111
    %v2215 = vunpack.c.l.b16 %v2112
    %v2216 = vunpack.c.h.b16 %v2112
    %v2217 = vunpack.c.l.b16 %v2113
    %v2218 = vunpack.c.h.b16 %v2113
    %v2219 = vunpack.c.l.b16 %v2114
    %v2220 = vunpack.c.h.b16 %v2114
    %v2221 = vunpack.c.l.b16 %v2115
    %v2222 = vunpack.c.h.b16 %v2115
    %v2223 = vunpack.c.l.b16 %v2116
    %v2224 = vunpack.c.h.b16 %v2116
    %v2225 = vpack.c.b16 %v2163, %v2161
    %v2226 = vpack.c.b16 %v2164, %v2162
    %v2227 = vpack.c.b16 %v2167, %v2165
    %v2228 = vpack.c.b16 %v2168, %v2166
    %v2229 = vpack.c.b16 %v2171, %v2169
    %v2230 = vpack.c.b16 %v2172, %v2170
    %v2231 = vpack.c.b16 %v2175, %v2173
    %v2232 = vpack.c.b16 %v2176, %v2174
    %v2233 = vpack.c.b16 %v2179, %v2177
    %v2234 = vpack.c.b16 %v2180, %v2178
    %v2235 = vpack.c.b16 %v2183, %v2181
    %v2236 = vpack.c.b16 %v2184, %v2182
    %v2237 = vpack.c.b16 %v2187, %v2185
    %v2238 = vpack.c.b16 %v2188, %v2186
    %v2239 = vpack.c.b16 %v2191, %v2189
    %v2240 = vpack.c.b16 %v2192, %v2190
    %v2241 = vpack.c.b16 %v2195, %v2193
    %v2242 = vpack.c.b16 %v2196, %v2194
    %v2243 = vpack.c.b16 %v2199, %v2197
    %v2244 = vpack.c.b16 %v2200, %v2198
    %v2245 = vpack.c.b16 %v2203, %v2201
    %v2246 = vpack.c.b16 %v2204, %v2202
    %v2247 = vpack.c.b16 %v2207, %v2205
    %v2248 = vpack.c.b16 %v2208, %v2206
    %v2249 = vpack.c.b16 %v2211, %v2209
    %v2250 = vpack.c.b16 %v2212, %v2210
    %v2251 = vpack.c.b16 %v2215, %v2213
    %v2252 = vpack.c.b16 %v2216, %v2214
    %v2253 = vpack.c.b16 %v2219, %v2217
    %v2254 = vpack.c.b16 %v2220, %v2218
    %v2255 = vpack.c.b16 %v2223, %v2221
    %v2256 = vpack.c.b16 %v2224, %v2222
    %2289 = vmatprep.subr.bf16.mxu0 %v2226
    %2290 = vmatpush1.bf16.msra.mxu0 %v2225
    %2291 = vmatprep.subr.bf16.mxu0 %v2228
    %2292 = vmatpush1.bf16.msra.mxu0 %v2227
    %2293 = vmatprep.subr.bf16.mxu0 %v2230
    %2294 = vmatpush1.bf16.msra.mxu0 %v2229
    %2295 = vmatprep.subr.bf16.mxu0 %v2232
    %2296 = vmatpush1.bf16.msra.mxu0 %v2231
    %2297 = vmatprep.subr.bf16.mxu0 %v2234
    %2298 = vmatpush1.bf16.msra.mxu0 %v2233
    %2299 = vmatprep.subr.bf16.mxu0 %v2236
    %2300 = vmatpush1.bf16.msra.mxu0 %v2235
    %2301 = vmatprep.subr.bf16.mxu0 %v2238
    %2302 = vmatpush1.bf16.msra.mxu0 %v2237
    %2303 = vmatprep.subr.bf16.mxu0 %v2240
    %2304 = vmatpush1.bf16.msra.mxu0 %v2239
    %2305 = vmatprep.subr.bf16.mxu0 %v2242
    %2306 = vmatpush1.bf16.msra.mxu0 %v2241
    %2307 = vmatprep.subr.bf16.mxu0 %v2244
    %2308 = vmatpush1.bf16.msra.mxu0 %v2243
    %2309 = vmatprep.subr.bf16.mxu0 %v2246
    %2310 = vmatpush1.bf16.msra.mxu0 %v2245
    %2311 = vmatprep.subr.bf16.mxu0 %v2248
    %2312 = vmatpush1.bf16.msra.mxu0 %v2247
    %2313 = vmatprep.subr.bf16.mxu0 %v2250
    %2314 = vmatpush1.bf16.msra.mxu0 %v2249
    %2315 = vmatprep.subr.bf16.mxu0 %v2252
    %2316 = vmatpush1.bf16.msra.mxu0 %v2251
    %2317 = vmatprep.subr.bf16.mxu0 %v2254
    %2318 = vmatpush1.bf16.msra.mxu0 %v2253
    %2319 = vmatprep.subr.bf16.mxu0 %v2256
    %2320 = vmatpush1.bf16.msra.mxu0 %v2255
    %2321 = vmatprep.mubr.bf16.mxu0 %v2084
    %2322 = vmatmul.mubr.bf16.gmra.mrb[0].mxu0 %v2083
    %v2323 = vpop.f32.mrb[0].mxu0
    %v2324 = vadd.f32 %v2122, %v2323
    %v2325 = vpop.f32.mrb[0].mxu0
    %v2326 = vadd.f32 %v2126, %v2325
    %v2327 = vpop.f32.mrb[0].mxu0
    %v2328 = vpop.f32.mrb[0].mxu0
    %2329 = vdwg.mxu0
    %v2330 = vmul.f32 %v2326, 1.442695
    %v2331 = vpow.pop %v2330
    %v2332 = vld [vmem:[%s1] sm:$0xf]
    %v2333 = vunpack.c.l.bf16 %v2332
    %v2334 = vmul.f32 %v2331, %v2333
    %v2335 = vadd.f32 %v2324, %v2334
    %v2336 = vpack.c.bf16 %v2335, %v2335
    %v2337 = vld [vmem:[%s8] sm:$0xff]
    %v2338 = vld [vmem:[%s8 + $0x8] sm:$0xff]
    %v2339 = vld [vmem:[%s8 + $0x10] sm:$0xff]
    %v2340 = vld [vmem:[%s8 + $0x18] sm:$0xff]
    %v2341 = vld [vmem:[%s8 + $0x20] sm:$0xff]
    %v2342 = vld [vmem:[%s8 + $0x28] sm:$0xff]
    %v2343 = vld [vmem:[%s8 + $0x30] sm:$0xff]
    %v2344 = vld [vmem:[%s8 + $0x38] sm:$0xff]
    %v2345 = vld [vmem:[%s8 + $0x40] sm:$0xff]
    %v2346 = vld [vmem:[%s8 + $0x48] sm:$0xff]
    %v2347 = vld [vmem:[%s8 + $0x50] sm:$0xff]
    %v2348 = vld [vmem:[%s8 + $0x58] sm:$0xff]
    %v2349 = vld [vmem:[%s8 + $0x60] sm:$0xff]
    %v2350 = vld [vmem:[%s8 + $0x68] sm:$0xff]
    %v2351 = vld [vmem:[%s8 + $0x70] sm:$0xff]
    %v2352 = vld [vmem:[%s8 + $0x78] sm:$0xff]
    %v2353 = vld [vmem:[%s9] sm:$0x3]
    %v2355 = vlaneseq
    %v2356 = vshrl.u32 %v2355, 7
    %v2357 = vsub.s32 0, %v2356
    %v2358 = vrot.slane %v2353, %v2357
    %v2359 = vlaneseq
    %v2360 = vshrl.u32 %v2359, 7
    %v2361 = vsub.s32 1, %v2360
    %v2362 = vrot.slane %v2353, %v2361
    %v2381 = vunpack.c.l.b16 %v2337
    %v2382 = vunpack.c.h.b16 %v2337
    %v2383 = vunpack.c.l.b16 %v2338
    %v2384 = vunpack.c.h.b16 %v2338
    %v2385 = vunpack.c.l.b16 %v2339
    %v2386 = vunpack.c.h.b16 %v2339
    %v2387 = vunpack.c.l.b16 %v2340
    %v2388 = vunpack.c.h.b16 %v2340
    %v2389 = vunpack.c.l.b16 %v2341
    %v2390 = vunpack.c.h.b16 %v2341
    %v2391 = vunpack.c.l.b16 %v2342
    %v2392 = vunpack.c.h.b16 %v2342
    %v2393 = vunpack.c.l.b16 %v2343
    %v2394 = vunpack.c.h.b16 %v2343
    %v2395 = vunpack.c.l.b16 %v2344
    %v2396 = vunpack.c.h.b16 %v2344
    %v2397 = vunpack.c.l.b16 %v2345
    %v2398 = vunpack.c.h.b16 %v2345
    %v2399 = vunpack.c.l.b16 %v2346
    %v2400 = vunpack.c.h.b16 %v2346
    %v2401 = vunpack.c.l.b16 %v2347
    %v2402 = vunpack.c.h.b16 %v2347
    %v2403 = vunpack.c.l.b16 %v2348
    %v2404 = vunpack.c.h.b16 %v2348
    %v2405 = vunpack.c.l.b16 %v2349
    %v2406 = vunpack.c.h.b16 %v2349
    %v2407 = vunpack.c.l.b16 %v2350
    %v2408 = vunpack.c.h.b16 %v2350
    %v2409 = vunpack.c.l.b16 %v2351
    %v2410 = vunpack.c.h.b16 %v2351
    %v2411 = vunpack.c.l.b16 %v2352
    %v2412 = vunpack.c.h.b16 %v2352
    %v2413 = vpack.c.b16 %v2383, %v2381
    %v2414 = vpack.c.b16 %v2384, %v2382
    %v2415 = vpack.c.b16 %v2387, %v2385
    %v2416 = vpack.c.b16 %v2388, %v2386
    %v2417 = vpack.c.b16 %v2391, %v2389
    %v2418 = vpack.c.b16 %v2392, %v2390
    %v2419 = vpack.c.b16 %v2395, %v2393
    %v2420 = vpack.c.b16 %v2396, %v2394
    %v2421 = vpack.c.b16 %v2399, %v2397
    %v2422 = vpack.c.b16 %v2400, %v2398
    %v2423 = vpack.c.b16 %v2403, %v2401
    %v2424 = vpack.c.b16 %v2404, %v2402
    %v2425 = vpack.c.b16 %v2407, %v2405
    %v2426 = vpack.c.b16 %v2408, %v2406
    %v2427 = vpack.c.b16 %v2411, %v2409
    %v2428 = vpack.c.b16 %v2412, %v2410
    %2445 = vmatprep.subr.bf16.mxu0 %v2414
    %2446 = vmatpush1.bf16.msra.mxu0 %v2413
    %2447 = vmatprep.subr.bf16.mxu0 %v2416
    %2448 = vmatpush1.bf16.msra.mxu0 %v2415
    %2449 = vmatprep.subr.bf16.mxu0 %v2418
    %2450 = vmatpush1.bf16.msra.mxu0 %v2417
    %2451 = vmatprep.subr.bf16.mxu0 %v2420
    %2452 = vmatpush1.bf16.msra.mxu0 %v2419
    %2453 = vmatprep.subr.bf16.mxu0 %v2422
    %2454 = vmatpush1.bf16.msra.mxu0 %v2421
    %2455 = vmatprep.subr.bf16.mxu0 %v2424
    %2456 = vmatpush1.bf16.msra.mxu0 %v2423
    %2457 = vmatprep.subr.bf16.mxu0 %v2426
    %2458 = vmatpush1.bf16.msra.mxu0 %v2425
    %2459 = vmatprep.subr.bf16.mxu0 %v2428
    %2460 = vmatpush1.bf16.msra.mxu0 %v2427
    %2461 = vmatprep.subr.bf16.mxu0 0
    %2462 = vmatpush1.bf16.msra.mxu0 0
    %2463 = vmatprep.subr.bf16.mxu0 0
    %2464 = vmatpush1.bf16.msra.mxu0 0
    %2465 = vmatprep.subr.bf16.mxu0 0
    %2466 = vmatpush1.bf16.msra.mxu0 0
    %2467 = vmatprep.subr.bf16.mxu0 0
    %2468 = vmatpush1.bf16.msra.mxu0 0
    %2469 = vmatprep.subr.bf16.mxu0 0
    %2470 = vmatpush1.bf16.msra.mxu0 0
    %2471 = vmatprep.subr.bf16.mxu0 0
    %2472 = vmatpush1.bf16.msra.mxu0 0
    %2473 = vmatprep.subr.bf16.mxu0 0
    %2474 = vmatpush1.bf16.msra.mxu0 0
    %2475 = vmatprep.subr.bf16.mxu0 0
    %2476 = vmatpush1.bf16.msra.mxu0 0
    %2477 = vmatprep.mubr.bf16.mxu0 0
    %2478 = vmatmul.mubr.bf16.gmra.mrb[0].mxu0 %v2336
    %v2479 = vpop.f32.mrb[0].mxu0
    %v2480 = vadd.f32 %v2358, %v2479
    %v2481 = vpop.f32.mrb[0].mxu0
    %v2482 = vadd.f32 %v2362, %v2481
    %v2483 = vpop.f32.mrb[0].mxu0
    %v2484 = vpop.f32.mrb[0].mxu0
    %2485 = vdwg.mxu0
    %v2486 = vmax.f32 %v2480, 0.0
    %v2487 = vmax.f32 %v2482, 0.0
    %v2488 = vpack.c.bf16 %v2486, %v2486
    %v2489 = vpack.c.bf16 %v2487, %v2487
    %v2490 = vld [vmem:[%s10] sm:$0xff]
    %v2491 = vld [vmem:[%s10 + $0x8] sm:$0xff]
    %v2492 = vld [vmem:[%s10 + $0x10] sm:$0xff]
    %v2493 = vld [vmem:[%s10 + $0x18] sm:$0xff]
    %v2494 = vld [vmem:[%s10 + $0x20] sm:$0xff]
    %v2495 = vld [vmem:[%s10 + $0x28] sm:$0xff]
    %v2496 = vld [vmem:[%s10 + $0x30] sm:$0xff]
    %v2497 = vld [vmem:[%s10 + $0x38] sm:$0xff]
    %v2498 = vld [vmem:[%s10 + $0x40] sm:$0xff]
    %v2499 = vld [vmem:[%s10 + $0x48] sm:$0xff]
    %v2500 = vld [vmem:[%s10 + $0x50] sm:$0xff]
    %v2501 = vld [vmem:[%s10 + $0x58] sm:$0xff]
    %v2502 = vld [vmem:[%s10 + $0x60] sm:$0xff]
    %v2503 = vld [vmem:[%s10 + $0x68] sm:$0xff]
    %v2504 = vld [vmem:[%s10 + $0x70] sm:$0xff]
    %v2505 = vld [vmem:[%s10 + $0x78] sm:$0xff]
    %v2506 = vld [vmem:[%s10 + $0x80] sm:$0xff]
    %v2507 = vld [vmem:[%s10 + $0x88] sm:$0xff]
    %v2508 = vld [vmem:[%s10 + $0x90] sm:$0xff]
    %v2509 = vld [vmem:[%s10 + $0x98] sm:$0xff]
    %v2510 = vld [vmem:[%s10 + $0xa0] sm:$0xff]
    %v2511 = vld [vmem:[%s10 + $0xa8] sm:$0xff]
    %v2512 = vld [vmem:[%s10 + $0xb0] sm:$0xff]
    %v2513 = vld [vmem:[%s10 + $0xb8] sm:$0xff]
    %v2514 = vld [vmem:[%s10 + $0xc0] sm:$0xff]
    %v2515 = vld [vmem:[%s10 + $0xc8] sm:$0xff]
    %v2516 = vld [vmem:[%s10 + $0xd0] sm:$0xff]
    %v2517 = vld [vmem:[%s10 + $0xd8] sm:$0xff]
    %v2518 = vld [vmem:[%s10 + $0xe0] sm:$0xff]
    %v2519 = vld [vmem:[%s10 + $0xe8] sm:$0xff]
    %v2520 = vld [vmem:[%s10 + $0xf0] sm:$0xff]
    %v2521 = vld [vmem:[%s10 + $0xf8] sm:$0xff]
    %v2522 = vld [vmem:[%s10 + $0x100] sm:$0xff]
    %v2523 = vld [vmem:[%s10 + $0x108] sm:$0xff]
    %v2524 = vld [vmem:[%s10 + $0x110] sm:$0xff]
    %v2525 = vld [vmem:[%s10 + $0x118] sm:$0xff]
    %v2526 = vld [vmem:[%s10 + $0x120] sm:$0xff]
    %v2527 = vld [vmem:[%s10 + $0x128] sm:$0xff]
    %v2528 = vld [vmem:[%s10 + $0x130] sm:$0xff]
    %v2529 = vld [vmem:[%s10 + $0x138] sm:$0xff]
    %v2530 = vld [vmem:[%s10 + $0x140] sm:$0xff]
    %v2531 = vld [vmem:[%s10 + $0x148] sm:$0xff]
    %v2532 = vld [vmem:[%s10 + $0x150] sm:$0xff]
    %v2533 = vld [vmem:[%s10 + $0x158] sm:$0xff]
    %v2534 = vld [vmem:[%s10 + $0x160] sm:$0xff]
    %v2535 = vld [vmem:[%s10 + $0x168] sm:$0xff]
    %v2536 = vld [vmem:[%s10 + $0x170] sm:$0xff]
    %v2537 = vld [vmem:[%s10 + $0x178] sm:$0xff]
    %v2538 = vld [vmem:[%s10 + $0x180] sm:$0xff]
    %v2539 = vld [vmem:[%s10 + $0x188] sm:$0xff]
    %v2540 = vld [vmem:[%s10 + $0x190] sm:$0xff]
    %v2541 = vld [vmem:[%s10 + $0x198] sm:$0xff]
    %v2542 = vld [vmem:[%s10 + $0x1a0] sm:$0xff]
    %v2543 = vld [vmem:[%s10 + $0x1a8] sm:$0xff]
    %v2544 = vld [vmem:[%s10 + $0x1b0] sm:$0xff]
    %v2545 = vld [vmem:[%s10 + $0x1b8] sm:$0xff]
    %v2546 = vld [vmem:[%s10 + $0x1c0] sm:$0xff]
    %v2547 = vld [vmem:[%s10 + $0x1c8] sm:$0xff]
    %v2548 = vld [vmem:[%s10 + $0x1d0] sm:$0xff]
    %v2549 = vld [vmem:[%s10 + $0x1d8] sm:$0xff]
    %v2550 = vld [vmem:[%s10 + $0x1e0] sm:$0xff]
    %v2551 = vld [vmem:[%s10 + $0x1e8] sm:$0xff]
    %v2552 = vld [vmem:[%s10 + $0x1f0] sm:$0xff]
    %v2553 = vld [vmem:[%s10 + $0x1f8] sm:$0xff]
    %v2554 = vld [vmem:[%s11] sm:$0xf]
    %v2556 = vlaneseq
    %v2557 = vshrl.u32 %v2556, 7
    %v2558 = vsub.s32 0, %v2557
    %v2559 = vrot.slane %v2554, %v2558
    %v2560 = vlaneseq
    %v2561 = vshrl.u32 %v2560, 7
    %v2562 = vsub.s32 1, %v2561
    %v2563 = vrot.slane %v2554, %v2562
    %v2564 = vlaneseq
    %v2565 = vshrl.u32 %v2564, 7
    %v2566 = vsub.s32 2, %v2565
    %v2567 = vrot.slane %v2554, %v2566
    %v2568 = vlaneseq
    %v2569 = vshrl.u32 %v2568, 7
    %v2570 = vsub.s32 3, %v2569
    %v2571 = vrot.slane %v2554, %v2570
    %v2640 = vunpack.c.l.b16 %v2490
    %v2641 = vunpack.c.h.b16 %v2490
    %v2642 = vunpack.c.l.b16 %v2491
    %v2643 = vunpack.c.h.b16 %v2491
    %v2644 = vunpack.c.l.b16 %v2492
    %v2645 = vunpack.c.h.b16 %v2492
    %v2646 = vunpack.c.l.b16 %v2493
    %v2647 = vunpack.c.h.b16 %v2493
    %v2648 = vunpack.c.l.b16 %v2494
    %v2649 = vunpack.c.h.b16 %v2494
    %v2650 = vunpack.c.l.b16 %v2495
    %v2651 = vunpack.c.h.b16 %v2495
    %v2652 = vunpack.c.l.b16 %v2496
    %v2653 = vunpack.c.h.b16 %v2496
    %v2654 = vunpack.c.l.b16 %v2497
    %v2655 = vunpack.c.h.b16 %v2497
    %v2656 = vunpack.c.l.b16 %v2498
    %v2657 = vunpack.c.h.b16 %v2498
    %v2658 = vunpack.c.l.b16 %v2499
    %v2659 = vunpack.c.h.b16 %v2499
    %v2660 = vunpack.c.l.b16 %v2500
    %v2661 = vunpack.c.h.b16 %v2500
    %v2662 = vunpack.c.l.b16 %v2501
    %v2663 = vunpack.c.h.b16 %v2501
    %v2664 = vunpack.c.l.b16 %v2502
    %v2665 = vunpack.c.h.b16 %v2502
    %v2666 = vunpack.c.l.b16 %v2503
    %v2667 = vunpack.c.h.b16 %v2503
    %v2668 = vunpack.c.l.b16 %v2504
    %v2669 = vunpack.c.h.b16 %v2504
    %v2670 = vunpack.c.l.b16 %v2505
    %v2671 = vunpack.c.h.b16 %v2505
    %v2672 = vunpack.c.l.b16 %v2506
    %v2673 = vunpack.c.h.b16 %v2506
    %v2674 = vunpack.c.l.b16 %v2507
    %v2675 = vunpack.c.h.b16 %v2507
    %v2676 = vunpack.c.l.b16 %v2508
    %v2677 = vunpack.c.h.b16 %v2508
    %v2678 = vunpack.c.l.b16 %v2509
    %v2679 = vunpack.c.h.b16 %v2509
    %v2680 = vunpack.c.l.b16 %v2510
    %v2681 = vunpack.c.h.b16 %v2510
    %v2682 = vunpack.c.l.b16 %v2511
    %v2683 = vunpack.c.h.b16 %v2511
    %v2684 = vunpack.c.l.b16 %v2512
    %v2685 = vunpack.c.h.b16 %v2512
    %v2686 = vunpack.c.l.b16 %v2513
    %v2687 = vunpack.c.h.b16 %v2513
    %v2688 = vunpack.c.l.b16 %v2514
    %v2689 = vunpack.c.h.b16 %v2514
    %v2690 = vunpack.c.l.b16 %v2515
    %v2691 = vunpack.c.h.b16 %v2515
    %v2692 = vunpack.c.l.b16 %v2516
    %v2693 = vunpack.c.h.b16 %v2516
    %v2694 = vunpack.c.l.b16 %v2517
    %v2695 = vunpack.c.h.b16 %v2517
    %v2696 = vunpack.c.l.b16 %v2518
    %v2697 = vunpack.c.h.b16 %v2518
    %v2698 = vunpack.c.l.b16 %v2519
    %v2699 = vunpack.c.h.b16 %v2519
    %v2700 = vunpack.c.l.b16 %v2520
    %v2701 = vunpack.c.h.b16 %v2520
    %v2702 = vunpack.c.l.b16 %v2521
    %v2703 = vunpack.c.h.b16 %v2521
    %v2704 = vunpack.c.l.b16 %v2522
    %v2705 = vunpack.c.h.b16 %v2522
    %v2706 = vunpack.c.l.b16 %v2523
    %v2707 = vunpack.c.h.b16 %v2523
    %v2708 = vunpack.c.l.b16 %v2524
    %v2709 = vunpack.c.h.b16 %v2524
    %v2710 = vunpack.c.l.b16 %v2525
    %v2711 = vunpack.c.h.b16 %v2525
    %v2712 = vunpack.c.l.b16 %v2526
    %v2713 = vunpack.c.h.b16 %v2526
    %v2714 = vunpack.c.l.b16 %v2527
    %v2715 = vunpack.c.h.b16 %v2527
    %v2716 = vunpack.c.l.b16 %v2528
    %v2717 = vunpack.c.h.b16 %v2528
    %v2718 = vunpack.c.l.b16 %v2529
    %v2719 = vunpack.c.h.b16 %v2529
    %v2720 = vunpack.c.l.b16 %v2530
    %v2721 = vunpack.c.h.b16 %v2530
    %v2722 = vunpack.c.l.b16 %v2531
    %v2723 = vunpack.c.h.b16 %v2531
    %v2724 = vunpack.c.l.b16 %v2532
    %v2725 = vunpack.c.h.b16 %v2532
    %v2726 = vunpack.c.l.b16 %v2533
    %v2727 = vunpack.c.h.b16 %v2533
    %v2728 = vunpack.c.l.b16 %v2534
    %v2729 = vunpack.c.h.b16 %v2534
    %v2730 = vunpack.c.l.b16 %v2535
    %v2731 = vunpack.c.h.b16 %v2535
    %v2732 = vunpack.c.l.b16 %v2536
    %v2733 = vunpack.c.h.b16 %v2536
    %v2734 = vunpack.c.l.b16 %v2537
    %v2735 = vunpack.c.h.b16 %v2537
    %v2736 = vunpack.c.l.b16 %v2538
    %v2737 = vunpack.c.h.b16 %v2538
    %v2738 = vunpack.c.l.b16 %v2539
    %v2739 = vunpack.c.h.b16 %v2539
    %v2740 = vunpack.c.l.b16 %v2540
    %v2741 = vunpack.c.h.b16 %v2540
    %v2742 = vunpack.c.l.b16 %v2541
    %v2743 = vunpack.c.h.b16 %v2541
    %v2744 = vunpack.c.l.b16 %v2542
    %v2745 = vunpack.c.h.b16 %v2542
    %v2746 = vunpack.c.l.b16 %v2543
    %v2747 = vunpack.c.h.b16 %v2543
    %v2748 = vunpack.c.l.b16 %v2544
    %v2749 = vunpack.c.h.b16 %v2544
    %v2750 = vunpack.c.l.b16 %v2545
    %v2751 = vunpack.c.h.b16 %v2545
    %v2752 = vunpack.c.l.b16 %v2546
    %v2753 = vunpack.c.h.b16 %v2546
    %v2754 = vunpack.c.l.b16 %v2547
    %v2755 = vunpack.c.h.b16 %v2547
    %v2756 = vunpack.c.l.b16 %v2548
    %v2757 = vunpack.c.h.b16 %v2548
    %v2758 = vunpack.c.l.b16 %v2549
    %v2759 = vunpack.c.h.b16 %v2549
    %v2760 = vunpack.c.l.b16 %v2550
    %v2761 = vunpack.c.h.b16 %v2550
    %v2762 = vunpack.c.l.b16 %v2551
    %v2763 = vunpack.c.h.b16 %v2551
    %v2764 = vunpack.c.l.b16 %v2552
    %v2765 = vunpack.c.h.b16 %v2552
    %v2766 = vunpack.c.l.b16 %v2553
    %v2767 = vunpack.c.h.b16 %v2553
    %v2768 = vpack.c.b16 %v2644, %v2640
    %v2769 = vpack.c.b16 %v2645, %v2641
    %v2770 = vpack.c.b16 %v2646, %v2642
    %v2771 = vpack.c.b16 %v2647, %v2643
    %v2772 = vpack.c.b16 %v2652, %v2648
    %v2773 = vpack.c.b16 %v2653, %v2649
    %v2774 = vpack.c.b16 %v2654, %v2650
    %v2775 = vpack.c.b16 %v2655, %v2651
    %v2776 = vpack.c.b16 %v2660, %v2656
    %v2777 = vpack.c.b16 %v2661, %v2657
    %v2778 = vpack.c.b16 %v2662, %v2658
    %v2779 = vpack.c.b16 %v2663, %v2659
    %v2780 = vpack.c.b16 %v2668, %v2664
    %v2781 = vpack.c.b16 %v2669, %v2665
    %v2782 = vpack.c.b16 %v2670, %v2666
    %v2783 = vpack.c.b16 %v2671, %v2667
    %v2784 = vpack.c.b16 %v2676, %v2672
    %v2785 = vpack.c.b16 %v2677, %v2673
    %v2786 = vpack.c.b16 %v2678, %v2674
    %v2787 = vpack.c.b16 %v2679, %v2675
    %v2788 = vpack.c.b16 %v2684, %v2680
    %v2789 = vpack.c.b16 %v2685, %v2681
    %v2790 = vpack.c.b16 %v2686, %v2682
    %v2791 = vpack.c.b16 %v2687, %v2683
    %v2792 = vpack.c.b16 %v2692, %v2688
    %v2793 = vpack.c.b16 %v2693, %v2689
    %v2794 = vpack.c.b16 %v2694, %v2690
    %v2795 = vpack.c.b16 %v2695, %v2691
    %v2796 = vpack.c.b16 %v2700, %v2696
    %v2797 = vpack.c.b16 %v2701, %v2697
    %v2798 = vpack.c.b16 %v2702, %v2698
    %v2799 = vpack.c.b16 %v2703, %v2699
    %v2800 = vpack.c.b16 %v2708, %v2704
    %v2801 = vpack.c.b16 %v2709, %v2705
    %v2802 = vpack.c.b16 %v2710, %v2706
    %v2803 = vpack.c.b16 %v2711, %v2707
    %v2804 = vpack.c.b16 %v2716, %v2712
    %v2805 = vpack.c.b16 %v2717, %v2713
    %v2806 = vpack.c.b16 %v2718, %v2714
    %v2807 = vpack.c.b16 %v2719, %v2715
    %v2808 = vpack.c.b16 %v2724, %v2720
    %v2809 = vpack.c.b16 %v2725, %v2721
    %v2810 = vpack.c.b16 %v2726, %v2722
    %v2811 = vpack.c.b16 %v2727, %v2723
    %v2812 = vpack.c.b16 %v2732, %v2728
    %v2813 = vpack.c.b16 %v2733, %v2729
    %v2814 = vpack.c.b16 %v2734, %v2730
    %v2815 = vpack.c.b16 %v2735, %v2731
    %v2816 = vpack.c.b16 %v2740, %v2736
    %v2817 = vpack.c.b16 %v2741, %v2737
    %v2818 = vpack.c.b16 %v2742, %v2738
    %v2819 = vpack.c.b16 %v2743, %v2739
    %v2820 = vpack.c.b16 %v2748, %v2744
    %v2821 = vpack.c.b16 %v2749, %v2745
    %v2822 = vpack.c.b16 %v2750, %v2746
    %v2823 = vpack.c.b16 %v2751, %v2747
    %v2824 = vpack.c.b16 %v2756, %v2752
    %v2825 = vpack.c.b16 %v2757, %v2753
    %v2826 = vpack.c.b16 %v2758, %v2754
    %v2827 = vpack.c.b16 %v2759, %v2755
    %v2828 = vpack.c.b16 %v2764, %v2760
    %v2829 = vpack.c.b16 %v2765, %v2761
    %v2830 = vpack.c.b16 %v2766, %v2762
    %v2831 = vpack.c.b16 %v2767, %v2763
    %2896 = vmatprep.subr.bf16.mxu0 %v2769
    %2897 = vmatpush1.bf16.msra.mxu0 %v2768
    %2898 = vmatprep.subr.bf16.mxu0 %v2773
    %2899 = vmatpush1.bf16.msra.mxu0 %v2772
    %2900 = vmatprep.subr.bf16.mxu0 %v2777
    %2901 = vmatpush1.bf16.msra.mxu0 %v2776
    %2902 = vmatprep.subr.bf16.mxu0 %v2781
    %2903 = vmatpush1.bf16.msra.mxu0 %v2780
    %2904 = vmatprep.subr.bf16.mxu0 %v2785
    %2905 = vmatpush1.bf16.msra.mxu0 %v2784
    %2906 = vmatprep.subr.bf16.mxu0 %v2789
    %2907 = vmatpush1.bf16.msra.mxu0 %v2788
    %2908 = vmatprep.subr.bf16.mxu0 %v2793
    %2909 = vmatpush1.bf16.msra.mxu0 %v2792
    %2910 = vmatprep.subr.bf16.mxu0 %v2797
    %2911 = vmatpush1.bf16.msra.mxu0 %v2796
    %2912 = vmatprep.subr.bf16.mxu0 %v2801
    %2913 = vmatpush1.bf16.msra.mxu0 %v2800
    %2914 = vmatprep.subr.bf16.mxu0 %v2805
    %2915 = vmatpush1.bf16.msra.mxu0 %v2804
    %2916 = vmatprep.subr.bf16.mxu0 %v2809
    %2917 = vmatpush1.bf16.msra.mxu0 %v2808
    %2918 = vmatprep.subr.bf16.mxu0 %v2813
    %2919 = vmatpush1.bf16.msra.mxu0 %v2812
    %2920 = vmatprep.subr.bf16.mxu0 %v2817
    %2921 = vmatpush1.bf16.msra.mxu0 %v2816
    %2922 = vmatprep.subr.bf16.mxu0 %v2821
    %2923 = vmatpush1.bf16.msra.mxu0 %v2820
    %2924 = vmatprep.subr.bf16.mxu0 %v2825
    %2925 = vmatpush1.bf16.msra.mxu0 %v2824
    %2926 = vmatprep.subr.bf16.mxu0 %v2829
    %2927 = vmatpush1.bf16.msra.mxu0 %v2828
    %2928 = vmatprep.mubr.bf16.mxu0 %v2489
    %2929 = vmatmul.mubr.bf16.gmra.mrb[0].mxu0 %v2488
    %v2930 = vpop.f32.mrb[0].mxu0
    %v2931 = vadd.f32 %v2559, %v2930
    %v2932 = vpop.f32.mrb[0].mxu0
    %v2933 = vadd.f32 %v2563, %v2932
    %v2934 = vpop.f32.mrb[0].mxu0
    %v2935 = vpop.f32.mrb[0].mxu0
    %2936 = vdwg.mxu0
    %2937 = vmatprep.subr.bf16.mxu0 %v2771
    %2938 = vmatpush1.bf16.msra.mxu0 %v2770
    %2939 = vmatprep.subr.bf16.mxu0 %v2775
    %2940 = vmatpush1.bf16.msra.mxu0 %v2774
    %2941 = vmatprep.subr.bf16.mxu0 %v2779
    %2942 = vmatpush1.bf16.msra.mxu0 %v2778
    %2943 = vmatprep.subr.bf16.mxu0 %v2783
    %2944 = vmatpush1.bf16.msra.mxu0 %v2782
    %2945 = vmatprep.subr.bf16.mxu0 %v2787
    %2946 = vmatpush1.bf16.msra.mxu0 %v2786
    %2947 = vmatprep.subr.bf16.mxu0 %v2791
    %2948 = vmatpush1.bf16.msra.mxu0 %v2790
    %2949 = vmatprep.subr.bf16.mxu0 %v2795
    %2950 = vmatpush1.bf16.msra.mxu0 %v2794
    %2951 = vmatprep.subr.bf16.mxu0 %v2799
    %2952 = vmatpush1.bf16.msra.mxu0 %v2798
    %2953 = vmatprep.subr.bf16.mxu0 %v2803
    %2954 = vmatpush1.bf16.msra.mxu0 %v2802
    %2955 = vmatprep.subr.bf16.mxu0 %v2807
    %2956 = vmatpush1.bf16.msra.mxu0 %v2806
    %2957 = vmatprep.subr.bf16.mxu0 %v2811
    %2958 = vmatpush1.bf16.msra.mxu0 %v2810
    %2959 = vmatprep.subr.bf16.mxu0 %v2815
    %2960 = vmatpush1.bf16.msra.mxu0 %v2814
    %2961 = vmatprep.subr.bf16.mxu0 %v2819
    %2962 = vmatpush1.bf16.msra.mxu0 %v2818
    %2963 = vmatprep.subr.bf16.mxu0 %v2823
    %2964 = vmatpush1.bf16.msra.mxu0 %v2822
    %2965 = vmatprep.subr.bf16.mxu0 %v2827
    %2966 = vmatpush1.bf16.msra.mxu0 %v2826
    %2967 = vmatprep.subr.bf16.mxu0 %v2831
    %2968 = vmatpush1.bf16.msra.mxu0 %v2830
    %2969 = vmatprep.mubr.bf16.mxu0 %v2489
    %2970 = vmatmul.mubr.bf16.gmra.mrb[0].mxu0 %v2488
    %v2971 = vpop.f32.mrb[0].mxu0
    %v2972 = vadd.f32 %v2567, %v2971
    %v2973 = vpop.f32.mrb[0].mxu0
    %v2974 = vadd.f32 %v2571, %v2973
    %v2975 = vpop.f32.mrb[0].mxu0
    %v2976 = vpop.f32.mrb[0].mxu0
    %2977 = vdwg.mxu0
    %v2978 = vmax.f32 %v2931, 0.0
    %v2979 = vmax.f32 %v2933, 0.0
    %v2980 = vmax.f32 %v2972, 0.0
    %v2981 = vmax.f32 %v2974, 0.0
    %v2982 = vpack.c.bf16 %v2978, %v2978
    %v2983 = vpack.c.bf16 %v2979, %v2979
    %v2984 = vpack.c.bf16 %v2980, %v2980
    %v2985 = vpack.c.bf16 %v2981, %v2981
    %v2986 = vld [vmem:[%s12] sm:$0xff]
    %v2987 = vld [vmem:[%s12 + $0x8] sm:$0xff]
    %v2988 = vld [vmem:[%s12 + $0x10] sm:$0xff]
    %v2989 = vld [vmem:[%s12 + $0x18] sm:$0xf]
    %v2990 = vld [vmem:[%s12 + $0x1c] sm:$0xff]
    %v2991 = vld [vmem:[%s12 + $0x24] sm:$0xff]
    %v2992 = vld [vmem:[%s12 + $0x2c] sm:$0xff]
    %v2993 = vld [vmem:[%s12 + $0x34] sm:$0xf]
    %v2994 = vld [vmem:[%s12 + $0x38] sm:$0xff]
    %v2995 = vld [vmem:[%s12 + $0x40] sm:$0xff]
    %v2996 = vld [vmem:[%s12 + $0x48] sm:$0xff]
    %v2997 = vld [vmem:[%s12 + $0x50] sm:$0xf]
    %v2998 = vld [vmem:[%s12 + $0x54] sm:$0xff]
    %v2999 = vld [vmem:[%s12 + $0x5c] sm:$0xff]
    %v3000 = vld [vmem:[%s12 + $0x64] sm:$0xff]
    %v3001 = vld [vmem:[%s12 + $0x6c] sm:$0xf]
    %v3002 = vld [vmem:[%s12 + $0x70] sm:$0xff]
    %v3003 = vld [vmem:[%s12 + $0x78] sm:$0xff]
    %v3004 = vld [vmem:[%s12 + $0x80] sm:$0xff]
    %v3005 = vld [vmem:[%s12 + $0x88] sm:$0xf]
    %v3006 = vld [vmem:[%s12 + $0x8c] sm:$0xff]
    %v3007 = vld [vmem:[%s12 + $0x94] sm:$0xff]
    %v3008 = vld [vmem:[%s12 + $0x9c] sm:$0xff]
    %v3009 = vld [vmem:[%s12 + $0xa4] sm:$0xf]
    %v3010 = vld [vmem:[%s12 + $0xa8] sm:$0xff]
    %v3011 = vld [vmem:[%s12 + $0xb0] sm:$0xff]
    %v3012 = vld [vmem:[%s12 + $0xb8] sm:$0xff]
    %v3013 = vld [vmem:[%s12 + $0xc0] sm:$0xf]
    %v3014 = vld [vmem:[%s12 + $0xc4] sm:$0xff]
    %v3015 = vld [vmem:[%s12 + $0xcc] sm:$0xff]
    %v3016 = vld [vmem:[%s12 + $0xd4] sm:$0xff]
    %v3017 = vld [vmem:[%s12 + $0xdc] sm:$0xf]
    %v3018 = vld [vmem:[%s12 + $0xe0] sm:$0xff]
    %v3019 = vld [vmem:[%s12 + $0xe8] sm:$0xff]
    %v3020 = vld [vmem:[%s12 + $0xf0] sm:$0xff]
    %v3021 = vld [vmem:[%s12 + $0xf8] sm:$0xf]
    %v3022 = vld [vmem:[%s12 + $0xfc] sm:$0xff]
    %v3023 = vld [vmem:[%s12 + $0x104] sm:$0xff]
    %v3024 = vld [vmem:[%s12 + $0x10c] sm:$0xff]
    %v3025 = vld [vmem:[%s12 + $0x114] sm:$0xf]
    %v3026 = vld [vmem:[%s12 + $0x118] sm:$0xff]
    %v3027 = vld [vmem:[%s12 + $0x120] sm:$0xff]
    %v3028 = vld [vmem:[%s12 + $0x128] sm:$0xff]
    %v3029 = vld [vmem:[%s12 + $0x130] sm:$0xf]
    %v3030 = vld [vmem:[%s12 + $0x134] sm:$0xff]
    %v3031 = vld [vmem:[%s12 + $0x13c] sm:$0xff]
    %v3032 = vld [vmem:[%s12 + $0x144] sm:$0xff]
    %v3033 = vld [vmem:[%s12 + $0x14c] sm:$0xf]
    %v3034 = vld [vmem:[%s12 + $0x150] sm:$0xff]
    %v3035 = vld [vmem:[%s12 + $0x158] sm:$0xff]
    %v3036 = vld [vmem:[%s12 + $0x160] sm:$0xff]
    %v3037 = vld [vmem:[%s12 + $0x168] sm:$0xf]
    %v3038 = vld [vmem:[%s12 + $0x16c] sm:$0xff]
    %v3039 = vld [vmem:[%s12 + $0x174] sm:$0xff]
    %v3040 = vld [vmem:[%s12 + $0x17c] sm:$0xff]
    %v3041 = vld [vmem:[%s12 + $0x184] sm:$0xf]
    %v3042 = vld [vmem:[%s12 + $0x188] sm:$0xff]
    %v3043 = vld [vmem:[%s12 + $0x190] sm:$0xff]
    %v3044 = vld [vmem:[%s12 + $0x198] sm:$0xff]
    %v3045 = vld [vmem:[%s12 + $0x1a0] sm:$0xf]
    %v3046 = vld [vmem:[%s12 + $0x1a4] sm:$0xff]
    %v3047 = vld [vmem:[%s12 + $0x1ac] sm:$0xff]
    %v3048 = vld [vmem:[%s12 + $0x1b4] sm:$0xff]
    %v3049 = vld [vmem:[%s12 + $0x1bc] sm:$0xf]
    %v3050 = vld [vmem:[%s12 + $0x1c0] sm:$0xff]
    %v3051 = vld [vmem:[%s12 + $0x1c8] sm:$0xff]
    %v3052 = vld [vmem:[%s12 + $0x1d0] sm:$0xff]
    %v3053 = vld [vmem:[%s12 + $0x1d8] sm:$0xf]
    %v3054 = vld [vmem:[%s12 + $0x1dc] sm:$0xff]
    %v3055 = vld [vmem:[%s12 + $0x1e4] sm:$0xff]
    %v3056 = vld [vmem:[%s12 + $0x1ec] sm:$0xff]
    %v3057 = vld [vmem:[%s12 + $0x1f4] sm:$0xf]
    %v3058 = vld [vmem:[%s12 + $0x1f8] sm:$0xff]
    %v3059 = vld [vmem:[%s12 + $0x200] sm:$0xff]
    %v3060 = vld [vmem:[%s12 + $0x208] sm:$0xff]
    %v3061 = vld [vmem:[%s12 + $0x210] sm:$0xf]
    %v3062 = vld [vmem:[%s12 + $0x214] sm:$0xff]
    %v3063 = vld [vmem:[%s12 + $0x21c] sm:$0xff]
    %v3064 = vld [vmem:[%s12 + $0x224] sm:$0xff]
    %v3065 = vld [vmem:[%s12 + $0x22c] sm:$0xf]
    %v3066 = vld [vmem:[%s12 + $0x230] sm:$0xff]
    %v3067 = vld [vmem:[%s12 + $0x238] sm:$0xff]
    %v3068 = vld [vmem:[%s12 + $0x240] sm:$0xff]
    %v3069 = vld [vmem:[%s12 + $0x248] sm:$0xf]
    %v3070 = vld [vmem:[%s12 + $0x24c] sm:$0xff]
    %v3071 = vld [vmem:[%s12 + $0x254] sm:$0xff]
    %v3072 = vld [vmem:[%s12 + $0x25c] sm:$0xff]
    %v3073 = vld [vmem:[%s12 + $0x264] sm:$0xf]
    %v3074 = vld [vmem:[%s12 + $0x268] sm:$0xff]
    %v3075 = vld [vmem:[%s12 + $0x270] sm:$0xff]
    %v3076 = vld [vmem:[%s12 + $0x278] sm:$0xff]
    %v3077 = vld [vmem:[%s12 + $0x280] sm:$0xf]
    %v3078 = vld [vmem:[%s12 + $0x284] sm:$0xff]
    %v3079 = vld [vmem:[%s12 + $0x28c] sm:$0xff]
    %v3080 = vld [vmem:[%s12 + $0x294] sm:$0xff]
    %v3081 = vld [vmem:[%s12 + $0x29c] sm:$0xf]
    %v3082 = vld [vmem:[%s12 + $0x2a0] sm:$0xff]
    %v3083 = vld [vmem:[%s12 + $0x2a8] sm:$0xff]
    %v3084 = vld [vmem:[%s12 + $0x2b0] sm:$0xff]
    %v3085 = vld [vmem:[%s12 + $0x2b8] sm:$0xf]
    %v3086 = vld [vmem:[%s12 + $0x2bc] sm:$0xff]
    %v3087 = vld [vmem:[%s12 + $0x2c4] sm:$0xff]
    %v3088 = vld [vmem:[%s12 + $0x2cc] sm:$0xff]
    %v3089 = vld [vmem:[%s12 + $0x2d4] sm:$0xf]
    %v3090 = vld [vmem:[%s12 + $0x2d8] sm:$0xff]
    %v3091 = vld [vmem:[%s12 + $0x2e0] sm:$0xff]
    %v3092 = vld [vmem:[%s12 + $0x2e8] sm:$0xff]
    %v3093 = vld [vmem:[%s12 + $0x2f0] sm:$0xf]
    %v3094 = vld [vmem:[%s12 + $0x2f4] sm:$0xff]
    %v3095 = vld [vmem:[%s12 + $0x2fc] sm:$0xff]
    %v3096 = vld [vmem:[%s12 + $0x304] sm:$0xff]
    %v3097 = vld [vmem:[%s12 + $0x30c] sm:$0xf]
    %v3098 = vld [vmem:[%s12 + $0x310] sm:$0xff]
    %v3099 = vld [vmem:[%s12 + $0x318] sm:$0xff]
    %v3100 = vld [vmem:[%s12 + $0x320] sm:$0xff]
    %v3101 = vld [vmem:[%s12 + $0x328] sm:$0xf]
    %v3102 = vld [vmem:[%s12 + $0x32c] sm:$0xff]
    %v3103 = vld [vmem:[%s12 + $0x334] sm:$0xff]
    %v3104 = vld [vmem:[%s12 + $0x33c] sm:$0xff]
    %v3105 = vld [vmem:[%s12 + $0x344] sm:$0xf]
    %v3106 = vld [vmem:[%s12 + $0x348] sm:$0xff]
    %v3107 = vld [vmem:[%s12 + $0x350] sm:$0xff]
    %v3108 = vld [vmem:[%s12 + $0x358] sm:$0xff]
    %v3109 = vld [vmem:[%s12 + $0x360] sm:$0xf]
    %v3110 = vld [vmem:[%s12 + $0x364] sm:$0xff]
    %v3111 = vld [vmem:[%s12 + $0x36c] sm:$0xff]
    %v3112 = vld [vmem:[%s12 + $0x374] sm:$0xff]
    %v3113 = vld [vmem:[%s12 + $0x37c] sm:$0xf]
    %v3114 = vld [vmem:[%s12 + $0x380] sm:$0xff]
    %v3115 = vld [vmem:[%s12 + $0x388] sm:$0xff]
    %v3116 = vld [vmem:[%s12 + $0x390] sm:$0xff]
    %v3117 = vld [vmem:[%s12 + $0x398] sm:$0xf]
    %v3118 = vld [vmem:[%s12 + $0x39c] sm:$0xff]
    %v3119 = vld [vmem:[%s12 + $0x3a4] sm:$0xff]
    %v3120 = vld [vmem:[%s12 + $0x3ac] sm:$0xff]
    %v3121 = vld [vmem:[%s12 + $0x3b4] sm:$0xf]
    %v3122 = vld [vmem:[%s12 + $0x3b8] sm:$0xff]
    %v3123 = vld [vmem:[%s12 + $0x3c0] sm:$0xff]
    %v3124 = vld [vmem:[%s12 + $0x3c8] sm:$0xff]
    %v3125 = vld [vmem:[%s12 + $0x3d0] sm:$0xf]
    %v3126 = vld [vmem:[%s12 + $0x3d4] sm:$0xff]
    %v3127 = vld [vmem:[%s12 + $0x3dc] sm:$0xff]
    %v3128 = vld [vmem:[%s12 + $0x3e4] sm:$0xff]
    %v3129 = vld [vmem:[%s12 + $0x3ec] sm:$0xf]
    %v3130 = vld [vmem:[%s12 + $0x3f0] sm:$0xff]
    %v3131 = vld [vmem:[%s12 + $0x3f8] sm:$0xff]
    %v3132 = vld [vmem:[%s12 + $0x400] sm:$0xff]
    %v3133 = vld [vmem:[%s12 + $0x408] sm:$0xf]
    %v3134 = vld [vmem:[%s12 + $0x40c] sm:$0xff]
    %v3135 = vld [vmem:[%s12 + $0x414] sm:$0xff]
    %v3136 = vld [vmem:[%s12 + $0x41c] sm:$0xff]
    %v3137 = vld [vmem:[%s12 + $0x424] sm:$0xf]
    %v3138 = vld [vmem:[%s12 + $0x428] sm:$0xff]
    %v3139 = vld [vmem:[%s12 + $0x430] sm:$0xff]
    %v3140 = vld [vmem:[%s12 + $0x438] sm:$0xff]
    %v3141 = vld [vmem:[%s12 + $0x440] sm:$0xf]
    %v3142 = vld [vmem:[%s12 + $0x444] sm:$0xff]
    %v3143 = vld [vmem:[%s12 + $0x44c] sm:$0xff]
    %v3144 = vld [vmem:[%s12 + $0x454] sm:$0xff]
    %v3145 = vld [vmem:[%s12 + $0x45c] sm:$0xf]
    %v3146 = vld [vmem:[%s12 + $0x460] sm:$0xff]
    %v3147 = vld [vmem:[%s12 + $0x468] sm:$0xff]
    %v3148 = vld [vmem:[%s12 + $0x470] sm:$0xff]
    %v3149 = vld [vmem:[%s12 + $0x478] sm:$0xf]
    %v3150 = vld [vmem:[%s12 + $0x47c] sm:$0xff]
    %v3151 = vld [vmem:[%s12 + $0x484] sm:$0xff]
    %v3152 = vld [vmem:[%s12 + $0x48c] sm:$0xff]
    %v3153 = vld [vmem:[%s12 + $0x494] sm:$0xf]
    %v3154 = vld [vmem:[%s12 + $0x498] sm:$0xff]
    %v3155 = vld [vmem:[%s12 + $0x4a0] sm:$0xff]
    %v3156 = vld [vmem:[%s12 + $0x4a8] sm:$0xff]
    %v3157 = vld [vmem:[%s12 + $0x4b0] sm:$0xf]
    %v3158 = vld [vmem:[%s12 + $0x4b4] sm:$0xff]
    %v3159 = vld [vmem:[%s12 + $0x4bc] sm:$0xff]
    %v3160 = vld [vmem:[%s12 + $0x4c4] sm:$0xff]
    %v3161 = vld [vmem:[%s12 + $0x4cc] sm:$0xf]
    %v3162 = vld [vmem:[%s12 + $0x4d0] sm:$0xff]
    %v3163 = vld [vmem:[%s12 + $0x4d8] sm:$0xff]
    %v3164 = vld [vmem:[%s12 + $0x4e0] sm:$0xff]
    %v3165 = vld [vmem:[%s12 + $0x4e8] sm:$0xf]
    %v3166 = vld [vmem:[%s12 + $0x4ec] sm:$0xff]
    %v3167 = vld [vmem:[%s12 + $0x4f4] sm:$0xff]
    %v3168 = vld [vmem:[%s12 + $0x4fc] sm:$0xff]
    %v3169 = vld [vmem:[%s12 + $0x504] sm:$0xf]
    %v3170 = vld [vmem:[%s12 + $0x508] sm:$0xff]
    %v3171 = vld [vmem:[%s12 + $0x510] sm:$0xff]
    %v3172 = vld [vmem:[%s12 + $0x518] sm:$0xff]
    %v3173 = vld [vmem:[%s12 + $0x520] sm:$0xf]
    %v3174 = vld [vmem:[%s12 + $0x524] sm:$0xff]
    %v3175 = vld [vmem:[%s12 + $0x52c] sm:$0xff]
    %v3176 = vld [vmem:[%s12 + $0x534] sm:$0xff]
    %v3177 = vld [vmem:[%s12 + $0x53c] sm:$0xf]
    %v3178 = vld [vmem:[%s12 + $0x540] sm:$0xff]
    %v3179 = vld [vmem:[%s12 + $0x548] sm:$0xff]
    %v3180 = vld [vmem:[%s12 + $0x550] sm:$0xff]
    %v3181 = vld [vmem:[%s12 + $0x558] sm:$0xf]
    %v3182 = vld [vmem:[%s12 + $0x55c] sm:$0xff]
    %v3183 = vld [vmem:[%s12 + $0x564] sm:$0xff]
    %v3184 = vld [vmem:[%s12 + $0x56c] sm:$0xff]
    %v3185 = vld [vmem:[%s12 + $0x574] sm:$0xf]
    %v3186 = vld [vmem:[%s12 + $0x578] sm:$0xff]
    %v3187 = vld [vmem:[%s12 + $0x580] sm:$0xff]
    %v3188 = vld [vmem:[%s12 + $0x588] sm:$0xff]
    %v3189 = vld [vmem:[%s12 + $0x590] sm:$0xf]
    %v3190 = vld [vmem:[%s12 + $0x594] sm:$0xff]
    %v3191 = vld [vmem:[%s12 + $0x59c] sm:$0xff]
    %v3192 = vld [vmem:[%s12 + $0x5a4] sm:$0xff]
    %v3193 = vld [vmem:[%s12 + $0x5ac] sm:$0xf]
    %v3194 = vld [vmem:[%s12 + $0x5b0] sm:$0xff]
    %v3195 = vld [vmem:[%s12 + $0x5b8] sm:$0xff]
    %v3196 = vld [vmem:[%s12 + $0x5c0] sm:$0xff]
    %v3197 = vld [vmem:[%s12 + $0x5c8] sm:$0xf]
    %v3198 = vld [vmem:[%s12 + $0x5cc] sm:$0xff]
    %v3199 = vld [vmem:[%s12 + $0x5d4] sm:$0xff]
    %v3200 = vld [vmem:[%s12 + $0x5dc] sm:$0xff]
    %v3201 = vld [vmem:[%s12 + $0x5e4] sm:$0xf]
    %v3202 = vld [vmem:[%s12 + $0x5e8] sm:$0xff]
    %v3203 = vld [vmem:[%s12 + $0x5f0] sm:$0xff]
    %v3204 = vld [vmem:[%s12 + $0x5f8] sm:$0xff]
    %v3205 = vld [vmem:[%s12 + $0x600] sm:$0xf]
    %v3206 = vld [vmem:[%s12 + $0x604] sm:$0xff]
    %v3207 = vld [vmem:[%s12 + $0x60c] sm:$0xff]
    %v3208 = vld [vmem:[%s12 + $0x614] sm:$0xff]
    %v3209 = vld [vmem:[%s12 + $0x61c] sm:$0xf]
    %v3210 = vld [vmem:[%s12 + $0x620] sm:$0xff]
    %v3211 = vld [vmem:[%s12 + $0x628] sm:$0xff]
    %v3212 = vld [vmem:[%s12 + $0x630] sm:$0xff]
    %v3213 = vld [vmem:[%s12 + $0x638] sm:$0xf]
    %v3214 = vld [vmem:[%s12 + $0x63c] sm:$0xff]
    %v3215 = vld [vmem:[%s12 + $0x644] sm:$0xff]
    %v3216 = vld [vmem:[%s12 + $0x64c] sm:$0xff]
    %v3217 = vld [vmem:[%s12 + $0x654] sm:$0xf]
    %v3218 = vld [vmem:[%s12 + $0x658] sm:$0xff]
    %v3219 = vld [vmem:[%s12 + $0x660] sm:$0xff]
    %v3220 = vld [vmem:[%s12 + $0x668] sm:$0xff]
    %v3221 = vld [vmem:[%s12 + $0x670] sm:$0xf]
    %v3222 = vld [vmem:[%s12 + $0x674] sm:$0xff]
    %v3223 = vld [vmem:[%s12 + $0x67c] sm:$0xff]
    %v3224 = vld [vmem:[%s12 + $0x684] sm:$0xff]
    %v3225 = vld [vmem:[%s12 + $0x68c] sm:$0xf]
    %v3226 = vld [vmem:[%s12 + $0x690] sm:$0xff]
    %v3227 = vld [vmem:[%s12 + $0x698] sm:$0xff]
    %v3228 = vld [vmem:[%s12 + $0x6a0] sm:$0xff]
    %v3229 = vld [vmem:[%s12 + $0x6a8] sm:$0xf]
    %v3230 = vld [vmem:[%s12 + $0x6ac] sm:$0xff]
    %v3231 = vld [vmem:[%s12 + $0x6b4] sm:$0xff]
    %v3232 = vld [vmem:[%s12 + $0x6bc] sm:$0xff]
    %v3233 = vld [vmem:[%s12 + $0x6c4] sm:$0xf]
    %v3234 = vld [vmem:[%s12 + $0x6c8] sm:$0xff]
    %v3235 = vld [vmem:[%s12 + $0x6d0] sm:$0xff]
    %v3236 = vld [vmem:[%s12 + $0x6d8] sm:$0xff]
    %v3237 = vld [vmem:[%s12 + $0x6e0] sm:$0xf]
    %v3238 = vld [vmem:[%s12 + $0x6e4] sm:$0xff]
    %v3239 = vld [vmem:[%s12 + $0x6ec] sm:$0xff]
    %v3240 = vld [vmem:[%s12 + $0x6f4] sm:$0xff]
    %v3241 = vld [vmem:[%s12 + $0x6fc] sm:$0xf]
    %v3242 = vld [vmem:[%s13] sm:$0x7f]
    %v3244 = vlaneseq
    %v3245 = vshrl.u32 %v3244, 7
    %v3246 = vsub.s32 0, %v3245
    %v3247 = vrot.slane %v3242, %v3246
    %v3248 = vlaneseq
    %v3249 = vshrl.u32 %v3248, 7
    %v3250 = vsub.s32 1, %v3249
    %v3251 = vrot.slane %v3242, %v3250
    %v3252 = vlaneseq
    %v3253 = vshrl.u32 %v3252, 7
    %v3254 = vsub.s32 2, %v3253
    %v3255 = vrot.slane %v3242, %v3254
    %v3256 = vlaneseq
    %v3257 = vshrl.u32 %v3256, 7
    %v3258 = vsub.s32 3, %v3257
    %v3259 = vrot.slane %v3242, %v3258
    %v3260 = vlaneseq
    %v3261 = vshrl.u32 %v3260, 7
    %v3262 = vsub.s32 4, %v3261
    %v3263 = vrot.slane %v3242, %v3262
    %v3264 = vlaneseq
    %v3265 = vshrl.u32 %v3264, 7
    %v3266 = vsub.s32 5, %v3265
    %v3267 = vrot.slane %v3242, %v3266
    %v3268 = vlaneseq
    %v3269 = vshrl.u32 %v3268, 7
    %v3270 = vsub.s32 6, %v3269
    %v3271 = vrot.slane %v3242, %v3270
    %v3535 = vunpack.c.l.b16 %v2986
    %v3536 = vunpack.c.h.b16 %v2986
    %v3537 = vunpack.c.l.b16 %v2987
    %v3538 = vunpack.c.h.b16 %v2987
    %v3539 = vunpack.c.l.b16 %v2988
    %v3540 = vunpack.c.h.b16 %v2988
    %v3541 = vunpack.c.l.b16 %v2989
    %v3542 = vunpack.c.l.b16 %v2990
    %v3543 = vunpack.c.h.b16 %v2990
    %v3544 = vunpack.c.l.b16 %v2991
    %v3545 = vunpack.c.h.b16 %v2991
    %v3546 = vunpack.c.l.b16 %v2992
    %v3547 = vunpack.c.h.b16 %v2992
    %v3548 = vunpack.c.l.b16 %v2993
    %v3549 = vunpack.c.l.b16 %v2994
    %v3550 = vunpack.c.h.b16 %v2994
    %v3551 = vunpack.c.l.b16 %v2995
    %v3552 = vunpack.c.h.b16 %v2995
    %v3553 = vunpack.c.l.b16 %v2996
    %v3554 = vunpack.c.h.b16 %v2996
    %v3555 = vunpack.c.l.b16 %v2997
    %v3556 = vunpack.c.l.b16 %v2998
    %v3557 = vunpack.c.h.b16 %v2998
    %v3558 = vunpack.c.l.b16 %v2999
    %v3559 = vunpack.c.h.b16 %v2999
    %v3560 = vunpack.c.l.b16 %v3000
    %v3561 = vunpack.c.h.b16 %v3000
    %v3562 = vunpack.c.l.b16 %v3001
    %v3563 = vunpack.c.l.b16 %v3002
    %v3564 = vunpack.c.h.b16 %v3002
    %v3565 = vunpack.c.l.b16 %v3003
    %v3566 = vunpack.c.h.b16 %v3003
    %v3567 = vunpack.c.l.b16 %v3004
    %v3568 = vunpack.c.h.b16 %v3004
    %v3569 = vunpack.c.l.b16 %v3005
    %v3570 = vunpack.c.l.b16 %v3006
    %v3571 = vunpack.c.h.b16 %v3006
    %v3572 = vunpack.c.l.b16 %v3007
    %v3573 = vunpack.c.h.b16 %v3007
    %v3574 = vunpack.c.l.b16 %v3008
    %v3575 = vunpack.c.h.b16 %v3008
    %v3576 = vunpack.c.l.b16 %v3009
    %v3577 = vunpack.c.l.b16 %v3010
    %v3578 = vunpack.c.h.b16 %v3010
    %v3579 = vunpack.c.l.b16 %v3011
    %v3580 = vunpack.c.h.b16 %v3011
    %v3581 = vunpack.c.l.b16 %v3012
    %v3582 = vunpack.c.h.b16 %v3012
    %v3583 = vunpack.c.l.b16 %v3013
    %v3584 = vunpack.c.l.b16 %v3014
    %v3585 = vunpack.c.h.b16 %v3014
    %v3586 = vunpack.c.l.b16 %v3015
    %v3587 = vunpack.c.h.b16 %v3015
    %v3588 = vunpack.c.l.b16 %v3016
    %v3589 = vunpack.c.h.b16 %v3016
    %v3590 = vunpack.c.l.b16 %v3017
    %v3591 = vunpack.c.l.b16 %v3018
    %v3592 = vunpack.c.h.b16 %v3018
    %v3593 = vunpack.c.l.b16 %v3019
    %v3594 = vunpack.c.h.b16 %v3019
    %v3595 = vunpack.c.l.b16 %v3020
    %v3596 = vunpack.c.h.b16 %v3020
    %v3597 = vunpack.c.l.b16 %v3021
    %v3598 = vunpack.c.l.b16 %v3022
    %v3599 = vunpack.c.h.b16 %v3022
    %v3600 = vunpack.c.l.b16 %v3023
    %v3601 = vunpack.c.h.b16 %v3023
    %v3602 = vunpack.c.l.b16 %v3024
    %v3603 = vunpack.c.h.b16 %v3024
    %v3604 = vunpack.c.l.b16 %v3025
    %v3605 = vunpack.c.l.b16 %v3026
    %v3606 = vunpack.c.h.b16 %v3026
    %v3607 = vunpack.c.l.b16 %v3027
    %v3608 = vunpack.c.h.b16 %v3027
    %v3609 = vunpack.c.l.b16 %v3028
    %v3610 = vunpack.c.h.b16 %v3028
    %v3611 = vunpack.c.l.b16 %v3029
    %v3612 = vunpack.c.l.b16 %v3030
    %v3613 = vunpack.c.h.b16 %v3030
    %v3614 = vunpack.c.l.b16 %v3031
    %v3615 = vunpack.c.h.b16 %v3031
    %v3616 = vunpack.c.l.b16 %v3032
    %v3617 = vunpack.c.h.b16 %v3032
    %v3618 = vunpack.c.l.b16 %v3033
    %v3619 = vunpack.c.l.b16 %v3034
    %v3620 = vunpack.c.h.b16 %v3034
    %v3621 = vunpack.c.l.b16 %v3035
    %v3622 = vunpack.c.h.b16 %v3035
    %v3623 = vunpack.c.l.b16 %v3036
    %v3624 = vunpack.c.h.b16 %v3036
    %v3625 = vunpack.c.l.b16 %v3037
    %v3626 = vunpack.c.l.b16 %v3038
    %v3627 = vunpack.c.h.b16 %v3038
    %v3628 = vunpack.c.l.b16 %v3039
    %v3629 = vunpack.c.h.b16 %v3039
    %v3630 = vunpack.c.l.b16 %v3040
    %v3631 = vunpack.c.h.b16 %v3040
    %v3632 = vunpack.c.l.b16 %v3041
    %v3633 = vunpack.c.l.b16 %v3042
    %v3634 = vunpack.c.h.b16 %v3042
    %v3635 = vunpack.c.l.b16 %v3043
    %v3636 = vunpack.c.h.b16 %v3043
    %v3637 = vunpack.c.l.b16 %v3044
    %v3638 = vunpack.c.h.b16 %v3044
    %v3639 = vunpack.c.l.b16 %v3045
    %v3640 = vunpack.c.l.b16 %v3046
    %v3641 = vunpack.c.h.b16 %v3046
    %v3642 = vunpack.c.l.b16 %v3047
    %v3643 = vunpack.c.h.b16 %v3047
    %v3644 = vunpack.c.l.b16 %v3048
    %v3645 = vunpack.c.h.b16 %v3048
    %v3646 = vunpack.c.l.b16 %v3049
    %v3647 = vunpack.c.l.b16 %v3050
    %v3648 = vunpack.c.h.b16 %v3050
    %v3649 = vunpack.c.l.b16 %v3051
    %v3650 = vunpack.c.h.b16 %v3051
    %v3651 = vunpack.c.l.b16 %v3052
    %v3652 = vunpack.c.h.b16 %v3052
    %v3653 = vunpack.c.l.b16 %v3053
    %v3654 = vunpack.c.l.b16 %v3054
    %v3655 = vunpack.c.h.b16 %v3054
    %v3656 = vunpack.c.l.b16 %v3055
    %v3657 = vunpack.c.h.b16 %v3055
    %v3658 = vunpack.c.l.b16 %v3056
    %v3659 = vunpack.c.h.b16 %v3056
    %v3660 = vunpack.c.l.b16 %v3057
    %v3661 = vunpack.c.l.b16 %v3058
    %v3662 = vunpack.c.h.b16 %v3058
    %v3663 = vunpack.c.l.b16 %v3059
    %v3664 = vunpack.c.h.b16 %v3059
    %v3665 = vunpack.c.l.b16 %v3060
    %v3666 = vunpack.c.h.b16 %v3060
    %v3667 = vunpack.c.l.b16 %v3061
    %v3668 = vunpack.c.l.b16 %v3062
    %v3669 = vunpack.c.h.b16 %v3062
    %v3670 = vunpack.c.l.b16 %v3063
    %v3671 = vunpack.c.h.b16 %v3063
    %v3672 = vunpack.c.l.b16 %v3064
    %v3673 = vunpack.c.h.b16 %v3064
    %v3674 = vunpack.c.l.b16 %v3065
    %v3675 = vunpack.c.l.b16 %v3066
    %v3676 = vunpack.c.h.b16 %v3066
    %v3677 = vunpack.c.l.b16 %v3067
    %v3678 = vunpack.c.h.b16 %v3067
    %v3679 = vunpack.c.l.b16 %v3068
    %v3680 = vunpack.c.h.b16 %v3068
    %v3681 = vunpack.c.l.b16 %v3069
    %v3682 = vunpack.c.l.b16 %v3070
    %v3683 = vunpack.c.h.b16 %v3070
    %v3684 = vunpack.c.l.b16 %v3071
    %v3685 = vunpack.c.h.b16 %v3071
    %v3686 = vunpack.c.l.b16 %v3072
    %v3687 = vunpack.c.h.b16 %v3072
    %v3688 = vunpack.c.l.b16 %v3073
    %v3689 = vunpack.c.l.b16 %v3074
    %v3690 = vunpack.c.h.b16 %v3074
    %v3691 = vunpack.c.l.b16 %v3075
    %v3692 = vunpack.c.h.b16 %v3075
    %v3693 = vunpack.c.l.b16 %v3076
    %v3694 = vunpack.c.h.b16 %v3076
    %v3695 = vunpack.c.l.b16 %v3077
    %v3696 = vunpack.c.l.b16 %v3078
    %v3697 = vunpack.c.h.b16 %v3078
    %v3698 = vunpack.c.l.b16 %v3079
    %v3699 = vunpack.c.h.b16 %v3079
    %v3700 = vunpack.c.l.b16 %v3080
    %v3701 = vunpack.c.h.b16 %v3080
    %v3702 = vunpack.c.l.b16 %v3081
    %v3703 = vunpack.c.l.b16 %v3082
    %v3704 = vunpack.c.h.b16 %v3082
    %v3705 = vunpack.c.l.b16 %v3083
    %v3706 = vunpack.c.h.b16 %v3083
    %v3707 = vunpack.c.l.b16 %v3084
    %v3708 = vunpack.c.h.b16 %v3084
    %v3709 = vunpack.c.l.b16 %v3085
    %v3710 = vunpack.c.l.b16 %v3086
    %v3711 = vunpack.c.h.b16 %v3086
    %v3712 = vunpack.c.l.b16 %v3087
    %v3713 = vunpack.c.h.b16 %v3087
    %v3714 = vunpack.c.l.b16 %v3088
    %v3715 = vunpack.c.h.b16 %v3088
    %v3716 = vunpack.c.l.b16 %v3089
    %v3717 = vunpack.c.l.b16 %v3090
    %v3718 = vunpack.c.h.b16 %v3090
    %v3719 = vunpack.c.l.b16 %v3091
    %v3720 = vunpack.c.h.b16 %v3091
    %v3721 = vunpack.c.l.b16 %v3092
    %v3722 = vunpack.c.h.b16 %v3092
    %v3723 = vunpack.c.l.b16 %v3093
    %v3724 = vunpack.c.l.b16 %v3094
    %v3725 = vunpack.c.h.b16 %v3094
    %v3726 = vunpack.c.l.b16 %v3095
    %v3727 = vunpack.c.h.b16 %v3095
    %v3728 = vunpack.c.l.b16 %v3096
    %v3729 = vunpack.c.h.b16 %v3096
    %v3730 = vunpack.c.l.b16 %v3097
    %v3731 = vunpack.c.l.b16 %v3098
    %v3732 = vunpack.c.h.b16 %v3098
    %v3733 = vunpack.c.l.b16 %v3099
    %v3734 = vunpack.c.h.b16 %v3099
    %v3735 = vunpack.c.l.b16 %v3100
    %v3736 = vunpack.c.h.b16 %v3100
    %v3737 = vunpack.c.l.b16 %v3101
    %v3738 = vunpack.c.l.b16 %v3102
    %v3739 = vunpack.c.h.b16 %v3102
    %v3740 = vunpack.c.l.b16 %v3103
    %v3741 = vunpack.c.h.b16 %v3103
    %v3742 = vunpack.c.l.b16 %v3104
    %v3743 = vunpack.c.h.b16 %v3104
    %v3744 = vunpack.c.l.b16 %v3105
    %v3745 = vunpack.c.l.b16 %v3106
    %v3746 = vunpack.c.h.b16 %v3106
    %v3747 = vunpack.c.l.b16 %v3107
    %v3748 = vunpack.c.h.b16 %v3107
    %v3749 = vunpack.c.l.b16 %v3108
    %v3750 = vunpack.c.h.b16 %v3108
    %v3751 = vunpack.c.l.b16 %v3109
    %v3752 = vunpack.c.l.b16 %v3110
    %v3753 = vunpack.c.h.b16 %v3110
    %v3754 = vunpack.c.l.b16 %v3111
    %v3755 = vunpack.c.h.b16 %v3111
    %v3756 = vunpack.c.l.b16 %v3112
    %v3757 = vunpack.c.h.b16 %v3112
    %v3758 = vunpack.c.l.b16 %v3113
    %v3759 = vunpack.c.l.b16 %v3114
    %v3760 = vunpack.c.h.b16 %v3114
    %v3761 = vunpack.c.l.b16 %v3115
    %v3762 = vunpack.c.h.b16 %v3115
    %v3763 = vunpack.c.l.b16 %v3116
    %v3764 = vunpack.c.h.b16 %v3116
    %v3765 = vunpack.c.l.b16 %v3117
    %v3766 = vunpack.c.l.b16 %v3118
    %v3767 = vunpack.c.h.b16 %v3118
    %v3768 = vunpack.c.l.b16 %v3119
    %v3769 = vunpack.c.h.b16 %v3119
    %v3770 = vunpack.c.l.b16 %v3120
    %v3771 = vunpack.c.h.b16 %v3120
    %v3772 = vunpack.c.l.b16 %v3121
    %v3773 = vunpack.c.l.b16 %v3122
    %v3774 = vunpack.c.h.b16 %v3122
    %v3775 = vunpack.c.l.b16 %v3123
    %v3776 = vunpack.c.h.b16 %v3123
    %v3777 = vunpack.c.l.b16 %v3124
    %v3778 = vunpack.c.h.b16 %v3124
    %v3779 = vunpack.c.l.b16 %v3125
    %v3780 = vunpack.c.l.b16 %v3126
    %v3781 = vunpack.c.h.b16 %v3126
    %v3782 = vunpack.c.l.b16 %v3127
    %v3783 = vunpack.c.h.b16 %v3127
    %v3784 = vunpack.c.l.b16 %v3128
    %v3785 = vunpack.c.h.b16 %v3128
    %v3786 = vunpack.c.l.b16 %v3129
    %v3787 = vunpack.c.l.b16 %v3130
    %v3788 = vunpack.c.h.b16 %v3130
    %v3789 = vunpack.c.l.b16 %v3131
    %v3790 = vunpack.c.h.b16 %v3131
    %v3791 = vunpack.c.l.b16 %v3132
    %v3792 = vunpack.c.h.b16 %v3132
    %v3793 = vunpack.c.l.b16 %v3133
    %v3794 = vunpack.c.l.b16 %v3134
    %v3795 = vunpack.c.h.b16 %v3134
    %v3796 = vunpack.c.l.b16 %v3135
    %v3797 = vunpack.c.h.b16 %v3135
    %v3798 = vunpack.c.l.b16 %v3136
    %v3799 = vunpack.c.h.b16 %v3136
    %v3800 = vunpack.c.l.b16 %v3137
    %v3801 = vunpack.c.l.b16 %v3138
    %v3802 = vunpack.c.h.b16 %v3138
    %v3803 = vunpack.c.l.b16 %v3139
    %v3804 = vunpack.c.h.b16 %v3139
    %v3805 = vunpack.c.l.b16 %v3140
    %v3806 = vunpack.c.h.b16 %v3140
    %v3807 = vunpack.c.l.b16 %v3141
    %v3808 = vunpack.c.l.b16 %v3142
    %v3809 = vunpack.c.h.b16 %v3142
    %v3810 = vunpack.c.l.b16 %v3143
    %v3811 = vunpack.c.h.b16 %v3143
    %v3812 = vunpack.c.l.b16 %v3144
    %v3813 = vunpack.c.h.b16 %v3144
    %v3814 = vunpack.c.l.b16 %v3145
    %v3815 = vunpack.c.l.b16 %v3146
    %v3816 = vunpack.c.h.b16 %v3146
    %v3817 = vunpack.c.l.b16 %v3147
    %v3818 = vunpack.c.h.b16 %v3147
    %v3819 = vunpack.c.l.b16 %v3148
    %v3820 = vunpack.c.h.b16 %v3148
    %v3821 = vunpack.c.l.b16 %v3149
    %v3822 = vunpack.c.l.b16 %v3150
    %v3823 = vunpack.c.h.b16 %v3150
    %v3824 = vunpack.c.l.b16 %v3151
    %v3825 = vunpack.c.h.b16 %v3151
    %v3826 = vunpack.c.l.b16 %v3152
    %v3827 = vunpack.c.h.b16 %v3152
    %v3828 = vunpack.c.l.b16 %v3153
    %v3829 = vunpack.c.l.b16 %v3154
    %v3830 = vunpack.c.h.b16 %v3154
    %v3831 = vunpack.c.l.b16 %v3155
    %v3832 = vunpack.c.h.b16 %v3155
    %v3833 = vunpack.c.l.b16 %v3156
    %v3834 = vunpack.c.h.b16 %v3156
    %v3835 = vunpack.c.l.b16 %v3157
    %v3836 = vunpack.c.l.b16 %v3158
    %v3837 = vunpack.c.h.b16 %v3158
    %v3838 = vunpack.c.l.b16 %v3159
    %v3839 = vunpack.c.h.b16 %v3159
    %v3840 = vunpack.c.l.b16 %v3160
    %v3841 = vunpack.c.h.b16 %v3160
    %v3842 = vunpack.c.l.b16 %v3161
    %v3843 = vunpack.c.l.b16 %v3162
    %v3844 = vunpack.c.h.b16 %v3162
    %v3845 = vunpack.c.l.b16 %v3163
    %v3846 = vunpack.c.h.b16 %v3163
    %v3847 = vunpack.c.l.b16 %v3164
    %v3848 = vunpack.c.h.b16 %v3164
    %v3849 = vunpack.c.l.b16 %v3165
    %v3850 = vunpack.c.l.b16 %v3166
    %v3851 = vunpack.c.h.b16 %v3166
    %v3852 = vunpack.c.l.b16 %v3167
    %v3853 = vunpack.c.h.b16 %v3167
    %v3854 = vunpack.c.l.b16 %v3168
    %v3855 = vunpack.c.h.b16 %v3168
    %v3856 = vunpack.c.l.b16 %v3169
    %v3857 = vunpack.c.l.b16 %v3170
    %v3858 = vunpack.c.h.b16 %v3170
    %v3859 = vunpack.c.l.b16 %v3171
    %v3860 = vunpack.c.h.b16 %v3171
    %v3861 = vunpack.c.l.b16 %v3172
    %v3862 = vunpack.c.h.b16 %v3172
    %v3863 = vunpack.c.l.b16 %v3173
    %v3864 = vunpack.c.l.b16 %v3174
    %v3865 = vunpack.c.h.b16 %v3174
    %v3866 = vunpack.c.l.b16 %v3175
    %v3867 = vunpack.c.h.b16 %v3175
    %v3868 = vunpack.c.l.b16 %v3176
    %v3869 = vunpack.c.h.b16 %v3176
    %v3870 = vunpack.c.l.b16 %v3177
    %v3871 = vunpack.c.l.b16 %v3178
    %v3872 = vunpack.c.h.b16 %v3178
    %v3873 = vunpack.c.l.b16 %v3179
    %v3874 = vunpack.c.h.b16 %v3179
    %v3875 = vunpack.c.l.b16 %v3180
    %v3876 = vunpack.c.h.b16 %v3180
    %v3877 = vunpack.c.l.b16 %v3181
    %v3878 = vunpack.c.l.b16 %v3182
    %v3879 = vunpack.c.h.b16 %v3182
    %v3880 = vunpack.c.l.b16 %v3183
    %v3881 = vunpack.c.h.b16 %v3183
    %v3882 = vunpack.c.l.b16 %v3184
    %v3883 = vunpack.c.h.b16 %v3184
    %v3884 = vunpack.c.l.b16 %v3185
    %v3885 = vunpack.c.l.b16 %v3186
    %v3886 = vunpack.c.h.b16 %v3186
    %v3887 = vunpack.c.l.b16 %v3187
    %v3888 = vunpack.c.h.b16 %v3187
    %v3889 = vunpack.c.l.b16 %v3188
    %v3890 = vunpack.c.h.b16 %v3188
    %v3891 = vunpack.c.l.b16 %v3189
    %v3892 = vunpack.c.l.b16 %v3190
    %v3893 = vunpack.c.h.b16 %v3190
    %v3894 = vunpack.c.l.b16 %v3191
    %v3895 = vunpack.c.h.b16 %v3191
    %v3896 = vunpack.c.l.b16 %v3192
    %v3897 = vunpack.c.h.b16 %v3192
    %v3898 = vunpack.c.l.b16 %v3193
    %v3899 = vunpack.c.l.b16 %v3194
    %v3900 = vunpack.c.h.b16 %v3194
    %v3901 = vunpack.c.l.b16 %v3195
    %v3902 = vunpack.c.h.b16 %v3195
    %v3903 = vunpack.c.l.b16 %v3196
    %v3904 = vunpack.c.h.b16 %v3196
    %v3905 = vunpack.c.l.b16 %v3197
    %v3906 = vunpack.c.l.b16 %v3198
    %v3907 = vunpack.c.h.b16 %v3198
    %v3908 = vunpack.c.l.b16 %v3199
    %v3909 = vunpack.c.h.b16 %v3199
    %v3910 = vunpack.c.l.b16 %v3200
    %v3911 = vunpack.c.h.b16 %v3200
    %v3912 = vunpack.c.l.b16 %v3201
    %v3913 = vunpack.c.l.b16 %v3202
    %v3914 = vunpack.c.h.b16 %v3202
    %v3915 = vunpack.c.l.b16 %v3203
    %v3916 = vunpack.c.h.b16 %v3203
    %v3917 = vunpack.c.l.b16 %v3204
    %v3918 = vunpack.c.h.b16 %v3204
    %v3919 = vunpack.c.l.b16 %v3205
    %v3920 = vunpack.c.l.b16 %v3206
    %v3921 = vunpack.c.h.b16 %v3206
    %v3922 = vunpack.c.l.b16 %v3207
    %v3923 = vunpack.c.h.b16 %v3207
    %v3924 = vunpack.c.l.b16 %v3208
    %v3925 = vunpack.c.h.b16 %v3208
    %v3926 = vunpack.c.l.b16 %v3209
    %v3927 = vunpack.c.l.b16 %v3210
    %v3928 = vunpack.c.h.b16 %v3210
    %v3929 = vunpack.c.l.b16 %v3211
    %v3930 = vunpack.c.h.b16 %v3211
    %v3931 = vunpack.c.l.b16 %v3212
    %v3932 = vunpack.c.h.b16 %v3212
    %v3933 = vunpack.c.l.b16 %v3213
    %v3934 = vunpack.c.l.b16 %v3214
    %v3935 = vunpack.c.h.b16 %v3214
    %v3936 = vunpack.c.l.b16 %v3215
    %v3937 = vunpack.c.h.b16 %v3215
    %v3938 = vunpack.c.l.b16 %v3216
    %v3939 = vunpack.c.h.b16 %v3216
    %v3940 = vunpack.c.l.b16 %v3217
    %v3941 = vunpack.c.l.b16 %v3218
    %v3942 = vunpack.c.h.b16 %v3218
    %v3943 = vunpack.c.l.b16 %v3219
    %v3944 = vunpack.c.h.b16 %v3219
    %v3945 = vunpack.c.l.b16 %v3220
    %v3946 = vunpack.c.h.b16 %v3220
    %v3947 = vunpack.c.l.b16 %v3221
    %v3948 = vunpack.c.l.b16 %v3222
    %v3949 = vunpack.c.h.b16 %v3222
    %v3950 = vunpack.c.l.b16 %v3223
    %v3951 = vunpack.c.h.b16 %v3223
    %v3952 = vunpack.c.l.b16 %v3224
    %v3953 = vunpack.c.h.b16 %v3224
    %v3954 = vunpack.c.l.b16 %v3225
    %v3955 = vunpack.c.l.b16 %v3226
    %v3956 = vunpack.c.h.b16 %v3226
    %v3957 = vunpack.c.l.b16 %v3227
    %v3958 = vunpack.c.h.b16 %v3227
    %v3959 = vunpack.c.l.b16 %v3228
    %v3960 = vunpack.c.h.b16 %v3228
    %v3961 = vunpack.c.l.b16 %v3229
    %v3962 = vunpack.c.l.b16 %v3230
    %v3963 = vunpack.c.h.b16 %v3230
    %v3964 = vunpack.c.l.b16 %v3231
    %v3965 = vunpack.c.h.b16 %v3231
    %v3966 = vunpack.c.l.b16 %v3232
    %v3967 = vunpack.c.h.b16 %v3232
    %v3968 = vunpack.c.l.b16 %v3233
    %v3969 = vunpack.c.l.b16 %v3234
    %v3970 = vunpack.c.h.b16 %v3234
    %v3971 = vunpack.c.l.b16 %v3235
    %v3972 = vunpack.c.h.b16 %v3235
    %v3973 = vunpack.c.l.b16 %v3236
    %v3974 = vunpack.c.h.b16 %v3236
    %v3975 = vunpack.c.l.b16 %v3237
    %v3976 = vunpack.c.l.b16 %v3238
    %v3977 = vunpack.c.h.b16 %v3238
    %v3978 = vunpack.c.l.b16 %v3239
    %v3979 = vunpack.c.h.b16 %v3239
    %v3980 = vunpack.c.l.b16 %v3240
    %v3981 = vunpack.c.h.b16 %v3240
    %v3982 = vunpack.c.l.b16 %v3241
    %v3983 = vpack.c.b16 %v3542, %v3535
    %v3984 = vpack.c.b16 %v3543, %v3536
    %v3985 = vpack.c.b16 %v3544, %v3537
    %v3986 = vpack.c.b16 %v3545, %v3538
    %v3987 = vpack.c.b16 %v3546, %v3539
    %v3988 = vpack.c.b16 %v3547, %v3540
    %v3989 = vpack.c.b16 %v3548, %v3541
    %v3990 = vpack.c.b16 %v3556, %v3549
    %v3991 = vpack.c.b16 %v3557, %v3550
    %v3992 = vpack.c.b16 %v3558, %v3551
    %v3993 = vpack.c.b16 %v3559, %v3552
    %v3994 = vpack.c.b16 %v3560, %v3553
    %v3995 = vpack.c.b16 %v3561, %v3554
    %v3996 = vpack.c.b16 %v3562, %v3555
    %v3997 = vpack.c.b16 %v3570, %v3563
    %v3998 = vpack.c.b16 %v3571, %v3564
    %v3999 = vpack.c.b16 %v3572, %v3565
    %v4000 = vpack.c.b16 %v3573, %v3566
    %v4001 = vpack.c.b16 %v3574, %v3567
    %v4002 = vpack.c.b16 %v3575, %v3568
    %v4003 = vpack.c.b16 %v3576, %v3569
    %v4004 = vpack.c.b16 %v3584, %v3577
    %v4005 = vpack.c.b16 %v3585, %v3578
    %v4006 = vpack.c.b16 %v3586, %v3579
    %v4007 = vpack.c.b16 %v3587, %v3580
    %v4008 = vpack.c.b16 %v3588, %v3581
    %v4009 = vpack.c.b16 %v3589, %v3582
    %v4010 = vpack.c.b16 %v3590, %v3583
    %v4011 = vpack.c.b16 %v3598, %v3591
    %v4012 = vpack.c.b16 %v3599, %v3592
    %v4013 = vpack.c.b16 %v3600, %v3593
    %v4014 = vpack.c.b16 %v3601, %v3594
    %v4015 = vpack.c.b16 %v3602, %v3595
    %v4016 = vpack.c.b16 %v3603, %v3596
    %v4017 = vpack.c.b16 %v3604, %v3597
    %v4018 = vpack.c.b16 %v3612, %v3605
    %v4019 = vpack.c.b16 %v3613, %v3606
    %v4020 = vpack.c.b16 %v3614, %v3607
    %v4021 = vpack.c.b16 %v3615, %v3608
    %v4022 = vpack.c.b16 %v3616, %v3609
    %v4023 = vpack.c.b16 %v3617, %v3610
    %v4024 = vpack.c.b16 %v3618, %v3611
    %v4025 = vpack.c.b16 %v3626, %v3619
    %v4026 = vpack.c.b16 %v3627, %v3620
    %v4027 = vpack.c.b16 %v3628, %v3621
    %v4028 = vpack.c.b16 %v3629, %v3622
    %v4029 = vpack.c.b16 %v3630, %v3623
    %v4030 = vpack.c.b16 %v3631, %v3624
    %v4031 = vpack.c.b16 %v3632, %v3625
    %v4032 = vpack.c.b16 %v3640, %v3633
    %v4033 = vpack.c.b16 %v3641, %v3634
    %v4034 = vpack.c.b16 %v3642, %v3635
    %v4035 = vpack.c.b16 %v3643, %v3636
    %v4036 = vpack.c.b16 %v3644, %v3637
    %v4037 = vpack.c.b16 %v3645, %v3638
    %v4038 = vpack.c.b16 %v3646, %v3639
    %v4039 = vpack.c.b16 %v3654, %v3647
    %v4040 = vpack.c.b16 %v3655, %v3648
    %v4041 = vpack.c.b16 %v3656, %v3649
    %v4042 = vpack.c.b16 %v3657, %v3650
    %v4043 = vpack.c.b16 %v3658, %v3651
    %v4044 = vpack.c.b16 %v3659, %v3652
    %v4045 = vpack.c.b16 %v3660, %v3653
    %v4046 = vpack.c.b16 %v3668, %v3661
    %v4047 = vpack.c.b16 %v3669, %v3662
    %v4048 = vpack.c.b16 %v3670, %v3663
    %v4049 = vpack.c.b16 %v3671, %v3664
    %v4050 = vpack.c.b16 %v3672, %v3665
    %v4051 = vpack.c.b16 %v3673, %v3666
    %v4052 = vpack.c.b16 %v3674, %v3667
    %v4053 = vpack.c.b16 %v3682, %v3675
    %v4054 = vpack.c.b16 %v3683, %v3676
    %v4055 = vpack.c.b16 %v3684, %v3677
    %v4056 = vpack.c.b16 %v3685, %v3678
    %v4057 = vpack.c.b16 %v3686, %v3679
    %v4058 = vpack.c.b16 %v3687, %v3680
    %v4059 = vpack.c.b16 %v3688, %v3681
    %v4060 = vpack.c.b16 %v3696, %v3689
    %v4061 = vpack.c.b16 %v3697, %v3690
    %v4062 = vpack.c.b16 %v3698, %v3691
    %v4063 = vpack.c.b16 %v3699, %v3692
    %v4064 = vpack.c.b16 %v3700, %v3693
    %v4065 = vpack.c.b16 %v3701, %v3694
    %v4066 = vpack.c.b16 %v3702, %v3695
    %v4067 = vpack.c.b16 %v3710, %v3703
    %v4068 = vpack.c.b16 %v3711, %v3704
    %v4069 = vpack.c.b16 %v3712, %v3705
    %v4070 = vpack.c.b16 %v3713, %v3706
    %v4071 = vpack.c.b16 %v3714, %v3707
    %v4072 = vpack.c.b16 %v3715, %v3708
    %v4073 = vpack.c.b16 %v3716, %v3709
    %v4074 = vpack.c.b16 %v3724, %v3717
    %v4075 = vpack.c.b16 %v3725, %v3718
    %v4076 = vpack.c.b16 %v3726, %v3719
    %v4077 = vpack.c.b16 %v3727, %v3720
    %v4078 = vpack.c.b16 %v3728, %v3721
    %v4079 = vpack.c.b16 %v3729, %v3722
    %v4080 = vpack.c.b16 %v3730, %v3723
    %v4081 = vpack.c.b16 %v3738, %v3731
    %v4082 = vpack.c.b16 %v3739, %v3732
    %v4083 = vpack.c.b16 %v3740, %v3733
    %v4084 = vpack.c.b16 %v3741, %v3734
    %v4085 = vpack.c.b16 %v3742, %v3735
    %v4086 = vpack.c.b16 %v3743, %v3736
    %v4087 = vpack.c.b16 %v3744, %v3737
    %v4088 = vpack.c.b16 %v3752, %v3745
    %v4089 = vpack.c.b16 %v3753, %v3746
    %v4090 = vpack.c.b16 %v3754, %v3747
    %v4091 = vpack.c.b16 %v3755, %v3748
    %v4092 = vpack.c.b16 %v3756, %v3749
    %v4093 = vpack.c.b16 %v3757, %v3750
    %v4094 = vpack.c.b16 %v3758, %v3751
    %v4095 = vpack.c.b16 %v3766, %v3759
    %v4096 = vpack.c.b16 %v3767, %v3760
    %v4097 = vpack.c.b16 %v3768, %v3761
    %v4098 = vpack.c.b16 %v3769, %v3762
    %v4099 = vpack.c.b16 %v3770, %v3763
    %v4100 = vpack.c.b16 %v3771, %v3764
    %v4101 = vpack.c.b16 %v3772, %v3765
    %v4102 = vpack.c.b16 %v3780, %v3773
    %v4103 = vpack.c.b16 %v3781, %v3774
    %v4104 = vpack.c.b16 %v3782, %v3775
    %v4105 = vpack.c.b16 %v3783, %v3776
    %v4106 = vpack.c.b16 %v3784, %v3777
    %v4107 = vpack.c.b16 %v3785, %v3778
    %v4108 = vpack.c.b16 %v3786, %v3779
    %v4109 = vpack.c.b16 %v3794, %v3787
    %v4110 = vpack.c.b16 %v3795, %v3788
    %v4111 = vpack.c.b16 %v3796, %v3789
    %v4112 = vpack.c.b16 %v3797, %v3790
    %v4113 = vpack.c.b16 %v3798, %v3791
    %v4114 = vpack.c.b16 %v3799, %v3792
    %v4115 = vpack.c.b16 %v3800, %v3793
    %v4116 = vpack.c.b16 %v3808, %v3801
    %v4117 = vpack.c.b16 %v3809, %v3802
    %v4118 = vpack.c.b16 %v3810, %v3803
    %v4119 = vpack.c.b16 %v3811, %v3804
    %v4120 = vpack.c.b16 %v3812, %v3805
    %v4121 = vpack.c.b16 %v3813, %v3806
    %v4122 = vpack.c.b16 %v3814, %v3807
    %v4123 = vpack.c.b16 %v3822, %v3815
    %v4124 = vpack.c.b16 %v3823, %v3816
    %v4125 = vpack.c.b16 %v3824, %v3817
    %v4126 = vpack.c.b16 %v3825, %v3818
    %v4127 = vpack.c.b16 %v3826, %v3819
    %v4128 = vpack.c.b16 %v3827, %v3820
    %v4129 = vpack.c.b16 %v3828, %v3821
    %v4130 = vpack.c.b16 %v3836, %v3829
    %v4131 = vpack.c.b16 %v3837, %v3830
    %v4132 = vpack.c.b16 %v3838, %v3831
    %v4133 = vpack.c.b16 %v3839, %v3832
    %v4134 = vpack.c.b16 %v3840, %v3833
    %v4135 = vpack.c.b16 %v3841, %v3834
    %v4136 = vpack.c.b16 %v3842, %v3835
    %v4137 = vpack.c.b16 %v3850, %v3843
    %v4138 = vpack.c.b16 %v3851, %v3844
    %v4139 = vpack.c.b16 %v3852, %v3845
    %v4140 = vpack.c.b16 %v3853, %v3846
    %v4141 = vpack.c.b16 %v3854, %v3847
    %v4142 = vpack.c.b16 %v3855, %v3848
    %v4143 = vpack.c.b16 %v3856, %v3849
    %v4144 = vpack.c.b16 %v3864, %v3857
    %v4145 = vpack.c.b16 %v3865, %v3858
    %v4146 = vpack.c.b16 %v3866, %v3859
    %v4147 = vpack.c.b16 %v3867, %v3860
    %v4148 = vpack.c.b16 %v3868, %v3861
    %v4149 = vpack.c.b16 %v3869, %v3862
    %v4150 = vpack.c.b16 %v3870, %v3863
    %v4151 = vpack.c.b16 %v3878, %v3871
    %v4152 = vpack.c.b16 %v3879, %v3872
    %v4153 = vpack.c.b16 %v3880, %v3873
    %v4154 = vpack.c.b16 %v3881, %v3874
    %v4155 = vpack.c.b16 %v3882, %v3875
    %v4156 = vpack.c.b16 %v3883, %v3876
    %v4157 = vpack.c.b16 %v3884, %v3877
    %v4158 = vpack.c.b16 %v3892, %v3885
    %v4159 = vpack.c.b16 %v3893, %v3886
    %v4160 = vpack.c.b16 %v3894, %v3887
    %v4161 = vpack.c.b16 %v3895, %v3888
    %v4162 = vpack.c.b16 %v3896, %v3889
    %v4163 = vpack.c.b16 %v3897, %v3890
    %v4164 = vpack.c.b16 %v3898, %v3891
    %v4165 = vpack.c.b16 %v3906, %v3899
    %v4166 = vpack.c.b16 %v3907, %v3900
    %v4167 = vpack.c.b16 %v3908, %v3901
    %v4168 = vpack.c.b16 %v3909, %v3902
    %v4169 = vpack.c.b16 %v3910, %v3903
    %v4170 = vpack.c.b16 %v3911, %v3904
    %v4171 = vpack.c.b16 %v3912, %v3905
    %v4172 = vpack.c.b16 %v3920, %v3913
    %v4173 = vpack.c.b16 %v3921, %v3914
    %v4174 = vpack.c.b16 %v3922, %v3915
    %v4175 = vpack.c.b16 %v3923, %v3916
    %v4176 = vpack.c.b16 %v3924, %v3917
    %v4177 = vpack.c.b16 %v3925, %v3918
    %v4178 = vpack.c.b16 %v3926, %v3919
    %v4179 = vpack.c.b16 %v3934, %v3927
    %v4180 = vpack.c.b16 %v3935, %v3928
    %v4181 = vpack.c.b16 %v3936, %v3929
    %v4182 = vpack.c.b16 %v3937, %v3930
    %v4183 = vpack.c.b16 %v3938, %v3931
    %v4184 = vpack.c.b16 %v3939, %v3932
    %v4185 = vpack.c.b16 %v3940, %v3933
    %v4186 = vpack.c.b16 %v3948, %v3941
    %v4187 = vpack.c.b16 %v3949, %v3942
    %v4188 = vpack.c.b16 %v3950, %v3943
    %v4189 = vpack.c.b16 %v3951, %v3944
    %v4190 = vpack.c.b16 %v3952, %v3945
    %v4191 = vpack.c.b16 %v3953, %v3946
    %v4192 = vpack.c.b16 %v3954, %v3947
    %v4193 = vpack.c.b16 %v3962, %v3955
    %v4194 = vpack.c.b16 %v3963, %v3956
    %v4195 = vpack.c.b16 %v3964, %v3957
    %v4196 = vpack.c.b16 %v3965, %v3958
    %v4197 = vpack.c.b16 %v3966, %v3959
    %v4198 = vpack.c.b16 %v3967, %v3960
    %v4199 = vpack.c.b16 %v3968, %v3961
    %v4200 = vpack.c.b16 %v3976, %v3969
    %v4201 = vpack.c.b16 %v3977, %v3970
    %v4202 = vpack.c.b16 %v3978, %v3971
    %v4203 = vpack.c.b16 %v3979, %v3972
    %v4204 = vpack.c.b16 %v3980, %v3973
    %v4205 = vpack.c.b16 %v3981, %v3974
    %v4206 = vpack.c.b16 %v3982, %v3975
    %4431 = vmatprep.subr.bf16.mxu0 %v3984
    %4432 = vmatpush1.bf16.msra.mxu0 %v3983
    %4433 = vmatprep.subr.bf16.mxu0 %v3991
    %4434 = vmatpush1.bf16.msra.mxu0 %v3990
    %4435 = vmatprep.subr.bf16.mxu0 %v3998
    %4436 = vmatpush1.bf16.msra.mxu0 %v3997
    %4437 = vmatprep.subr.bf16.mxu0 %v4005
    %4438 = vmatpush1.bf16.msra.mxu0 %v4004
    %4439 = vmatprep.subr.bf16.mxu0 %v4012
    %4440 = vmatpush1.bf16.msra.mxu0 %v4011
    %4441 = vmatprep.subr.bf16.mxu0 %v4019
    %4442 = vmatpush1.bf16.msra.mxu0 %v4018
    %4443 = vmatprep.subr.bf16.mxu0 %v4026
    %4444 = vmatpush1.bf16.msra.mxu0 %v4025
    %4445 = vmatprep.subr.bf16.mxu0 %v4033
    %4446 = vmatpush1.bf16.msra.mxu0 %v4032
    %4447 = vmatprep.subr.bf16.mxu0 %v4040
    %4448 = vmatpush1.bf16.msra.mxu0 %v4039
    %4449 = vmatprep.subr.bf16.mxu0 %v4047
    %4450 = vmatpush1.bf16.msra.mxu0 %v4046
    %4451 = vmatprep.subr.bf16.mxu0 %v4054
    %4452 = vmatpush1.bf16.msra.mxu0 %v4053
    %4453 = vmatprep.subr.bf16.mxu0 %v4061
    %4454 = vmatpush1.bf16.msra.mxu0 %v4060
    %4455 = vmatprep.subr.bf16.mxu0 %v4068
    %4456 = vmatpush1.bf16.msra.mxu0 %v4067
    %4457 = vmatprep.subr.bf16.mxu0 %v4075
    %4458 = vmatpush1.bf16.msra.mxu0 %v4074
    %4459 = vmatprep.subr.bf16.mxu0 %v4082
    %4460 = vmatpush1.bf16.msra.mxu0 %v4081
    %4461 = vmatprep.subr.bf16.mxu0 %v4089
    %4462 = vmatpush1.bf16.msra.mxu0 %v4088
    %4463 = vmatprep.mubr.bf16.mxu0 %v2983
    %4464 = vmatmul.mubr.bf16.gmra.mrb[0].mxu0 %v2982
    %v4465 = vpop.f32.mrb[0].mxu0
    %v4466 = vadd.f32 %v3247, %v4465
    %v4467 = vpop.f32.mrb[0].mxu0
    %v4468 = vadd.f32 %v3251, %v4467
    %v4469 = vpop.f32.mrb[0].mxu0
    %v4470 = vpop.f32.mrb[0].mxu0
    %4471 = vdwg.mxu0
    %4472 = vmatprep.subr.bf16.mxu0 %v4096
    %4473 = vmatpush1.bf16.msra.mxu0 %v4095
    %4474 = vmatprep.subr.bf16.mxu0 %v4103
    %4475 = vmatpush1.bf16.msra.mxu0 %v4102
    %4476 = vmatprep.subr.bf16.mxu0 %v4110
    %4477 = vmatpush1.bf16.msra.mxu0 %v4109
    %4478 = vmatprep.subr.bf16.mxu0 %v4117
    %4479 = vmatpush1.bf16.msra.mxu0 %v4116
    %4480 = vmatprep.subr.bf16.mxu0 %v4124
    %4481 = vmatpush1.bf16.msra.mxu0 %v4123
    %4482 = vmatprep.subr.bf16.mxu0 %v4131
    %4483 = vmatpush1.bf16.msra.mxu0 %v4130
    %4484 = vmatprep.subr.bf16.mxu0 %v4138
    %4485 = vmatpush1.bf16.msra.mxu0 %v4137
    %4486 = vmatprep.subr.bf16.mxu0 %v4145
    %4487 = vmatpush1.bf16.msra.mxu0 %v4144
    %4488 = vmatprep.subr.bf16.mxu0 %v4152
    %4489 = vmatpush1.bf16.msra.mxu0 %v4151
    %4490 = vmatprep.subr.bf16.mxu0 %v4159
    %4491 = vmatpush1.bf16.msra.mxu0 %v4158
    %4492 = vmatprep.subr.bf16.mxu0 %v4166
    %4493 = vmatpush1.bf16.msra.mxu0 %v4165
    %4494 = vmatprep.subr.bf16.mxu0 %v4173
    %4495 = vmatpush1.bf16.msra.mxu0 %v4172
    %4496 = vmatprep.subr.bf16.mxu0 %v4180
    %4497 = vmatpush1.bf16.msra.mxu0 %v4179
    %4498 = vmatprep.subr.bf16.mxu0 %v4187
    %4499 = vmatpush1.bf16.msra.mxu0 %v4186
    %4500 = vmatprep.subr.bf16.mxu0 %v4194
    %4501 = vmatpush1.bf16.msra.mxu0 %v4193
    %4502 = vmatprep.subr.bf16.mxu0 %v4201
    %4503 = vmatpush1.bf16.msra.mxu0 %v4200
    %4504 = vmatprep.mubr.bf16.mxu0 %v2985
    %4505 = vmatmul.mubr.bf16.gmra.mrb[0].mxu0 %v2984
    %v4506 = vpop.f32.mrb[0].mxu0
    %v4507 = vadd.f32 %v4466, %v4506
    %v4508 = vpop.f32.mrb[0].mxu0
    %v4509 = vadd.f32 %v4468, %v4508
    %v4510 = vpop.f32.mrb[0].mxu0
    %v4511 = vpop.f32.mrb[0].mxu0
    %4512 = vdwg.mxu0
    %4513 = vmatprep.subr.bf16.mxu0 %v3986
    %4514 = vmatpush1.bf16.msra.mxu0 %v3985
    %4515 = vmatprep.subr.bf16.mxu0 %v3993
    %4516 = vmatpush1.bf16.msra.mxu0 %v3992
    %4517 = vmatprep.subr.bf16.mxu0 %v4000
    %4518 = vmatpush1.bf16.msra.mxu0 %v3999
    %4519 = vmatprep.subr.bf16.mxu0 %v4007
    %4520 = vmatpush1.bf16.msra.mxu0 %v4006
    %4521 = vmatprep.subr.bf16.mxu0 %v4014
    %4522 = vmatpush1.bf16.msra.mxu0 %v4013
    %4523 = vmatprep.subr.bf16.mxu0 %v4021
    %4524 = vmatpush1.bf16.msra.mxu0 %v4020
    %4525 = vmatprep.subr.bf16.mxu0 %v4028
    %4526 = vmatpush1.bf16.msra.mxu0 %v4027
    %4527 = vmatprep.subr.bf16.mxu0 %v4035
    %4528 = vmatpush1.bf16.msra.mxu0 %v4034
    %4529 = vmatprep.subr.bf16.mxu0 %v4042
    %4530 = vmatpush1.bf16.msra.mxu0 %v4041
    %4531 = vmatprep.subr.bf16.mxu0 %v4049
    %4532 = vmatpush1.bf16.msra.mxu0 %v4048
    %4533 = vmatprep.subr.bf16.mxu0 %v4056
    %4534 = vmatpush1.bf16.msra.mxu0 %v4055
    %4535 = vmatprep.subr.bf16.mxu0 %v4063
    %4536 = vmatpush1.bf16.msra.mxu0 %v4062
    %4537 = vmatprep.subr.bf16.mxu0 %v4070
    %4538 = vmatpush1.bf16.msra.mxu0 %v4069
    %4539 = vmatprep.subr.bf16.mxu0 %v4077
    %4540 = vmatpush1.bf16.msra.mxu0 %v4076
    %4541 = vmatprep.subr.bf16.mxu0 %v4084
    %4542 = vmatpush1.bf16.msra.mxu0 %v4083
    %4543 = vmatprep.subr.bf16.mxu0 %v4091
    %4544 = vmatpush1.bf16.msra.mxu0 %v4090
    %4545 = vmatprep.mubr.bf16.mxu0 %v2983
    %4546 = vmatmul.mubr.bf16.gmra.mrb[0].mxu0 %v2982
    %v4547 = vpop.f32.mrb[0].mxu0
    %v4548 = vadd.f32 %v3255, %v4547
    %v4549 = vpop.f32.mrb[0].mxu0
    %v4550 = vadd.f32 %v3259, %v4549
    %v4551 = vpop.f32.mrb[0].mxu0
    %v4552 = vpop.f32.mrb[0].mxu0
    %4553 = vdwg.mxu0
    %4554 = vmatprep.subr.bf16.mxu0 %v4098
    %4555 = vmatpush1.bf16.msra.mxu0 %v4097
    %4556 = vmatprep.subr.bf16.mxu0 %v4105
    %4557 = vmatpush1.bf16.msra.mxu0 %v4104
    %4558 = vmatprep.subr.bf16.mxu0 %v4112
    %4559 = vmatpush1.bf16.msra.mxu0 %v4111
    %4560 = vmatprep.subr.bf16.mxu0 %v4119
    %4561 = vmatpush1.bf16.msra.mxu0 %v4118
    %4562 = vmatprep.subr.bf16.mxu0 %v4126
    %4563 = vmatpush1.bf16.msra.mxu0 %v4125
    %4564 = vmatprep.subr.bf16.mxu0 %v4133
    %4565 = vmatpush1.bf16.msra.mxu0 %v4132
    %4566 = vmatprep.subr.bf16.mxu0 %v4140
    %4567 = vmatpush1.bf16.msra.mxu0 %v4139
    %4568 = vmatprep.subr.bf16.mxu0 %v4147
    %4569 = vmatpush1.bf16.msra.mxu0 %v4146
    %4570 = vmatprep.subr.bf16.mxu0 %v4154
    %4571 = vmatpush1.bf16.msra.mxu0 %v4153
    %4572 = vmatprep.subr.bf16.mxu0 %v4161
    %4573 = vmatpush1.bf16.msra.mxu0 %v4160
    %4574 = vmatprep.subr.bf16.mxu0 %v4168
    %4575 = vmatpush1.bf16.msra.mxu0 %v4167
    %4576 = vmatprep.subr.bf16.mxu0 %v4175
    %4577 = vmatpush1.bf16.msra.mxu0 %v4174
    %4578 = vmatprep.subr.bf16.mxu0 %v4182
    %4579 = vmatpush1.bf16.msra.mxu0 %v4181
    %4580 = vmatprep.subr.bf16.mxu0 %v4189
    %4581 = vmatpush1.bf16.msra.mxu0 %v4188
    %4582 = vmatprep.subr.bf16.mxu0 %v4196
    %4583 = vmatpush1.bf16.msra.mxu0 %v4195
    %4584 = vmatprep.subr.bf16.mxu0 %v4203
    %4585 = vmatpush1.bf16.msra.mxu0 %v4202
    %4586 = vmatprep.mubr.bf16.mxu0 %v2985
    %4587 = vmatmul.mubr.bf16.gmra.mrb[0].mxu0 %v2984
    %v4588 = vpop.f32.mrb[0].mxu0
    %v4589 = vadd.f32 %v4548, %v4588
    %v4590 = vpop.f32.mrb[0].mxu0
    %v4591 = vadd.f32 %v4550, %v4590
    %v4592 = vpop.f32.mrb[0].mxu0
    %v4593 = vpop.f32.mrb[0].mxu0
    %4594 = vdwg.mxu0
    %4595 = vmatprep.subr.bf16.mxu0 %v3988
    %4596 = vmatpush1.bf16.msra.mxu0 %v3987
    %4597 = vmatprep.subr.bf16.mxu0 %v3995
    %4598 = vmatpush1.bf16.msra.mxu0 %v3994
    %4599 = vmatprep.subr.bf16.mxu0 %v4002
    %4600 = vmatpush1.bf16.msra.mxu0 %v4001
    %4601 = vmatprep.subr.bf16.mxu0 %v4009
    %4602 = vmatpush1.bf16.msra.mxu0 %v4008
    %4603 = vmatprep.subr.bf16.mxu0 %v4016
    %4604 = vmatpush1.bf16.msra.mxu0 %v4015
    %4605 = vmatprep.subr.bf16.mxu0 %v4023
    %4606 = vmatpush1.bf16.msra.mxu0 %v4022
    %4607 = vmatprep.subr.bf16.mxu0 %v4030
    %4608 = vmatpush1.bf16.msra.mxu0 %v4029
    %4609 = vmatprep.subr.bf16.mxu0 %v4037
    %4610 = vmatpush1.bf16.msra.mxu0 %v4036
    %4611 = vmatprep.subr.bf16.mxu0 %v4044
    %4612 = vmatpush1.bf16.msra.mxu0 %v4043
    %4613 = vmatprep.subr.bf16.mxu0 %v4051
    %4614 = vmatpush1.bf16.msra.mxu0 %v4050
    %4615 = vmatprep.subr.bf16.mxu0 %v4058
    %4616 = vmatpush1.bf16.msra.mxu0 %v4057
    %4617 = vmatprep.subr.bf16.mxu0 %v4065
    %4618 = vmatpush1.bf16.msra.mxu0 %v4064
    %4619 = vmatprep.subr.bf16.mxu0 %v4072
    %4620 = vmatpush1.bf16.msra.mxu0 %v4071
    %4621 = vmatprep.subr.bf16.mxu0 %v4079
    %4622 = vmatpush1.bf16.msra.mxu0 %v4078
    %4623 = vmatprep.subr.bf16.mxu0 %v4086
    %4624 = vmatpush1.bf16.msra.mxu0 %v4085
    %4625 = vmatprep.subr.bf16.mxu0 %v4093
    %4626 = vmatpush1.bf16.msra.mxu0 %v4092
    %4627 = vmatprep.mubr.bf16.mxu0 %v2983
    %4628 = vmatmul.mubr.bf16.gmra.mrb[0].mxu0 %v2982
    %v4629 = vpop.f32.mrb[0].mxu0
    %v4630 = vadd.f32 %v3263, %v4629
    %v4631 = vpop.f32.mrb[0].mxu0
    %v4632 = vadd.f32 %v3267, %v4631
    %v4633 = vpop.f32.mrb[0].mxu0
    %v4634 = vpop.f32.mrb[0].mxu0
    %4635 = vdwg.mxu0
    %4636 = vmatprep.subr.bf16.mxu0 %v4100
    %4637 = vmatpush1.bf16.msra.mxu0 %v4099
    %4638 = vmatprep.subr.bf16.mxu0 %v4107
    %4639 = vmatpush1.bf16.msra.mxu0 %v4106
    %4640 = vmatprep.subr.bf16.mxu0 %v4114
    %4641 = vmatpush1.bf16.msra.mxu0 %v4113
    %4642 = vmatprep.subr.bf16.mxu0 %v4121
    %4643 = vmatpush1.bf16.msra.mxu0 %v4120
    %4644 = vmatprep.subr.bf16.mxu0 %v4128
    %4645 = vmatpush1.bf16.msra.mxu0 %v4127
    %4646 = vmatprep.subr.bf16.mxu0 %v4135
    %4647 = vmatpush1.bf16.msra.mxu0 %v4134
    %4648 = vmatprep.subr.bf16.mxu0 %v4142
    %4649 = vmatpush1.bf16.msra.mxu0 %v4141
    %4650 = vmatprep.subr.bf16.mxu0 %v4149
    %4651 = vmatpush1.bf16.msra.mxu0 %v4148
    %4652 = vmatprep.subr.bf16.mxu0 %v4156
    %4653 = vmatpush1.bf16.msra.mxu0 %v4155
    %4654 = vmatprep.subr.bf16.mxu0 %v4163
    %4655 = vmatpush1.bf16.msra.mxu0 %v4162
    %4656 = vmatprep.subr.bf16.mxu0 %v4170
    %4657 = vmatpush1.bf16.msra.mxu0 %v4169
    %4658 = vmatprep.subr.bf16.mxu0 %v4177
    %4659 = vmatpush1.bf16.msra.mxu0 %v4176
    %4660 = vmatprep.subr.bf16.mxu0 %v4184
    %4661 = vmatpush1.bf16.msra.mxu0 %v4183
    %4662 = vmatprep.subr.bf16.mxu0 %v4191
    %4663 = vmatpush1.bf16.msra.mxu0 %v4190
    %4664 = vmatprep.subr.bf16.mxu0 %v4198
    %4665 = vmatpush1.bf16.msra.mxu0 %v4197
    %4666 = vmatprep.subr.bf16.mxu0 %v4205
    %4667 = vmatpush1.bf16.msra.mxu0 %v4204
    %4668 = vmatprep.mubr.bf16.mxu0 %v2985
    %4669 = vmatmul.mubr.bf16.gmra.mrb[0].mxu0 %v2984
    %v4670 = vpop.f32.mrb[0].mxu0
    %v4671 = vadd.f32 %v4630, %v4670
    %v4672 = vpop.f32.mrb[0].mxu0
    %v4673 = vadd.f32 %v4632, %v4672
    %v4674 = vpop.f32.mrb[0].mxu0
    %v4675 = vpop.f32.mrb[0].mxu0
    %4676 = vdwg.mxu0
    %4677 = vmatprep.subr.bf16.mxu0 0
    %4678 = vmatpush1.bf16.msra.mxu0 %v3989
    %4679 = vmatprep.subr.bf16.mxu0 0
    %4680 = vmatpush1.bf16.msra.mxu0 %v3996
    %4681 = vmatprep.subr.bf16.mxu0 0
    %4682 = vmatpush1.bf16.msra.mxu0 %v4003
    %4683 = vmatprep.subr.bf16.mxu0 0
    %4684 = vmatpush1.bf16.msra.mxu0 %v4010
    %4685 = vmatprep.subr.bf16.mxu0 0
    %4686 = vmatpush1.bf16.msra.mxu0 %v4017
    %4687 = vmatprep.subr.bf16.mxu0 0
    %4688 = vmatpush1.bf16.msra.mxu0 %v4024
    %4689 = vmatprep.subr.bf16.mxu0 0
    %4690 = vmatpush1.bf16.msra.mxu0 %v4031
    %4691 = vmatprep.subr.bf16.mxu0 0
    %4692 = vmatpush1.bf16.msra.mxu0 %v4038
    %4693 = vmatprep.subr.bf16.mxu0 0
    %4694 = vmatpush1.bf16.msra.mxu0 %v4045
    %4695 = vmatprep.subr.bf16.mxu0 0
    %4696 = vmatpush1.bf16.msra.mxu0 %v4052
    %4697 = vmatprep.subr.bf16.mxu0 0
    %4698 = vmatpush1.bf16.msra.mxu0 %v4059
    %4699 = vmatprep.subr.bf16.mxu0 0
    %4700 = vmatpush1.bf16.msra.mxu0 %v4066
    %4701 = vmatprep.subr.bf16.mxu0 0
    %4702 = vmatpush1.bf16.msra.mxu0 %v4073
    %4703 = vmatprep.subr.bf16.mxu0 0
    %4704 = vmatpush1.bf16.msra.mxu0 %v4080
    %4705 = vmatprep.subr.bf16.mxu0 0
    %4706 = vmatpush1.bf16.msra.mxu0 %v4087
    %4707 = vmatprep.subr.bf16.mxu0 0
    %4708 = vmatpush1.bf16.msra.mxu0 %v4094
    %4709 = vmatprep.mubr.bf16.mxu0 %v2983
    %4710 = vmatmul.mubr.bf16.gmra.mrb[0].mxu0 %v2982
    %v4711 = vpop.f32.mrb[0].mxu0
    %v4712 = vadd.f32 %v3271, %v4711
    %v4713 = vpop.f32.mrb[0].mxu0
    %v4714 = vpop.f32.mrb[0].mxu0
    %v4715 = vpop.f32.mrb[0].mxu0
    %4716 = vdwg.mxu0
    %4717 = vmatprep.subr.bf16.mxu0 0
    %4718 = vmatpush1.bf16.msra.mxu0 %v4101
    %4719 = vmatprep.subr.bf16.mxu0 0
    %4720 = vmatpush1.bf16.msra.mxu0 %v4108
    %4721 = vmatprep.subr.bf16.mxu0 0
    %4722 = vmatpush1.bf16.msra.mxu0 %v4115
    %4723 = vmatprep.subr.bf16.mxu0 0
    %4724 = vmatpush1.bf16.msra.mxu0 %v4122
    %4725 = vmatprep.subr.bf16.mxu0 0
    %4726 = vmatpush1.bf16.msra.mxu0 %v4129
    %4727 = vmatprep.subr.bf16.mxu0 0
    %4728 = vmatpush1.bf16.msra.mxu0 %v4136
    %4729 = vmatprep.subr.bf16.mxu0 0
    %4730 = vmatpush1.bf16.msra.mxu0 %v4143
    %4731 = vmatprep.subr.bf16.mxu0 0
    %4732 = vmatpush1.bf16.msra.mxu0 %v4150
    %4733 = vmatprep.subr.bf16.mxu0 0
    %4734 = vmatpush1.bf16.msra.mxu0 %v4157
    %4735 = vmatprep.subr.bf16.mxu0 0
    %4736 = vmatpush1.bf16.msra.mxu0 %v4164
    %4737 = vmatprep.subr.bf16.mxu0 0
    %4738 = vmatpush1.bf16.msra.mxu0 %v4171
    %4739 = vmatprep.subr.bf16.mxu0 0
    %4740 = vmatpush1.bf16.msra.mxu0 %v4178
    %4741 = vmatprep.subr.bf16.mxu0 0
    %4742 = vmatpush1.bf16.msra.mxu0 %v4185
    %4743 = vmatprep.subr.bf16.mxu0 0
    %4744 = vmatpush1.bf16.msra.mxu0 %v4192
    %4745 = vmatprep.subr.bf16.mxu0 0
    %4746 = vmatpush1.bf16.msra.mxu0 %v4199
    %4747 = vmatprep.subr.bf16.mxu0 0
    %4748 = vmatpush1.bf16.msra.mxu0 %v4206
    %4749 = vmatprep.mubr.bf16.mxu0 %v2985
    %4750 = vmatmul.mubr.bf16.gmra.mrb[0].mxu0 %v2984
    %v4751 = vpop.f32.mrb[0].mxu0
    %v4752 = vadd.f32 %v4712, %v4751
    %v4753 = vpop.f32.mrb[0].mxu0
    %v4754 = vpop.f32.mrb[0].mxu0
    %v4755 = vpop.f32.mrb[0].mxu0
    %4756 = vdwg.mxu0
    %v4757 = vmul.f32 %v4507, 0.5
    %v4758 = vmul.f32 %v4509, 0.5
    %v4759 = vmul.f32 %v4589, 0.5
    %v4760 = vmul.f32 %v4591, 0.5
    %v4761 = vmul.f32 %v4671, 0.5
    %v4762 = vmul.f32 %v4673, 0.5
    %v4763 = vmul.f32 %v4752, 0.5
    %v4764 = vtanh.pop %v4757
    %v4765 = vtanh.pop %v4758
    %v4766 = vtanh.pop %v4759
    %v4767 = vtanh.pop %v4760
    %v4768 = vtanh.pop %v4761
    %v4769 = vtanh.pop %v4762
    %v4770 = vtanh.pop %v4763
    %v4771 = vadd.f32 %v4764, 1.0
    %v4772 = vadd.f32 %v4765, 1.0
    %v4773 = vadd.f32 %v4766, 1.0
    %v4774 = vadd.f32 %v4767, 1.0
    %v4775 = vadd.f32 %v4768, 1.0
    %v4776 = vadd.f32 %v4769, 1.0
    %v4777 = vadd.f32 %v4770, 1.0
    %v4778 = vmul.f32 %v4771, 0.5
    %v4779 = vmul.f32 %v4772, 0.5
    %v4780 = vmul.f32 %v4773, 0.5
    %v4781 = vmul.f32 %v4774, 0.5
    %v4782 = vmul.f32 %v4775, 0.5
    %v4783 = vmul.f32 %v4776, 0.5
    %v4784 = vmul.f32 %v4777, 0.5
    %v4785 = vpack.c.bf16 %v4778, %v4778
    %v4786 = vpack.c.bf16 %v4779, %v4779
    %v4787 = vpack.c.bf16 %v4780, %v4780
    %v4788 = vpack.c.bf16 %v4781, %v4781
    %v4789 = vpack.c.bf16 %v4782, %v4782
    %v4790 = vpack.c.bf16 %v4783, %v4783
    %v4791 = vpack.c.bf16 %v4784, %v4784
    %v4799 = vunpack.c.l.b16 %v4785
    %v4800 = vunpack.c.l.b16 %v4786
    %v4801 = vunpack.c.l.b16 %v4787
    %v4802 = vunpack.c.l.b16 %v4788
    %v4803 = vunpack.c.l.b16 %v4789
    %v4804 = vunpack.c.l.b16 %v4790
    %v4805 = vunpack.c.l.b16 %v4791
    %v4806 = vpack.c.b16 %v4800, %v4799
    %v4807 = vpack.c.b16 %v4802, %v4801
    %v4808 = vpack.c.b16 %v4804, %v4803
    %v4809 = vpack.c.b16 %v4805, %v4805
    %4814 = vst [vmem:[#allocation2] sm:$0xff] %v4806
    %4815 = vst [vmem:[#allocation2 + $0x8] sm:$0xff] %v4807
    %4816 = vst [vmem:[#allocation2 + $0x10] sm:$0xff] %v4808
    %vm4817 = vcmask 125952
    %4818 = vst.msk [vmem:[#allocation2 + $0x18] sm:$0xf] %vm4817, %v4809
    %v4819 = vpack.c.bf16 %v2324, %v2324
    %v4820 = vpack.c.bf16 %v2331, %v2331
    %v4823 = vunpack.c.l.b16 %v4819
    %v4824 = vunpack.c.l.b16 %v4820
    %v4825 = vpack.c.b16 %v4824, %v4823
    %4827 = vst [vmem:[%s15] sm:$0xff] %v4825
    // Predicated region
    $region58: #{vae_forward.1} parent=1 // pred_check
      _
    $region59: #{vae_forward.1} parent=1 // pred_check_branch
      %4829 = sbr.rel (0) target = $region61
    $region60: #{vae_forward.1} parent=1 // pred_region
      %s4831 = ssub.s32 448, 448
      %4832 = vsyncadd [#allocation3], %s4831
      %s4834 = sshll.u32 [#allocation2], 4
      %s4835 = int_to_ptr.vmem [resolvable:$true] %s4834
      %4837 = dma.vmem_to_hbm [thread:$0]  %s4835, 448, %s14, [#allocation3]
    $region61: #{vae_forward.1} parent=1 // pred_fallthru
      _
    // Predicated region
    $region62: #{vae_forward.1} parent=1 // pred_check
      _
    $region63: #{vae_forward.1} parent=1 // pred_check_branch
      %4839 = sbr.rel (0) target = $region65
    $region64: #{vae_forward.1} parent=1 // pred_region
      _
    $region65: #{vae_forward.1} parent=1 // pred_fallthru
      _
    // Predicated region
    $region66: #{vae_forward.1} parent=1 // pred_check
      _
    $region67: #{vae_forward.1} parent=1 // pred_check_branch
      %4841 = sbr.rel (0) target = $region69
    $region68: #{vae_forward.1} parent=1 // pred_region
      %4842 = dma.done [#allocation3], 448
    $region69: #{vae_forward.1} parent=1 // pred_fallthru
      _
    // Predicated region
    $region70: #{vae_forward.1} parent=1 // pred_check
      _
    $region71: #{vae_forward.1} parent=1 // pred_check_branch
      %4844 = sbr.rel (0) target = $region73
    $region72: #{vae_forward.1} parent=1 // pred_region
      _
    $region73: #{vae_forward.1} parent=1 // pred_fallthru
      _
    %4845 = vsyncpa [#allocation3], 1

</llo_original>
